<compile_context>
chip_gen: v7x
topology: tpu7x:2x2x1
jax: 0.10.0
libtpu: 0.0.40
codegen_flags: <defaults>
</compile_context>

<pallas_src>
import numpy as np
import jax
import jax.numpy as jnp
from jax import lax
from jax.experimental import pallas as pl
from jax.experimental.pallas import tpu as pltpu


K, K_PAD = 10, 16   # 9 shifted planes + 1 ones plane, zero-padded to a 16-row contraction


# ----------------------------------------------------------------------------
# Deterministic parameter construction (pure NumPy, mirrors GameOfLifeRules.__init__).
# ----------------------------------------------------------------------------
def make_weights():
    n = np.arange(512)
    bits = ((n[:, None] >> (8 - np.arange(9))[None, :]) & 1).astype(np.float32)
    pats = bits.reshape(512, 3, 3)
    sums = pats.sum(axis=(1, 2))
    alive = pats[:, 1, 1] == 1.0
    w_back0 = pats[alive & ((sums == 2.0) | (sums == 3.0))]                 # (36, 3, 3)
    w_back1 = pats[(~alive) & (sums == 3.0)]                                # (56, 3, 3)
    # NB: nn.Conv2d was declared with out_channels=11 but its weight is overwritten with
    # 18 selected patterns, so the effective forward conv has 18 output channels.
    w_fwd = pats[(sums == 1.0) | (sums == 9.0) | (alive & (sums == 8.0))]   # (18, 3, 3)
    return w_back0, w_back1, w_fwd


# Decomposition of a stride-2 transposed-conv output row 2m+dy into input-row offsets:
# _DECOMP[dy, ky, a+1] = 1  iff  tap (dy) pulls input row m+a through weight row ky.
_DECOMP = np.zeros((3, 3, 3), np.float32)
_DECOMP[0, 0, 1] = 1.0   # dy=0: ky=0 uses row m
_DECOMP[0, 2, 0] = 1.0   # dy=0: ky=2 uses row m-1
_DECOMP[1, 1, 1] = 1.0   # dy=1: ky=1 uses row m
_DECOMP[2, 0, 2] = 1.0   # dy=2: ky=0 uses row m+1
_DECOMP[2, 2, 1] = 1.0   # dy=2: ky=2 uses row m


def make_combined_weight_t(w_back0, w_back1, w_fwd):
    """Precompute the combined weight ONCE in NumPy (no per-call XLA ops).

    Returns (K_PAD, 92*18) float32.  Entries are integers, |entry| <= 81, so the bf16
    cast done by the caller is bit-exact.  Row layout: 9 stencil taps, 1 constant, 6 pad.
    """
    c1 = int(w_back0.shape[0])                                   # 36 x-channels
    wt_all = np.concatenate([w_back0, w_back1], axis=0).astype(np.float32)   # (92, 3, 3)
    CT, NF = wt_all.shape[0], w_fwd.shape[0]                     # 92, 18
    # A[c,j,a,b] = sum_{dy,dx,ky,kx} wf[j,dy,dx] * wt[c,ky,kx] * R[dy,ky,a] * R[dx,kx,b]
    A = np.einsum('jyx,ckl,yka,xlb->cjab',
                  w_fwd.astype(np.float32), wt_all, _DECOMP, _DECOMP)
    A9 = A.reshape(CT, NF, 9)
    inv = (np.arange(CT) >= c1).astype(np.float32)[:, None, None]   # 1 for the 1-x channels
    coef = A9 * (1.0 - 2.0 * inv)                                   # +A for x, -A for 1-x
    const = A9.sum(-1, keepdims=True) * inv                         # constant for 1-x
    wc = np.concatenate(
        [coef, const, np.zeros((CT, NF, K_PAD - K), np.float32)], axis=-1)   # (CT, NF, 16)
    # Transposed layout (K_PAD, CT*NF): lane-dense weight operand for the MXU.
    return np.ascontiguousarray(wc.reshape(CT * NF, K_PAD).T)


# ----------------------------------------------------------------------------
# Pallas kernel: one grid step = G images; G unrolled MXU matmuls.
#   wct (K_PAD, CTNF) bf16  [contract dim 0]  basis_g (K_PAD, HW) bf16 -> (CTNF, HW) f32
#   stored as bf16 (exact: integer values <= 81); lane-dense output (HW = 256).
# ----------------------------------------------------------------------------
def _make_kernel(G):
    def kernel(basis_ref, wct_ref, o_ref):
        # basis_ref: (G, K_PAD, HW) bf16   per-image shifted/ones basis planes
        # wct_ref  : (K_PAD, CTNF)  bf16   precombined weights (constant block)
        # o_ref    : (G, CTNF, HW)  bf16
        wct = wct_ref[...]
        for g in range(G):                       # static unroll, G is small (1 or 2)
            acc = lax.dot_general(
                wct, basis_ref[g],
                dimension_numbers=(((0,), (0,)), ((), ())),   # contract dim 0 of both
                preferred_element_type=jnp.float32)           # f32 accumulate on MXU
            o_ref[g] = acc.astype(o_ref.dtype)                # exact bf16 store
    return kernel


# ----------------------------------------------------------------------------
# Wrapper: basis construction (few fusable XLA ops), pallas_call, reshape.
# ----------------------------------------------------------------------------
def game_of_life_rules_forward(x, wct):
    B, C, H, W = x.shape
    BC, HW = B * C, H * W
    k_pad, CTNF = wct.shape                                      # (16, 92*18)

    # G images per grid step.  Keep the grid even and >= 4 where possible so v7x's two
    # TensorCores each get >= 2 pipelined iterations; on v5e/v6e (1 TC) this is also fine.
    G = 2 if (BC % 2 == 0 and BC >= 4) else 1
    grid = BC // G

    # Basis planes per image: 9 circular shifts of x + a ones plane + zero pad to K_PAD.
    # plane_{a,b}[m, n] = x[(m+a)%H, (n+b)%W]
    xr = x.reshape(BC, H, W).astype(jnp.float32)
    planes = [jnp.roll(xr, (-a, -b), axis=(1, 2))
              for a in (-1, 0, 1) for b in (-1, 0, 1)]
    planes.append(jnp.ones_like(xr))
    basis = jnp.stack(planes, axis=1)                            # (BC, 10, H, W)
    basis = jnp.concatenate(
        [basis, jnp.zeros((BC, k_pad - len(planes), H, W), basis.dtype)], axis=1)
    basis = basis.reshape(BC, k_pad, HW).astype(jnp.bfloat16)    # lane-dense, exact cast

    # Advisory cost: the kernel is output-write bound, ~0.1 GFLOP.
    cost = pl.CostEstimate(
        flops=2 * BC * k_pad * CTNF * HW,
        transcendentals=0,
        bytes_accessed=BC * CTNF * HW * 2 + BC * k_pad * HW * 2 + k_pad * CTNF * 2)

    out = pl.pallas_call(
        _make_kernel(G),
        out_shape=jax.ShapeDtypeStruct((BC, CTNF, HW), jnp.bfloat16),
        grid=(grid,),
        in_specs=[
            pl.BlockSpec((G, k_pad, HW), lambda i: (i, 0, 0)),
            pl.BlockSpec((k_pad, CTNF), lambda i: (0, 0)),       # constant weight block
        ],
        # NOTE: for much larger H*W, add a grid axis tiling CTNF (e.g. 414 or 552) here
        # before growing this block, to stay inside v7x's 64 MiB VMEM.
        out_specs=pl.BlockSpec((G, CTNF, HW), lambda i: (i, 0, 0)),
        compiler_params=pltpu.CompilerParams(
            dimension_semantics=("parallel",)),                  # megacore sharding on v7x
        cost_estimate=cost,
    )(basis, wct)

    # (BC, 92*18, H*W) -> (B, C*92*18, H, W): pure reshape, identical channel order to
    # the PyTorch x.reshape(shape[0], -1, H, W).
    return out.reshape(B, C * CTNF, H, W)


# TODO(synk): `forward_play = GameOfLifeHardcodedReLU1_21()` is built in __init__ but is
# never used in forward(); it is intentionally omitted here.


# ----------------------------------------------------------------------------
# Pure-JAX reference (direct transcription of the PyTorch forward) for validation.
# ----------------------------------------------------------------------------
def reference_forward(x, w_back0, w_back1, w_fwd):
    B, C, H, W = x.shape
    xr = x.reshape(-1, 1, H, W).astype(jnp.float32)

    def conv_transpose_s2(inp, wsel):
        N = inp.shape[0]
        Cout = wsel.shape[0]
        out = jnp.zeros((N, Cout, 2 * H + 1, 2 * W + 1), jnp.float32)
        for ky in range(3):
            for kx in range(3):
                out = out.at[:, :, ky:ky + 2 * H:2, kx:kx + 2 * W:2].add(
                    inp[:, 0][:, None] * wsel[:, ky, kx][None, :, None, None])
        return out

    t = jnp.concatenate([conv_transpose_s2(xr, w_back0),
                         conv_transpose_s2(1.0 - xr, w_back1)], axis=1)
    # CircularPadding, sequential in-place semantics
    t = t.at[:, :, 0, :].add(t[:, :, -1, :])
    t = t.at[:, :, -1, :].set(t[:, :, 0, :])
    t = t.at[:, :, :, 0].add(t[:, :, :, -1])
    t = t.at[:, :, :, -1].set(t[:, :, :, 0])

    Hp, Wp = t.shape[2], t.shape[3]
    tr = t.reshape(-1, 1, Hp, Wp)
    out = jnp.zeros((tr.shape[0], w_fwd.shape[0], H, W), jnp.float32)
    for dy in range(3):
        for dx in range(3):
            out = out + (tr[:, 0, dy:dy + 2 * H:2, dx:dx + 2 * W:2][:, None]
                         * w_fwd[:, dy, dx][None, :, None, None])
    return out.reshape(B, -1, H, W)


if __name__ == "__main__":
    key = jax.random.PRNGKey(0)
    B, C, H, W = 2, 4, 16, 16
    x = jax.random.bernoulli(key, 0.5, (B, C, H, W)).astype(jnp.float32)

    w_back0, w_back1, w_fwd = make_weights()                     # NumPy
    assert w_back0.shape == (36, 3, 3) and w_back1.shape == (56, 3, 3) and w_fwd.shape == (18, 3, 3)

    # Combined weight: computed once in NumPy, cast to bf16 once (exact: integer entries).
    wct = jnp.asarray(make_combined_weight_t(w_back0, w_back1, w_fwd), dtype=jnp.bfloat16)
    assert wct.shape == (K_PAD, 92 * 18)

    fwd = jax.jit(game_of_life_rules_forward)
    out = jax.block_until_ready(fwd(x, wct))
    assert out.shape == (B, C * 92 * 18, H, W), out.shape
    assert out.dtype == jnp.bfloat16

    ref = jax.block_until_ready(reference_forward(
        x, jnp.asarray(w_back0), jnp.asarray(w_back1), jnp.asarray(w_fwd)))
    np.testing.assert_allclose(np.asarray(out.astype(jnp.float32)), np.asarray(ref),
                               rtol=0, atol=1e-4)

    print("KERNEL_OK")
</pallas_src>

<mosaic_0001>
module attributes {stable_mosaic.version = 11 : i64} {
  func.func @kernel(%arg0: i32, %arg1: memref<2x16x256xbf16, #tpu.memory_space<vmem>>, %arg2: memref<16x1656xbf16, #tpu.memory_space<vmem>>, %arg3: memref<2x1656x256xbf16, #tpu.memory_space<vmem>>) attributes {dimension_semantics = [#tpu.dimension_semantics<parallel>], iteration_bounds = array<i64: 4>, scalar_prefetch = 0 : i64, scratch_operands = 0 : i64, tpu.core_type = #tpu.core_type<tc>, window_params = [{transform_indices = @transform_0, window_bounds = array<i64: 2, 16, 256>}, {pipeline_mode = #tpu.pipeline_mode<synchronous>, transform_indices = @transform_1, window_bounds = array<i64: 16, 1656>}, {transform_indices = @transform_2, window_bounds = array<i64: 2, 1656, 256>}]} {
    %c0 = arith.constant 0 : index
    %c0_0 = arith.constant 0 : index
    %0 = vector.load %arg2[%c0, %c0_0] : memref<16x1656xbf16, #tpu.memory_space<vmem>>, vector<16x1656xbf16>
    %c0_1 = arith.constant 0 : index
    %c0_2 = arith.constant 0 : index
    %c0_3 = arith.constant 0 : index
    %1 = vector.load %arg1[%c0_1, %c0_2, %c0_3] : memref<2x16x256xbf16, #tpu.memory_space<vmem>>, vector<1x16x256xbf16>
    %2 = vector.shape_cast %1 : vector<1x16x256xbf16> to vector<16x256xbf16>
    %cst = arith.constant dense<0.000000e+00> : vector<1656x256xf32>
    %3 = tpu.matmul %0, %2, %cst {dimension_numbers = #tpu.dot_dimension_numbers<[0], [0], [1], [1], [0, 1, 1, 1], [], []>} : vector<16x1656xbf16>, vector<16x256xbf16>, vector<1656x256xf32> -> vector<1656x256xf32>
    %4 = arith.truncf %3 : vector<1656x256xf32> to vector<1656x256xbf16>
    %c0_4 = arith.constant 0 : index
    %c0_5 = arith.constant 0 : index
    %c0_6 = arith.constant 0 : index
    %5 = vector.load %arg3[%c0_4, %c0_5, %c0_6] : memref<2x1656x256xbf16, #tpu.memory_space<vmem>>, vector<1x1656x256xbf16>
    %6 = vector.shape_cast %5 : vector<1x1656x256xbf16> to vector<1656x256xbf16>
    %7 = vector.shape_cast %4 : vector<1656x256xbf16> to vector<1x1656x256xbf16>
    tpu.vector_store %arg3[%c0_4, %c0_5, %c0_6], %7 {strides = array<i32>} : memref<2x1656x256xbf16, #tpu.memory_space<vmem>>, vector<1x1656x256xbf16>,
    %c1 = arith.constant 1 : index
    %c0_7 = arith.constant 0 : index
    %c0_8 = arith.constant 0 : index
    %8 = vector.load %arg1[%c1, %c0_7, %c0_8] : memref<2x16x256xbf16, #tpu.memory_space<vmem>>, vector<1x16x256xbf16>
    %9 = vector.shape_cast %8 : vector<1x16x256xbf16> to vector<16x256xbf16>
    %cst_9 = arith.constant dense<0.000000e+00> : vector<1656x256xf32>
    %10 = tpu.matmul %0, %9, %cst_9 {dimension_numbers = #tpu.dot_dimension_numbers<[0], [0], [1], [1], [0, 1, 1, 1], [], []>} : vector<16x1656xbf16>, vector<16x256xbf16>, vector<1656x256xf32> -> vector<1656x256xf32>
    %11 = arith.truncf %10 : vector<1656x256xf32> to vector<1656x256xbf16>
    %c1_10 = arith.constant 1 : index
    %c0_11 = arith.constant 0 : index
    %c0_12 = arith.constant 0 : index
    %12 = vector.load %arg3[%c1_10, %c0_11, %c0_12] : memref<2x1656x256xbf16, #tpu.memory_space<vmem>>, vector<1x1656x256xbf16>
    %13 = vector.shape_cast %12 : vector<1x1656x256xbf16> to vector<1656x256xbf16>
    %14 = vector.shape_cast %11 : vector<1656x256xbf16> to vector<1x1656x256xbf16>
    tpu.vector_store %arg3[%c1_10, %c0_11, %c0_12], %14 {strides = array<i32>} : memref<2x1656x256xbf16, #tpu.memory_space<vmem>>, vector<1x1656x256xbf16>,
    return
  }
  func.func @transform_0(%arg0: i32) -> (i32, i32, i32) {
    %c0_i32 = arith.constant 0 : i32
    %c0_i32_0 = arith.constant 0 : i32
    %c0_i32_1 = arith.constant 0 : i32
    return %arg0, %c0_i32, %c0_i32_0 : i32, i32, i32
  }
  func.func @transform_1(%arg0: i32) -> (i32, i32) {
    %c0_i32 = arith.constant 0 : i32
    %c0_i32_0 = arith.constant 0 : i32
    %c0_i32_1 = arith.constant 0 : i32
    return %c0_i32, %c0_i32_0 : i32, i32
  }
  func.func @transform_2(%arg0: i32) -> (i32, i32, i32) {
    %c0_i32 = arith.constant 0 : i32
    %c0_i32_0 = arith.constant 0 : i32
    %c0_i32_1 = arith.constant 0 : i32
    return %arg0, %c0_i32, %c0_i32_0 : i32, i32, i32
  }
}

</mosaic_0001>

<llo_original>
// kernel: game_of_life_rules_forward.1
$region0: #{game_of_life_rules_forward.1}
  #allocation0 [shape = 'u32[]', space=smem, size = 0x4, offset = 0x4, fixed_abs, tag = 'smem constant byte address 0x4 - core index']
  #allocation1 [shape = 'u32[144,128]{1,0:T(1,128)}', space=vmem, size = 0x12000, scoped, tag = 'internal scratch']
  %s0 = inlined_call_operand.vmem [shape: bf16[8,16,256], index: 0, kind: input, shape index: {}]
  %s1 = inlined_call_operand.hbm [shape: bf16[16,1656], index: 1, kind: input, shape index: {}]
  %s2 = inlined_call_operand.vmem [shape: bf16[8,1656,256], index: 2, kind: output, shape index: {}]
  %s3 = sld [smem:[#allocation0]]
  $region45: #{game_of_life_rules_forward.1} parent=0
    _
  %s5 = ssub.s32 1, %s3
  %s6 = scalar_select 0, %s5, %s3
  $region1: #{game_of_life_rules_forward.1} parent=0
    #allocation2 [shape = 'u8[53248]{0}', space=vmem, size = 0xd000, scoped, tag = 'input window, operand 1, single buffered']
    #allocation3 [shape = 's32[2]{0}', space=sflag, size = 0x8, scoped, tag = 'scoped memory for game_of_life_rules_forward.1']
    %7 = vsyncpa [#allocation3], 0
    loop: start=0, step=1, limit=6
    $region2: #{game_of_life_rules_forward.1} parent=1 // loop_pre_header
      _
    $region3: #{game_of_life_rules_forward.1} parent=1 // loop_header
      %s9 = sphi 0, %s13
      %p10 = scmp.ge.s32.totalorder %s9, 6
      %s19 = sphi 0, %s21
      %s22 = sphi 0, %s19
      %s23 = sphi 0, %s22
      %s39 = sphi 0, %s23
      %s43 = sphi 0, %s43
      %s45 = sphi 0, %s43
      %s46 = sphi 0, %s45
      %s60 = sphi 0, %s46
      %s66 = sphi 0, %s68
      %s69 = sphi 0, %s66
      %s70 = sphi 0, %s69
      %s86 = sphi 0, %s70
    $region4: #{game_of_life_rules_forward.1} parent=1 // loop_header_branch
      %12 = sbr.rel (%p10) target = $region8
    $region5: #{game_of_life_rules_forward.1} parent=1 // loop_body
      %s14 = ssub.s32 %s9, 1
      %s15 = ssub.s32 %s9, 2
      %s16 = sadd.s32 %s9, 1
      %s17 = ssub.s32 %s9, %s16
      %p18 = scmp.eq.s32.totalorder %s17, 0
      %s20 = sadd.s32 %s19, 1
      %s21 = scalar_select %p18, %s19, %s20
      %p24 = pneg %p18
      %p25 = scmp.eq.s32.totalorder %s9, 3
      %p26 = por %p24, %p25
      %p27 = scmp.ne.s32.totalorder %s19, %s22
      %p28 = scmp.eq.s32.totalorder %s9, 0
      %p29 = por %p27, %p28
      %p30 = scmp.ne.s32.totalorder %s19, %s22
      %p31 = scmp.eq.s32.totalorder %s14, 3
      %p32 = por %p30, %p31
      %p33 = scmp.ne.s32.totalorder %s22, %s23
      %p34 = scmp.eq.s32.totalorder %s14, 0
      %p35 = por %p33, %p34
      %p36 = scmp.ne.s32.totalorder %s22, %s23
      %p37 = scmp.eq.s32.totalorder %s15, 3
      %p38 = por %p36, %p37
      %p40 = scmp.ne.s32.totalorder %s23, %s39
      %p41 = scmp.eq.s32.totalorder %s15, 0
      %p42 = por %p40, %p41
      %s44 = sadd.s32 %s43, 1
      %p47 = scmp.eq.s32.totalorder %s9, 3
      %p48 = scmp.ne.s32.totalorder %s43, %s45
      %p49 = scmp.eq.s32.totalorder %s9, 0
      %p50 = por %p48, %p49
      %p51 = scmp.ne.s32.totalorder %s43, %s45
      %p52 = scmp.eq.s32.totalorder %s14, 3
      %p53 = por %p51, %p52
      %p54 = scmp.ne.s32.totalorder %s45, %s46
      %p55 = scmp.eq.s32.totalorder %s14, 0
      %p56 = por %p54, %p55
      %p57 = scmp.ne.s32.totalorder %s45, %s46
      %p58 = scmp.eq.s32.totalorder %s15, 3
      %p59 = por %p57, %p58
      %p61 = scmp.ne.s32.totalorder %s46, %s60
      %p62 = scmp.eq.s32.totalorder %s15, 0
      %p63 = por %p61, %p62
      %s64 = ssub.s32 %s9, %s16
      %p65 = scmp.eq.s32.totalorder %s64, 0
      %s67 = sadd.s32 %s66, 1
      %s68 = scalar_select %p65, %s66, %s67
      %p71 = pneg %p65
      %p72 = scmp.eq.s32.totalorder %s9, 3
      %p73 = por %p71, %p72
      %p74 = scmp.ne.s32.totalorder %s66, %s69
      %p75 = scmp.eq.s32.totalorder %s9, 0
      %p76 = por %p74, %p75
      %p77 = scmp.ne.s32.totalorder %s66, %s69
      %p78 = scmp.eq.s32.totalorder %s14, 3
      %p79 = por %p77, %p78
      %p80 = scmp.ne.s32.totalorder %s69, %s70
      %p81 = scmp.eq.s32.totalorder %s14, 0
      %p82 = por %p80, %p81
      %p83 = scmp.ne.s32.totalorder %s69, %s70
      %p84 = scmp.eq.s32.totalorder %s15, 3
      %p85 = por %p83, %p84
      %p87 = scmp.ne.s32.totalorder %s70, %s86
      %p88 = scmp.eq.s32.totalorder %s15, 0
      %p89 = por %p87, %p88
      %p90 = scmp.le.s32.totalorder 1, %s9
      %p91 = scmp.lt.s32.totalorder %s9, 5
      %p92 = pnand %p90, %p91
      %p93 = pneg %p92
      // Predicated region
      $region9: #{game_of_life_rules_forward.1} parent=5 // pred_check
        _
      $region10: #{game_of_life_rules_forward.1} parent=5 // pred_check_branch
        %95 = sbr.rel (%p92) target = $region12
      $region11: #{game_of_life_rules_forward.1} parent=5 // pred_region
        %s96 = ssub.s32 %s9, 1
        // Predicated region
        $region13: #{game_of_life_rules_forward.1} parent=11 // pred_check
          %p97 = pneg %p56
        $region14: #{game_of_life_rules_forward.1} parent=11 // pred_check_branch
          %99 = sbr.rel (%p97) target = $region16
        $region15: #{game_of_life_rules_forward.1} parent=11 // pred_region
          %s101 = ssub.s32 1664, 1664
          %102 = vsyncadd [#allocation3], %s101
          %s103 = sshll.u32 [#allocation2], 4
          %s104 = int_to_ptr.vmem [resolvable:$true] %s103
          %109 = dma.hbm_to_vmem [thread:$0]  %s1, 1664, %s104, [#allocation3], 832, 832, 52
        $region16: #{game_of_life_rules_forward.1} parent=11 // pred_fallthru
          _
      $region12: #{game_of_life_rules_forward.1} parent=5 // pred_fallthru
        _
      %p110 = scmp.lt.s32.totalorder %s9, 4
      // Predicated region
      $region17: #{game_of_life_rules_forward.1} parent=5 // pred_check
        %p111 = pneg %p110
      $region18: #{game_of_life_rules_forward.1} parent=5 // pred_check_branch
        %113 = sbr.rel (%p111) target = $region20
      $region19: #{game_of_life_rules_forward.1} parent=5 // pred_region
        // Predicated region
        $region21: #{game_of_life_rules_forward.1} parent=19 // pred_check
          %p114 = pneg %p29
        $region22: #{game_of_life_rules_forward.1} parent=19 // pred_check_branch
          %116 = sbr.rel (%p114) target = $region24
        $region23: #{game_of_life_rules_forward.1} parent=19 // pred_region
          %s117 = smul.u32 2, %s9
          %p118 = scmp.lt.s32.totalorder %s117, 7
          %s119 = scalar_select %p118, %s117, 7
          %s120 = smul.addr %s119, 4
          %s121 = smul.addr %s120, 4
          %s122 = scalar_lea.vmem %s0, %s121
          %s123 = smul.u32 2, %s9
        $region24: #{game_of_life_rules_forward.1} parent=19 // pred_fallthru
          _
      $region20: #{game_of_life_rules_forward.1} parent=5 // pred_fallthru
        _
      %p124 = scmp.le.s32.totalorder 1, %s9
      %p125 = scmp.lt.s32.totalorder %s9, 5
      %p126 = pnand %p124, %p125
      %p127 = pneg %p126
      // Predicated region
      $region25: #{game_of_life_rules_forward.1} parent=5 // pred_check
        _
      $region26: #{game_of_life_rules_forward.1} parent=5 // pred_check_branch
        %129 = sbr.rel (%p126) target = $region28
      $region27: #{game_of_life_rules_forward.1} parent=5 // pred_region
        %s130 = ssub.s32 %s9, 1
        // Predicated region
        $region29: #{game_of_life_rules_forward.1} parent=27 // pred_check
          %p131 = pneg %p56
        $region30: #{game_of_life_rules_forward.1} parent=27 // pred_check_branch
          %133 = sbr.rel (%p131) target = $region32
        $region31: #{game_of_life_rules_forward.1} parent=27 // pred_region
          %134 = dma.done [#allocation3], 1664
        $region32: #{game_of_life_rules_forward.1} parent=27 // pred_fallthru
          _
        %s135 = smul.u32 2, %s14
        %p136 = scmp.lt.s32.totalorder %s135, 7
        %s137 = scalar_select %p136, %s135, 7
        %s138 = smul.addr %s137, 4
        %s139 = smul.addr %s138, 4
        %s140 = scalar_lea.vmem %s0, %s139
        %p141 = pneg %p35
        %p142 = pneg %p32
        %p143 = pneg %p56
        %p144 = pneg %p53
        %p145 = pneg %p82
        %p146 = pneg %p79
        %s147 = smul.u32 2, %s14
        %p148 = scmp.lt.s32.totalorder %s147, 7
        %s149 = scalar_select %p148, %s147, 7
        %s150 = smul.addr %s149, 414
        %s151 = smul.addr %s150, 4
        %s152 = scalar_lea.vmem %s2, %s151
        %s153 = smul.u32 2, %s14
        %p154 = scmp.lt.s32.totalorder %s153, 7
        %s155 = scalar_select %p154, %s153, 7
        %s156 = smul.addr %s155, 4
        %s157 = smul.addr %s156, 4
        %s158 = scalar_lea.vmem %s0, %s157
        %s159 = smul.u32 2, %s14
        %s160 = smul.u32 2, %s14
        %p161 = scmp.lt.s32.totalorder %s160, 7
        %s162 = scalar_select %p161, %s160, 7
        %s163 = smul.addr %s162, 414
        %s164 = smul.addr %s163, 4
        %s165 = scalar_lea.vmem %s2, %s164
        %s166 = smul.u32 2, %s14
        %v168 = vld [vmem:[#allocation2] sm:$0xff]
        %v169 = vld [vmem:[#allocation2 + $0x8] sm:$0xff]
        %v170 = vld [vmem:[#allocation2 + $0x10] sm:$0xff]
        %v171 = vld [vmem:[#allocation2 + $0x18] sm:$0xff]
        %v172 = vld [vmem:[#allocation2 + $0x20] sm:$0xff]
        %v173 = vld [vmem:[#allocation2 + $0x28] sm:$0xff]
        %v174 = vld [vmem:[#allocation2 + $0x30] sm:$0xf]
        %v175 = vld [vmem:[#allocation2 + $0x34] sm:$0xff]
        %v176 = vld [vmem:[#allocation2 + $0x3c] sm:$0xff]
        %v177 = vld [vmem:[#allocation2 + $0x44] sm:$0xff]
        %v178 = vld [vmem:[#allocation2 + $0x4c] sm:$0xff]
        %v179 = vld [vmem:[#allocation2 + $0x54] sm:$0xff]
        %v180 = vld [vmem:[#allocation2 + $0x5c] sm:$0xff]
        %v181 = vld [vmem:[#allocation2 + $0x64] sm:$0xf]
        %v182 = vld [vmem:[%s158] sm:$0xff]
        %v183 = vld [vmem:[%s158 + $0x8] sm:$0xff]
        %v198 = vunpack.c.l.b16 %v168
        %v199 = vunpack.c.h.b16 %v168
        %v200 = vunpack.c.l.b16 %v169
        %v201 = vunpack.c.h.b16 %v169
        %v202 = vunpack.c.l.b16 %v170
        %v203 = vunpack.c.h.b16 %v170
        %v204 = vunpack.c.l.b16 %v171
        %v205 = vunpack.c.h.b16 %v171
        %v206 = vunpack.c.l.b16 %v172
        %v207 = vunpack.c.h.b16 %v172
        %v208 = vunpack.c.l.b16 %v173
        %v209 = vunpack.c.h.b16 %v173
        %v210 = vunpack.c.l.b16 %v174
        %v211 = vunpack.c.l.b16 %v175
        %v212 = vunpack.c.h.b16 %v175
        %v213 = vunpack.c.l.b16 %v176
        %v214 = vunpack.c.h.b16 %v176
        %v215 = vunpack.c.l.b16 %v177
        %v216 = vunpack.c.h.b16 %v177
        %v217 = vunpack.c.l.b16 %v178
        %v218 = vunpack.c.h.b16 %v178
        %v219 = vunpack.c.l.b16 %v179
        %v220 = vunpack.c.h.b16 %v179
        %v221 = vunpack.c.l.b16 %v180
        %v222 = vunpack.c.h.b16 %v180
        %v223 = vunpack.c.l.b16 %v181
        %v224 = vpack.c.b16 %v211, %v198
        %v225 = vpack.c.b16 %v212, %v199
        %v226 = vpack.c.b16 %v213, %v200
        %v227 = vpack.c.b16 %v214, %v201
        %v228 = vpack.c.b16 %v215, %v202
        %v229 = vpack.c.b16 %v216, %v203
        %v230 = vpack.c.b16 %v217, %v204
        %v231 = vpack.c.b16 %v218, %v205
        %v232 = vpack.c.b16 %v219, %v206
        %v233 = vpack.c.b16 %v220, %v207
        %v234 = vpack.c.b16 %v221, %v208
        %v235 = vpack.c.b16 %v222, %v209
        %v236 = vpack.c.b16 %v223, %v210
        %250 = vxpose.xlu0.c.b16.start [1/8] %v224, 128
        %251 = vxpose.xlu0.c.b16.cont [2/8] 0, 128
        %252 = vxpose.xlu0.c.b16.cont [3/8] 0, 128
        %253 = vxpose.xlu0.c.b16.cont [4/8] 0, 128
        %254 = vxpose.xlu0.c.b16.cont [5/8] 0, 128
        %255 = vxpose.xlu0.c.b16.cont [6/8] 0, 128
        %256 = vxpose.xlu0.c.b16.cont [7/8] 0, 128
        %257 = vxpose.xlu0.c.b16.end [8/8] 0, 128
        %v258 = vpop.trf.xlu0
        %v259 = vpop.trf.xlu0
        %v260 = vpop.trf.xlu0
        %v261 = vpop.trf.xlu0
        %v262 = vpop.trf.xlu0
        %v263 = vpop.trf.xlu0
        %v264 = vpop.trf.xlu0
        %v265 = vpop.trf.xlu0
        %266 = vxpose.xlu0.c.b16.start [1/8] %v225, 128
        %267 = vxpose.xlu0.c.b16.cont [2/8] 0, 128
        %268 = vxpose.xlu0.c.b16.cont [3/8] 0, 128
        %269 = vxpose.xlu0.c.b16.cont [4/8] 0, 128
        %270 = vxpose.xlu0.c.b16.cont [5/8] 0, 128
        %271 = vxpose.xlu0.c.b16.cont [6/8] 0, 128
        %272 = vxpose.xlu0.c.b16.cont [7/8] 0, 128
        %273 = vxpose.xlu0.c.b16.end [8/8] 0, 128
        %v274 = vpop.trf.xlu0
        %v275 = vpop.trf.xlu0
        %v276 = vpop.trf.xlu0
        %v277 = vpop.trf.xlu0
        %v278 = vpop.trf.xlu0
        %v279 = vpop.trf.xlu0
        %v280 = vpop.trf.xlu0
        %v281 = vpop.trf.xlu0
        %282 = vxpose.xlu0.c.b16.start [1/8] %v226, 128
        %283 = vxpose.xlu0.c.b16.cont [2/8] 0, 128
        %284 = vxpose.xlu0.c.b16.cont [3/8] 0, 128
        %285 = vxpose.xlu0.c.b16.cont [4/8] 0, 128
        %286 = vxpose.xlu0.c.b16.cont [5/8] 0, 128
        %287 = vxpose.xlu0.c.b16.cont [6/8] 0, 128
        %288 = vxpose.xlu0.c.b16.cont [7/8] 0, 128
        %289 = vxpose.xlu0.c.b16.end [8/8] 0, 128
        %v290 = vpop.trf.xlu0
        %v291 = vpop.trf.xlu0
        %v292 = vpop.trf.xlu0
        %v293 = vpop.trf.xlu0
        %v294 = vpop.trf.xlu0
        %v295 = vpop.trf.xlu0
        %v296 = vpop.trf.xlu0
        %v297 = vpop.trf.xlu0
        %298 = vxpose.xlu0.c.b16.start [1/8] %v227, 128
        %299 = vxpose.xlu0.c.b16.cont [2/8] 0, 128
        %300 = vxpose.xlu0.c.b16.cont [3/8] 0, 128
        %301 = vxpose.xlu0.c.b16.cont [4/8] 0, 128
        %302 = vxpose.xlu0.c.b16.cont [5/8] 0, 128
        %303 = vxpose.xlu0.c.b16.cont [6/8] 0, 128
        %304 = vxpose.xlu0.c.b16.cont [7/8] 0, 128
        %305 = vxpose.xlu0.c.b16.end [8/8] 0, 128
        %v306 = vpop.trf.xlu0
        %v307 = vpop.trf.xlu0
        %v308 = vpop.trf.xlu0
        %v309 = vpop.trf.xlu0
        %v310 = vpop.trf.xlu0
        %v311 = vpop.trf.xlu0
        %v312 = vpop.trf.xlu0
        %v313 = vpop.trf.xlu0
        %314 = vxpose.xlu0.c.b16.start [1/8] %v228, 128
        %315 = vxpose.xlu0.c.b16.cont [2/8] 0, 128
        %316 = vxpose.xlu0.c.b16.cont [3/8] 0, 128
        %317 = vxpose.xlu0.c.b16.cont [4/8] 0, 128
        %318 = vxpose.xlu0.c.b16.cont [5/8] 0, 128
        %319 = vxpose.xlu0.c.b16.cont [6/8] 0, 128
        %320 = vxpose.xlu0.c.b16.cont [7/8] 0, 128
        %321 = vxpose.xlu0.c.b16.end [8/8] 0, 128
        %v322 = vpop.trf.xlu0
        %v323 = vpop.trf.xlu0
        %v324 = vpop.trf.xlu0
        %v325 = vpop.trf.xlu0
        %v326 = vpop.trf.xlu0
        %v327 = vpop.trf.xlu0
        %v328 = vpop.trf.xlu0
        %v329 = vpop.trf.xlu0
        %330 = vxpose.xlu0.c.b16.start [1/8] %v229, 128
        %331 = vxpose.xlu0.c.b16.cont [2/8] 0, 128
        %332 = vxpose.xlu0.c.b16.cont [3/8] 0, 128
        %333 = vxpose.xlu0.c.b16.cont [4/8] 0, 128
        %334 = vxpose.xlu0.c.b16.cont [5/8] 0, 128
        %335 = vxpose.xlu0.c.b16.cont [6/8] 0, 128
        %336 = vxpose.xlu0.c.b16.cont [7/8] 0, 128
        %337 = vxpose.xlu0.c.b16.end [8/8] 0, 128
        %v338 = vpop.trf.xlu0
        %v339 = vpop.trf.xlu0
        %v340 = vpop.trf.xlu0
        %v341 = vpop.trf.xlu0
        %v342 = vpop.trf.xlu0
        %v343 = vpop.trf.xlu0
        %v344 = vpop.trf.xlu0
        %v345 = vpop.trf.xlu0
        %346 = vxpose.xlu0.c.b16.start [1/8] %v230, 128
        %347 = vxpose.xlu0.c.b16.cont [2/8] 0, 128
        %348 = vxpose.xlu0.c.b16.cont [3/8] 0, 128
        %349 = vxpose.xlu0.c.b16.cont [4/8] 0, 128
        %350 = vxpose.xlu0.c.b16.cont [5/8] 0, 128
        %351 = vxpose.xlu0.c.b16.cont [6/8] 0, 128
        %352 = vxpose.xlu0.c.b16.cont [7/8] 0, 128
        %353 = vxpose.xlu0.c.b16.end [8/8] 0, 128
        %v354 = vpop.trf.xlu0
        %v355 = vpop.trf.xlu0
        %v356 = vpop.trf.xlu0
        %v357 = vpop.trf.xlu0
        %v358 = vpop.trf.xlu0
        %v359 = vpop.trf.xlu0
        %v360 = vpop.trf.xlu0
        %v361 = vpop.trf.xlu0
        %362 = vxpose.xlu0.c.b16.start [1/8] %v231, 128
        %363 = vxpose.xlu0.c.b16.cont [2/8] 0, 128
        %364 = vxpose.xlu0.c.b16.cont [3/8] 0, 128
        %365 = vxpose.xlu0.c.b16.cont [4/8] 0, 128
        %366 = vxpose.xlu0.c.b16.cont [5/8] 0, 128
        %367 = vxpose.xlu0.c.b16.cont [6/8] 0, 128
        %368 = vxpose.xlu0.c.b16.cont [7/8] 0, 128
        %369 = vxpose.xlu0.c.b16.end [8/8] 0, 128
        %v370 = vpop.trf.xlu0
        %v371 = vpop.trf.xlu0
        %v372 = vpop.trf.xlu0
        %v373 = vpop.trf.xlu0
        %v374 = vpop.trf.xlu0
        %v375 = vpop.trf.xlu0
        %v376 = vpop.trf.xlu0
        %v377 = vpop.trf.xlu0
        %378 = vxpose.xlu0.c.b16.start [1/8] %v232, 128
        %379 = vxpose.xlu0.c.b16.cont [2/8] 0, 128
        %380 = vxpose.xlu0.c.b16.cont [3/8] 0, 128
        %381 = vxpose.xlu0.c.b16.cont [4/8] 0, 128
        %382 = vxpose.xlu0.c.b16.cont [5/8] 0, 128
        %383 = vxpose.xlu0.c.b16.cont [6/8] 0, 128
        %384 = vxpose.xlu0.c.b16.cont [7/8] 0, 128
        %385 = vxpose.xlu0.c.b16.end [8/8] 0, 128
        %v386 = vpop.trf.xlu0
        %v387 = vpop.trf.xlu0
        %v388 = vpop.trf.xlu0
        %v389 = vpop.trf.xlu0
        %v390 = vpop.trf.xlu0
        %v391 = vpop.trf.xlu0
        %v392 = vpop.trf.xlu0
        %v393 = vpop.trf.xlu0
        %394 = vxpose.xlu0.c.b16.start [1/8] %v233, 128
        %395 = vxpose.xlu0.c.b16.cont [2/8] 0, 128
        %396 = vxpose.xlu0.c.b16.cont [3/8] 0, 128
        %397 = vxpose.xlu0.c.b16.cont [4/8] 0, 128
        %398 = vxpose.xlu0.c.b16.cont [5/8] 0, 128
        %399 = vxpose.xlu0.c.b16.cont [6/8] 0, 128
        %400 = vxpose.xlu0.c.b16.cont [7/8] 0, 128
        %401 = vxpose.xlu0.c.b16.end [8/8] 0, 128
        %v402 = vpop.trf.xlu0
        %v403 = vpop.trf.xlu0
        %v404 = vpop.trf.xlu0
        %v405 = vpop.trf.xlu0
        %v406 = vpop.trf.xlu0
        %v407 = vpop.trf.xlu0
        %v408 = vpop.trf.xlu0
        %v409 = vpop.trf.xlu0
        %410 = vxpose.xlu0.c.b16.start [1/8] %v234, 128
        %411 = vxpose.xlu0.c.b16.cont [2/8] 0, 128
        %412 = vxpose.xlu0.c.b16.cont [3/8] 0, 128
        %413 = vxpose.xlu0.c.b16.cont [4/8] 0, 128
        %414 = vxpose.xlu0.c.b16.cont [5/8] 0, 128
        %415 = vxpose.xlu0.c.b16.cont [6/8] 0, 128
        %416 = vxpose.xlu0.c.b16.cont [7/8] 0, 128
        %417 = vxpose.xlu0.c.b16.end [8/8] 0, 128
        %v418 = vpop.trf.xlu0
        %v419 = vpop.trf.xlu0
        %v420 = vpop.trf.xlu0
        %v421 = vpop.trf.xlu0
        %v422 = vpop.trf.xlu0
        %v423 = vpop.trf.xlu0
        %v424 = vpop.trf.xlu0
        %v425 = vpop.trf.xlu0
        %426 = vxpose.xlu0.c.b16.start [1/8] %v235, 128
        %427 = vxpose.xlu0.c.b16.cont [2/8] 0, 128
        %428 = vxpose.xlu0.c.b16.cont [3/8] 0, 128
        %429 = vxpose.xlu0.c.b16.cont [4/8] 0, 128
        %430 = vxpose.xlu0.c.b16.cont [5/8] 0, 128
        %431 = vxpose.xlu0.c.b16.cont [6/8] 0, 128
        %432 = vxpose.xlu0.c.b16.cont [7/8] 0, 128
        %433 = vxpose.xlu0.c.b16.end [8/8] 0, 128
        %v434 = vpop.trf.xlu0
        %v435 = vpop.trf.xlu0
        %v436 = vpop.trf.xlu0
        %v437 = vpop.trf.xlu0
        %v438 = vpop.trf.xlu0
        %v439 = vpop.trf.xlu0
        %v440 = vpop.trf.xlu0
        %v441 = vpop.trf.xlu0
        %442 = vxpose.xlu0.c.b16.start [1/8] %v236, 128
        %443 = vxpose.xlu0.c.b16.cont [2/8] 0, 128
        %444 = vxpose.xlu0.c.b16.cont [3/8] 0, 128
        %445 = vxpose.xlu0.c.b16.cont [4/8] 0, 128
        %446 = vxpose.xlu0.c.b16.cont [5/8] 0, 128
        %447 = vxpose.xlu0.c.b16.cont [6/8] 0, 128
        %448 = vxpose.xlu0.c.b16.cont [7/8] 0, 128
        %449 = vxpose.xlu0.c.b16.end [8/8] 0, 128
        %v450 = vpop.trf.xlu0
        %v451 = vpop.trf.xlu0
        %v452 = vpop.trf.xlu0
        %v453 = vpop.trf.xlu0
        %v454 = vpop.trf.xlu0
        %v455 = vpop.trf.xlu0
        %v456 = vpop.trf.xlu0
        %v457 = vpop.trf.xlu0
        %v460 = vunpack.c.l.b16 %v182
        %v461 = vunpack.c.h.b16 %v182
        %v462 = vunpack.c.l.b16 %v183
        %v463 = vunpack.c.h.b16 %v183
        %v464 = vpack.c.b16 %v462, %v460
        %v465 = vpack.c.b16 %v463, %v461
        %vm468 = vcmask 130048
        %v470 = vsel %vm468, %v258, 0
        %v473 = vsel %vm468, %v259, 0
        %v476 = vsel %vm468, %v260, 0
        %v479 = vsel %vm468, %v261, 0
        %v482 = vsel %vm468, %v262, 0
        %v485 = vsel %vm468, %v263, 0
        %v488 = vsel %vm468, %v264, 0
        %v491 = vsel %vm468, %v265, 0
        %v494 = vsel %vm468, %v274, 0
        %v497 = vsel %vm468, %v275, 0
        %v500 = vsel %vm468, %v276, 0
        %v503 = vsel %vm468, %v277, 0
        %v506 = vsel %vm468, %v278, 0
        %v509 = vsel %vm468, %v279, 0
        %v512 = vsel %vm468, %v280, 0
        %v515 = vsel %vm468, %v281, 0
        %v518 = vsel %vm468, %v290, 0
        %v521 = vsel %vm468, %v291, 0
        %v524 = vsel %vm468, %v292, 0
        %v527 = vsel %vm468, %v293, 0
        %v530 = vsel %vm468, %v294, 0
        %v533 = vsel %vm468, %v295, 0
        %v536 = vsel %vm468, %v296, 0
        %v539 = vsel %vm468, %v297, 0
        %v542 = vsel %vm468, %v306, 0
        %v545 = vsel %vm468, %v307, 0
        %v548 = vsel %vm468, %v308, 0
        %v551 = vsel %vm468, %v309, 0
        %v554 = vsel %vm468, %v310, 0
        %v557 = vsel %vm468, %v311, 0
        %v560 = vsel %vm468, %v312, 0
        %v563 = vsel %vm468, %v313, 0
        %v566 = vsel %vm468, %v322, 0
        %v569 = vsel %vm468, %v323, 0
        %v572 = vsel %vm468, %v324, 0
        %v575 = vsel %vm468, %v325, 0
        %v578 = vsel %vm468, %v326, 0
        %v581 = vsel %vm468, %v327, 0
        %v584 = vsel %vm468, %v328, 0
        %v587 = vsel %vm468, %v329, 0
        %v590 = vsel %vm468, %v338, 0
        %v593 = vsel %vm468, %v339, 0
        %v596 = vsel %vm468, %v340, 0
        %v599 = vsel %vm468, %v341, 0
        %v602 = vsel %vm468, %v342, 0
        %v605 = vsel %vm468, %v343, 0
        %v608 = vsel %vm468, %v344, 0
        %v611 = vsel %vm468, %v345, 0
        %v614 = vsel %vm468, %v354, 0
        %v617 = vsel %vm468, %v355, 0
        %v620 = vsel %vm468, %v356, 0
        %v623 = vsel %vm468, %v357, 0
        %v626 = vsel %vm468, %v358, 0
        %v629 = vsel %vm468, %v359, 0
        %v632 = vsel %vm468, %v360, 0
        %v635 = vsel %vm468, %v361, 0
        %v638 = vsel %vm468, %v370, 0
        %v641 = vsel %vm468, %v371, 0
        %v644 = vsel %vm468, %v372, 0
        %v647 = vsel %vm468, %v373, 0
        %v650 = vsel %vm468, %v374, 0
        %v653 = vsel %vm468, %v375, 0
        %v656 = vsel %vm468, %v376, 0
        %v659 = vsel %vm468, %v377, 0
        %v662 = vsel %vm468, %v386, 0
        %v665 = vsel %vm468, %v387, 0
        %v668 = vsel %vm468, %v388, 0
        %v671 = vsel %vm468, %v389, 0
        %v674 = vsel %vm468, %v390, 0
        %v677 = vsel %vm468, %v391, 0
        %v680 = vsel %vm468, %v392, 0
        %v683 = vsel %vm468, %v393, 0
        %v686 = vsel %vm468, %v402, 0
        %v689 = vsel %vm468, %v403, 0
        %v692 = vsel %vm468, %v404, 0
        %v695 = vsel %vm468, %v405, 0
        %v698 = vsel %vm468, %v406, 0
        %v701 = vsel %vm468, %v407, 0
        %v704 = vsel %vm468, %v408, 0
        %v707 = vsel %vm468, %v409, 0
        %v710 = vsel %vm468, %v418, 0
        %v713 = vsel %vm468, %v419, 0
        %v716 = vsel %vm468, %v420, 0
        %v719 = vsel %vm468, %v421, 0
        %v722 = vsel %vm468, %v422, 0
        %v725 = vsel %vm468, %v423, 0
        %v728 = vsel %vm468, %v424, 0
        %v731 = vsel %vm468, %v425, 0
        %v734 = vsel %vm468, %v434, 0
        %v737 = vsel %vm468, %v435, 0
        %v740 = vsel %vm468, %v436, 0
        %v743 = vsel %vm468, %v437, 0
        %v746 = vsel %vm468, %v438, 0
        %v749 = vsel %vm468, %v439, 0
        %v752 = vsel %vm468, %v440, 0
        %v755 = vsel %vm468, %v441, 0
        %v758 = vsel %vm468, %v450, 0
        %v761 = vsel %vm468, %v451, 0
        %v764 = vsel %vm468, %v452, 0
        %v767 = vsel %vm468, %v453, 0
        %v770 = vsel %vm468, %v454, 0
        %v773 = vsel %vm468, %v455, 0
        %v776 = vsel %vm468, %v456, 0
        %v779 = vsel %vm468, %v457, 0
        %781 = vmatprep.subr.bf16.mxu0 %v465
        %782 = vmatpush1.bf16.msra.mxu0 %v464
        %783 = vmatprep.subr.bf16.mxu0 0
        %784 = vmatpush1.bf16.msra.mxu0 0
        %785 = vmatprep.subr.bf16.mxu0 0
        %786 = vmatpush1.bf16.msra.mxu0 0
        %787 = vmatprep.subr.bf16.mxu0 0
        %788 = vmatpush1.bf16.msra.mxu0 0
        %789 = vmatprep.subr.bf16.mxu0 0
        %790 = vmatpush1.bf16.msra.mxu0 0
        %791 = vmatprep.subr.bf16.mxu0 0
        %792 = vmatpush1.bf16.msra.mxu0 0
        %793 = vmatprep.subr.bf16.mxu0 0
        %794 = vmatpush1.bf16.msra.mxu0 0
        %795 = vmatprep.subr.bf16.mxu0 0
        %796 = vmatpush1.bf16.msra.mxu0 0
        %797 = vmatprep.subr.bf16.mxu0 0
        %798 = vmatpush1.bf16.msra.mxu0 0
        %799 = vmatprep.subr.bf16.mxu0 0
        %800 = vmatpush1.bf16.msra.mxu0 0
        %801 = vmatprep.subr.bf16.mxu0 0
        %802 = vmatpush1.bf16.msra.mxu0 0
        %803 = vmatprep.subr.bf16.mxu0 0
        %804 = vmatpush1.bf16.msra.mxu0 0
        %805 = vmatprep.subr.bf16.mxu0 0
        %806 = vmatpush1.bf16.msra.mxu0 0
        %807 = vmatprep.subr.bf16.mxu0 0
        %808 = vmatpush1.bf16.msra.mxu0 0
        %809 = vmatprep.subr.bf16.mxu0 0
        %810 = vmatpush1.bf16.msra.mxu0 0
        %811 = vmatprep.subr.bf16.mxu0 0
        %812 = vmatpush1.bf16.msra.mxu0 0
        %813 = vmatprep.mubr.bf16.mxu0 0
        %814 = vmatmul.mubr.bf16.gmra.mrb[0].mxu0 %v470
        %v815 = vpop.f32.mrb[0].mxu0
        %v816 = vadd.f32 0.0, %v815
        %v817 = vpop.f32.mrb[0].mxu0
        %v818 = vadd.f32 0.0, %v817
        %v819 = vpop.f32.mrb[0].mxu0
        %v820 = vadd.f32 0.0, %v819
        %v821 = vpop.f32.mrb[0].mxu0
        %v822 = vadd.f32 0.0, %v821
        %823 = vmatprep.mubr.bf16.mxu0 0
        %824 = vmatmul.mubr.bf16.gmra.mrb[0].mxu0 %v473
        %v825 = vpop.f32.mrb[0].mxu0
        %v826 = vadd.f32 0.0, %v825
        %v827 = vpop.f32.mrb[0].mxu0
        %v828 = vadd.f32 0.0, %v827
        %v829 = vpop.f32.mrb[0].mxu0
        %v830 = vadd.f32 0.0, %v829
        %v831 = vpop.f32.mrb[0].mxu0
        %v832 = vadd.f32 0.0, %v831
        %833 = vmatprep.mubr.bf16.mxu0 0
        %834 = vmatmul.mubr.bf16.gmra.mrb[0].mxu0 %v476
        %v835 = vpop.f32.mrb[0].mxu0
        %v836 = vadd.f32 0.0, %v835
        %v837 = vpop.f32.mrb[0].mxu0
        %v838 = vadd.f32 0.0, %v837
        %v839 = vpop.f32.mrb[0].mxu0
        %v840 = vadd.f32 0.0, %v839
        %v841 = vpop.f32.mrb[0].mxu0
        %v842 = vadd.f32 0.0, %v841
        %843 = vmatprep.mubr.bf16.mxu0 0
        %844 = vmatmul.mubr.bf16.gmra.mrb[0].mxu0 %v479
        %v845 = vpop.f32.mrb[0].mxu0
        %v846 = vadd.f32 0.0, %v845
        %v847 = vpop.f32.mrb[0].mxu0
        %v848 = vadd.f32 0.0, %v847
        %v849 = vpop.f32.mrb[0].mxu0
        %v850 = vadd.f32 0.0, %v849
        %v851 = vpop.f32.mrb[0].mxu0
        %v852 = vadd.f32 0.0, %v851
        %853 = vmatprep.mubr.bf16.mxu0 0
        %854 = vmatmul.mubr.bf16.gmra.mrb[0].mxu0 %v482
        %v855 = vpop.f32.mrb[0].mxu0
        %v856 = vadd.f32 0.0, %v855
        %v857 = vpop.f32.mrb[0].mxu0
        %v858 = vadd.f32 0.0, %v857
        %v859 = vpop.f32.mrb[0].mxu0
        %v860 = vadd.f32 0.0, %v859
        %v861 = vpop.f32.mrb[0].mxu0
        %v862 = vadd.f32 0.0, %v861
        %863 = vmatprep.mubr.bf16.mxu0 0
        %864 = vmatmul.mubr.bf16.gmra.mrb[0].mxu0 %v485
        %v865 = vpop.f32.mrb[0].mxu0
        %v866 = vadd.f32 0.0, %v865
        %v867 = vpop.f32.mrb[0].mxu0
        %v868 = vadd.f32 0.0, %v867
        %v869 = vpop.f32.mrb[0].mxu0
        %v870 = vadd.f32 0.0, %v869
        %v871 = vpop.f32.mrb[0].mxu0
        %v872 = vadd.f32 0.0, %v871
        %873 = vmatprep.mubr.bf16.mxu0 0
        %874 = vmatmul.mubr.bf16.gmra.mrb[0].mxu0 %v488
        %v875 = vpop.f32.mrb[0].mxu0
        %v876 = vadd.f32 0.0, %v875
        %v877 = vpop.f32.mrb[0].mxu0
        %v878 = vadd.f32 0.0, %v877
        %v879 = vpop.f32.mrb[0].mxu0
        %v880 = vadd.f32 0.0, %v879
        %v881 = vpop.f32.mrb[0].mxu0
        %v882 = vadd.f32 0.0, %v881
        %883 = vmatprep.mubr.bf16.mxu0 0
        %884 = vmatmul.mubr.bf16.gmra.mrb[0].mxu0 %v491
        %v885 = vpop.f32.mrb[0].mxu0
        %v886 = vadd.f32 0.0, %v885
        %v887 = vpop.f32.mrb[0].mxu0
        %v888 = vadd.f32 0.0, %v887
        %v889 = vpop.f32.mrb[0].mxu0
        %v890 = vadd.f32 0.0, %v889
        %v891 = vpop.f32.mrb[0].mxu0
        %v892 = vadd.f32 0.0, %v891
        %893 = vmatprep.mubr.bf16.mxu0 0
        %894 = vmatmul.mubr.bf16.gmra.mrb[0].mxu0 %v494
        %v895 = vpop.f32.mrb[0].mxu0
        %v896 = vadd.f32 0.0, %v895
        %v897 = vpop.f32.mrb[0].mxu0
        %v898 = vadd.f32 0.0, %v897
        %v899 = vpop.f32.mrb[0].mxu0
        %v900 = vadd.f32 0.0, %v899
        %v901 = vpop.f32.mrb[0].mxu0
        %v902 = vadd.f32 0.0, %v901
        %903 = vmatprep.mubr.bf16.mxu0 0
        %904 = vmatmul.mubr.bf16.gmra.mrb[0].mxu0 %v497
        %v905 = vpop.f32.mrb[0].mxu0
        %v906 = vadd.f32 0.0, %v905
        %v907 = vpop.f32.mrb[0].mxu0
        %v908 = vadd.f32 0.0, %v907
        %v909 = vpop.f32.mrb[0].mxu0
        %v910 = vadd.f32 0.0, %v909
        %v911 = vpop.f32.mrb[0].mxu0
        %v912 = vadd.f32 0.0, %v911
        %913 = vmatprep.mubr.bf16.mxu0 0
        %914 = vmatmul.mubr.bf16.gmra.mrb[0].mxu0 %v500
        %v915 = vpop.f32.mrb[0].mxu0
        %v916 = vadd.f32 0.0, %v915
        %v917 = vpop.f32.mrb[0].mxu0
        %v918 = vadd.f32 0.0, %v917
        %v919 = vpop.f32.mrb[0].mxu0
        %v920 = vadd.f32 0.0, %v919
        %v921 = vpop.f32.mrb[0].mxu0
        %v922 = vadd.f32 0.0, %v921
        %923 = vmatprep.mubr.bf16.mxu0 0
        %924 = vmatmul.mubr.bf16.gmra.mrb[0].mxu0 %v503
        %v925 = vpop.f32.mrb[0].mxu0
        %v926 = vadd.f32 0.0, %v925
        %v927 = vpop.f32.mrb[0].mxu0
        %v928 = vadd.f32 0.0, %v927
        %v929 = vpop.f32.mrb[0].mxu0
        %v930 = vadd.f32 0.0, %v929
        %v931 = vpop.f32.mrb[0].mxu0
        %v932 = vadd.f32 0.0, %v931
        %933 = vmatprep.mubr.bf16.mxu0 0
        %934 = vmatmul.mubr.bf16.gmra.mrb[0].mxu0 %v506
        %v935 = vpop.f32.mrb[0].mxu0
        %v936 = vadd.f32 0.0, %v935
        %v937 = vpop.f32.mrb[0].mxu0
        %v938 = vadd.f32 0.0, %v937
        %v939 = vpop.f32.mrb[0].mxu0
        %v940 = vadd.f32 0.0, %v939
        %v941 = vpop.f32.mrb[0].mxu0
        %v942 = vadd.f32 0.0, %v941
        %943 = vmatprep.mubr.bf16.mxu0 0
        %944 = vmatmul.mubr.bf16.gmra.mrb[0].mxu0 %v509
        %v945 = vpop.f32.mrb[0].mxu0
        %v946 = vadd.f32 0.0, %v945
        %v947 = vpop.f32.mrb[0].mxu0
        %v948 = vadd.f32 0.0, %v947
        %v949 = vpop.f32.mrb[0].mxu0
        %v950 = vadd.f32 0.0, %v949
        %v951 = vpop.f32.mrb[0].mxu0
        %v952 = vadd.f32 0.0, %v951
        %953 = vmatprep.mubr.bf16.mxu0 0
        %954 = vmatmul.mubr.bf16.gmra.mrb[0].mxu0 %v512
        %v955 = vpop.f32.mrb[0].mxu0
        %v956 = vadd.f32 0.0, %v955
        %v957 = vpop.f32.mrb[0].mxu0
        %v958 = vadd.f32 0.0, %v957
        %v959 = vpop.f32.mrb[0].mxu0
        %v960 = vadd.f32 0.0, %v959
        %v961 = vpop.f32.mrb[0].mxu0
        %v962 = vadd.f32 0.0, %v961
        %963 = vmatprep.mubr.bf16.mxu0 0
        %964 = vmatmul.mubr.bf16.gmra.mrb[0].mxu0 %v515
        %v965 = vpop.f32.mrb[0].mxu0
        %v966 = vadd.f32 0.0, %v965
        %v967 = vpop.f32.mrb[0].mxu0
        %v968 = vadd.f32 0.0, %v967
        %v969 = vpop.f32.mrb[0].mxu0
        %v970 = vadd.f32 0.0, %v969
        %v971 = vpop.f32.mrb[0].mxu0
        %v972 = vadd.f32 0.0, %v971
        %973 = vmatprep.mubr.bf16.mxu0 0
        %974 = vmatmul.mubr.bf16.gmra.mrb[0].mxu0 %v518
        %v975 = vpop.f32.mrb[0].mxu0
        %v976 = vadd.f32 0.0, %v975
        %v977 = vpop.f32.mrb[0].mxu0
        %v978 = vadd.f32 0.0, %v977
        %v979 = vpop.f32.mrb[0].mxu0
        %v980 = vadd.f32 0.0, %v979
        %v981 = vpop.f32.mrb[0].mxu0
        %v982 = vadd.f32 0.0, %v981
        %983 = vmatprep.mubr.bf16.mxu0 0
        %984 = vmatmul.mubr.bf16.gmra.mrb[0].mxu0 %v521
        %v985 = vpop.f32.mrb[0].mxu0
        %v986 = vadd.f32 0.0, %v985
        %v987 = vpop.f32.mrb[0].mxu0
        %v988 = vadd.f32 0.0, %v987
        %v989 = vpop.f32.mrb[0].mxu0
        %v990 = vadd.f32 0.0, %v989
        %v991 = vpop.f32.mrb[0].mxu0
        %v992 = vadd.f32 0.0, %v991
        %993 = vmatprep.mubr.bf16.mxu0 0
        %994 = vmatmul.mubr.bf16.gmra.mrb[0].mxu0 %v524
        %v995 = vpop.f32.mrb[0].mxu0
        %v996 = vadd.f32 0.0, %v995
        %v997 = vpop.f32.mrb[0].mxu0
        %v998 = vadd.f32 0.0, %v997
        %v999 = vpop.f32.mrb[0].mxu0
        %v1000 = vadd.f32 0.0, %v999
        %v1001 = vpop.f32.mrb[0].mxu0
        %v1002 = vadd.f32 0.0, %v1001
        %1003 = vmatprep.mubr.bf16.mxu0 0
        %1004 = vmatmul.mubr.bf16.gmra.mrb[0].mxu0 %v527
        %v1005 = vpop.f32.mrb[0].mxu0
        %v1006 = vadd.f32 0.0, %v1005
        %v1007 = vpop.f32.mrb[0].mxu0
        %v1008 = vadd.f32 0.0, %v1007
        %v1009 = vpop.f32.mrb[0].mxu0
        %v1010 = vadd.f32 0.0, %v1009
        %v1011 = vpop.f32.mrb[0].mxu0
        %v1012 = vadd.f32 0.0, %v1011
        %1013 = vmatprep.mubr.bf16.mxu0 0
        %1014 = vmatmul.mubr.bf16.gmra.mrb[0].mxu0 %v530
        %v1015 = vpop.f32.mrb[0].mxu0
        %v1016 = vadd.f32 0.0, %v1015
        %v1017 = vpop.f32.mrb[0].mxu0
        %v1018 = vadd.f32 0.0, %v1017
        %v1019 = vpop.f32.mrb[0].mxu0
        %v1020 = vadd.f32 0.0, %v1019
        %v1021 = vpop.f32.mrb[0].mxu0
        %v1022 = vadd.f32 0.0, %v1021
        %1023 = vmatprep.mubr.bf16.mxu0 0
        %1024 = vmatmul.mubr.bf16.gmra.mrb[0].mxu0 %v533
        %v1025 = vpop.f32.mrb[0].mxu0
        %v1026 = vadd.f32 0.0, %v1025
        %v1027 = vpop.f32.mrb[0].mxu0
        %v1028 = vadd.f32 0.0, %v1027
        %v1029 = vpop.f32.mrb[0].mxu0
        %v1030 = vadd.f32 0.0, %v1029
        %v1031 = vpop.f32.mrb[0].mxu0
        %v1032 = vadd.f32 0.0, %v1031
        %1033 = vmatprep.mubr.bf16.mxu0 0
        %1034 = vmatmul.mubr.bf16.gmra.mrb[0].mxu0 %v536
        %v1035 = vpop.f32.mrb[0].mxu0
        %v1036 = vadd.f32 0.0, %v1035
        %v1037 = vpop.f32.mrb[0].mxu0
        %v1038 = vadd.f32 0.0, %v1037
        %v1039 = vpop.f32.mrb[0].mxu0
        %v1040 = vadd.f32 0.0, %v1039
        %v1041 = vpop.f32.mrb[0].mxu0
        %v1042 = vadd.f32 0.0, %v1041
        %1043 = vmatprep.mubr.bf16.mxu0 0
        %1044 = vmatmul.mubr.bf16.gmra.mrb[0].mxu0 %v539
        %v1045 = vpop.f32.mrb[0].mxu0
        %v1046 = vadd.f32 0.0, %v1045
        %v1047 = vpop.f32.mrb[0].mxu0
        %v1048 = vadd.f32 0.0, %v1047
        %v1049 = vpop.f32.mrb[0].mxu0
        %v1050 = vadd.f32 0.0, %v1049
        %v1051 = vpop.f32.mrb[0].mxu0
        %v1052 = vadd.f32 0.0, %v1051
        %1053 = vmatprep.mubr.bf16.mxu0 0
        %1054 = vmatmul.mubr.bf16.gmra.mrb[0].mxu0 %v542
        %v1055 = vpop.f32.mrb[0].mxu0
        %v1056 = vadd.f32 0.0, %v1055
        %v1057 = vpop.f32.mrb[0].mxu0
        %v1058 = vadd.f32 0.0, %v1057
        %v1059 = vpop.f32.mrb[0].mxu0
        %v1060 = vadd.f32 0.0, %v1059
        %v1061 = vpop.f32.mrb[0].mxu0
        %v1062 = vadd.f32 0.0, %v1061
        %1063 = vmatprep.mubr.bf16.mxu0 0
        %1064 = vmatmul.mubr.bf16.gmra.mrb[0].mxu0 %v545
        %v1065 = vpop.f32.mrb[0].mxu0
        %v1066 = vadd.f32 0.0, %v1065
        %v1067 = vpop.f32.mrb[0].mxu0
        %v1068 = vadd.f32 0.0, %v1067
        %v1069 = vpop.f32.mrb[0].mxu0
        %v1070 = vadd.f32 0.0, %v1069
        %v1071 = vpop.f32.mrb[0].mxu0
        %v1072 = vadd.f32 0.0, %v1071
        %1073 = vmatprep.mubr.bf16.mxu0 0
        %1074 = vmatmul.mubr.bf16.gmra.mrb[0].mxu0 %v548
        %v1075 = vpop.f32.mrb[0].mxu0
        %v1076 = vadd.f32 0.0, %v1075
        %v1077 = vpop.f32.mrb[0].mxu0
        %v1078 = vadd.f32 0.0, %v1077
        %v1079 = vpop.f32.mrb[0].mxu0
        %v1080 = vadd.f32 0.0, %v1079
        %v1081 = vpop.f32.mrb[0].mxu0
        %v1082 = vadd.f32 0.0, %v1081
        %1083 = vmatprep.mubr.bf16.mxu0 0
        %1084 = vmatmul.mubr.bf16.gmra.mrb[0].mxu0 %v551
        %v1085 = vpop.f32.mrb[0].mxu0
        %v1086 = vadd.f32 0.0, %v1085
        %v1087 = vpop.f32.mrb[0].mxu0
        %v1088 = vadd.f32 0.0, %v1087
        %v1089 = vpop.f32.mrb[0].mxu0
        %v1090 = vadd.f32 0.0, %v1089
        %v1091 = vpop.f32.mrb[0].mxu0
        %v1092 = vadd.f32 0.0, %v1091
        %1093 = vmatprep.mubr.bf16.mxu0 0
        %1094 = vmatmul.mubr.bf16.gmra.mrb[0].mxu0 %v554
        %v1095 = vpop.f32.mrb[0].mxu0
        %v1096 = vadd.f32 0.0, %v1095
        %v1097 = vpop.f32.mrb[0].mxu0
        %v1098 = vadd.f32 0.0, %v1097
        %v1099 = vpop.f32.mrb[0].mxu0
        %v1100 = vadd.f32 0.0, %v1099
        %v1101 = vpop.f32.mrb[0].mxu0
        %v1102 = vadd.f32 0.0, %v1101
        %1103 = vmatprep.mubr.bf16.mxu0 0
        %1104 = vmatmul.mubr.bf16.gmra.mrb[0].mxu0 %v557
        %v1105 = vpop.f32.mrb[0].mxu0
        %v1106 = vadd.f32 0.0, %v1105
        %v1107 = vpop.f32.mrb[0].mxu0
        %v1108 = vadd.f32 0.0, %v1107
        %v1109 = vpop.f32.mrb[0].mxu0
        %v1110 = vadd.f32 0.0, %v1109
        %v1111 = vpop.f32.mrb[0].mxu0
        %v1112 = vadd.f32 0.0, %v1111
        %1113 = vmatprep.mubr.bf16.mxu0 0
        %1114 = vmatmul.mubr.bf16.gmra.mrb[0].mxu0 %v560
        %v1115 = vpop.f32.mrb[0].mxu0
        %v1116 = vadd.f32 0.0, %v1115
        %v1117 = vpop.f32.mrb[0].mxu0
        %v1118 = vadd.f32 0.0, %v1117
        %v1119 = vpop.f32.mrb[0].mxu0
        %v1120 = vadd.f32 0.0, %v1119
        %v1121 = vpop.f32.mrb[0].mxu0
        %v1122 = vadd.f32 0.0, %v1121
        %1123 = vmatprep.mubr.bf16.mxu0 0
        %1124 = vmatmul.mubr.bf16.gmra.mrb[0].mxu0 %v563
        %v1125 = vpop.f32.mrb[0].mxu0
        %v1126 = vadd.f32 0.0, %v1125
        %v1127 = vpop.f32.mrb[0].mxu0
        %v1128 = vadd.f32 0.0, %v1127
        %v1129 = vpop.f32.mrb[0].mxu0
        %v1130 = vadd.f32 0.0, %v1129
        %v1131 = vpop.f32.mrb[0].mxu0
        %v1132 = vadd.f32 0.0, %v1131
        %1133 = vmatprep.mubr.bf16.mxu0 0
        %1134 = vmatmul.mubr.bf16.gmra.mrb[0].mxu0 %v566
        %v1135 = vpop.f32.mrb[0].mxu0
        %v1136 = vadd.f32 0.0, %v1135
        %v1137 = vpop.f32.mrb[0].mxu0
        %v1138 = vadd.f32 0.0, %v1137
        %v1139 = vpop.f32.mrb[0].mxu0
        %v1140 = vadd.f32 0.0, %v1139
        %v1141 = vpop.f32.mrb[0].mxu0
        %v1142 = vadd.f32 0.0, %v1141
        %1143 = vmatprep.mubr.bf16.mxu0 0
        %1144 = vmatmul.mubr.bf16.gmra.mrb[0].mxu0 %v569
        %v1145 = vpop.f32.mrb[0].mxu0
        %v1146 = vadd.f32 0.0, %v1145
        %v1147 = vpop.f32.mrb[0].mxu0
        %v1148 = vadd.f32 0.0, %v1147
        %v1149 = vpop.f32.mrb[0].mxu0
        %v1150 = vadd.f32 0.0, %v1149
        %v1151 = vpop.f32.mrb[0].mxu0
        %v1152 = vadd.f32 0.0, %v1151
        %1153 = vmatprep.mubr.bf16.mxu0 0
        %1154 = vmatmul.mubr.bf16.gmra.mrb[0].mxu0 %v572
        %v1155 = vpop.f32.mrb[0].mxu0
        %v1156 = vadd.f32 0.0, %v1155
        %v1157 = vpop.f32.mrb[0].mxu0
        %v1158 = vadd.f32 0.0, %v1157
        %v1159 = vpop.f32.mrb[0].mxu0
        %v1160 = vadd.f32 0.0, %v1159
        %v1161 = vpop.f32.mrb[0].mxu0
        %v1162 = vadd.f32 0.0, %v1161
        %1163 = vmatprep.mubr.bf16.mxu0 0
        %1164 = vmatmul.mubr.bf16.gmra.mrb[0].mxu0 %v575
        %v1165 = vpop.f32.mrb[0].mxu0
        %v1166 = vadd.f32 0.0, %v1165
        %v1167 = vpop.f32.mrb[0].mxu0
        %v1168 = vadd.f32 0.0, %v1167
        %v1169 = vpop.f32.mrb[0].mxu0
        %v1170 = vadd.f32 0.0, %v1169
        %v1171 = vpop.f32.mrb[0].mxu0
        %v1172 = vadd.f32 0.0, %v1171
        %1173 = vmatprep.mubr.bf16.mxu0 0
        %1174 = vmatmul.mubr.bf16.gmra.mrb[0].mxu0 %v578
        %v1175 = vpop.f32.mrb[0].mxu0
        %v1176 = vadd.f32 0.0, %v1175
        %v1177 = vpop.f32.mrb[0].mxu0
        %v1178 = vadd.f32 0.0, %v1177
        %v1179 = vpop.f32.mrb[0].mxu0
        %v1180 = vadd.f32 0.0, %v1179
        %v1181 = vpop.f32.mrb[0].mxu0
        %v1182 = vadd.f32 0.0, %v1181
        %1183 = vmatprep.mubr.bf16.mxu0 0
        %1184 = vmatmul.mubr.bf16.gmra.mrb[0].mxu0 %v581
        %v1185 = vpop.f32.mrb[0].mxu0
        %v1186 = vadd.f32 0.0, %v1185
        %v1187 = vpop.f32.mrb[0].mxu0
        %v1188 = vadd.f32 0.0, %v1187
        %v1189 = vpop.f32.mrb[0].mxu0
        %v1190 = vadd.f32 0.0, %v1189
        %v1191 = vpop.f32.mrb[0].mxu0
        %v1192 = vadd.f32 0.0, %v1191
        %1193 = vmatprep.mubr.bf16.mxu0 0
        %1194 = vmatmul.mubr.bf16.gmra.mrb[0].mxu0 %v584
        %v1195 = vpop.f32.mrb[0].mxu0
        %v1196 = vadd.f32 0.0, %v1195
        %v1197 = vpop.f32.mrb[0].mxu0
        %v1198 = vadd.f32 0.0, %v1197
        %v1199 = vpop.f32.mrb[0].mxu0
        %v1200 = vadd.f32 0.0, %v1199
        %v1201 = vpop.f32.mrb[0].mxu0
        %v1202 = vadd.f32 0.0, %v1201
        %1203 = vmatprep.mubr.bf16.mxu0 0
        %1204 = vmatmul.mubr.bf16.gmra.mrb[0].mxu0 %v587
        %v1205 = vpop.f32.mrb[0].mxu0
        %v1206 = vadd.f32 0.0, %v1205
        %v1207 = vpop.f32.mrb[0].mxu0
        %v1208 = vadd.f32 0.0, %v1207
        %v1209 = vpop.f32.mrb[0].mxu0
        %v1210 = vadd.f32 0.0, %v1209
        %v1211 = vpop.f32.mrb[0].mxu0
        %v1212 = vadd.f32 0.0, %v1211
        %1213 = vmatprep.mubr.bf16.mxu0 0
        %1214 = vmatmul.mubr.bf16.gmra.mrb[0].mxu0 %v590
        %v1215 = vpop.f32.mrb[0].mxu0
        %v1216 = vadd.f32 0.0, %v1215
        %v1217 = vpop.f32.mrb[0].mxu0
        %v1218 = vadd.f32 0.0, %v1217
        %v1219 = vpop.f32.mrb[0].mxu0
        %v1220 = vadd.f32 0.0, %v1219
        %v1221 = vpop.f32.mrb[0].mxu0
        %v1222 = vadd.f32 0.0, %v1221
        %1223 = vmatprep.mubr.bf16.mxu0 0
        %1224 = vmatmul.mubr.bf16.gmra.mrb[0].mxu0 %v593
        %v1225 = vpop.f32.mrb[0].mxu0
        %v1226 = vadd.f32 0.0, %v1225
        %v1227 = vpop.f32.mrb[0].mxu0
        %v1228 = vadd.f32 0.0, %v1227
        %v1229 = vpop.f32.mrb[0].mxu0
        %v1230 = vadd.f32 0.0, %v1229
        %v1231 = vpop.f32.mrb[0].mxu0
        %v1232 = vadd.f32 0.0, %v1231
        %1233 = vmatprep.mubr.bf16.mxu0 0
        %1234 = vmatmul.mubr.bf16.gmra.mrb[0].mxu0 %v596
        %v1235 = vpop.f32.mrb[0].mxu0
        %v1236 = vadd.f32 0.0, %v1235
        %v1237 = vpop.f32.mrb[0].mxu0
        %v1238 = vadd.f32 0.0, %v1237
        %v1239 = vpop.f32.mrb[0].mxu0
        %v1240 = vadd.f32 0.0, %v1239
        %v1241 = vpop.f32.mrb[0].mxu0
        %v1242 = vadd.f32 0.0, %v1241
        %1243 = vmatprep.mubr.bf16.mxu0 0
        %1244 = vmatmul.mubr.bf16.gmra.mrb[0].mxu0 %v599
        %v1245 = vpop.f32.mrb[0].mxu0
        %v1246 = vadd.f32 0.0, %v1245
        %v1247 = vpop.f32.mrb[0].mxu0
        %v1248 = vadd.f32 0.0, %v1247
        %v1249 = vpop.f32.mrb[0].mxu0
        %v1250 = vadd.f32 0.0, %v1249
        %v1251 = vpop.f32.mrb[0].mxu0
        %v1252 = vadd.f32 0.0, %v1251
        %1253 = vmatprep.mubr.bf16.mxu0 0
        %1254 = vmatmul.mubr.bf16.gmra.mrb[0].mxu0 %v602
        %v1255 = vpop.f32.mrb[0].mxu0
        %v1256 = vadd.f32 0.0, %v1255
        %v1257 = vpop.f32.mrb[0].mxu0
        %v1258 = vadd.f32 0.0, %v1257
        %v1259 = vpop.f32.mrb[0].mxu0
        %v1260 = vadd.f32 0.0, %v1259
        %v1261 = vpop.f32.mrb[0].mxu0
        %v1262 = vadd.f32 0.0, %v1261
        %1263 = vmatprep.mubr.bf16.mxu0 0
        %1264 = vmatmul.mubr.bf16.gmra.mrb[0].mxu0 %v605
        %v1265 = vpop.f32.mrb[0].mxu0
        %v1266 = vadd.f32 0.0, %v1265
        %v1267 = vpop.f32.mrb[0].mxu0
        %v1268 = vadd.f32 0.0, %v1267
        %v1269 = vpop.f32.mrb[0].mxu0
        %v1270 = vadd.f32 0.0, %v1269
        %v1271 = vpop.f32.mrb[0].mxu0
        %v1272 = vadd.f32 0.0, %v1271
        %1273 = vmatprep.mubr.bf16.mxu0 0
        %1274 = vmatmul.mubr.bf16.gmra.mrb[0].mxu0 %v608
        %v1275 = vpop.f32.mrb[0].mxu0
        %v1276 = vadd.f32 0.0, %v1275
        %v1277 = vpop.f32.mrb[0].mxu0
        %v1278 = vadd.f32 0.0, %v1277
        %v1279 = vpop.f32.mrb[0].mxu0
        %v1280 = vadd.f32 0.0, %v1279
        %v1281 = vpop.f32.mrb[0].mxu0
        %v1282 = vadd.f32 0.0, %v1281
        %1283 = vmatprep.mubr.bf16.mxu0 0
        %1284 = vmatmul.mubr.bf16.gmra.mrb[0].mxu0 %v611
        %v1285 = vpop.f32.mrb[0].mxu0
        %v1286 = vadd.f32 0.0, %v1285
        %v1287 = vpop.f32.mrb[0].mxu0
        %v1288 = vadd.f32 0.0, %v1287
        %v1289 = vpop.f32.mrb[0].mxu0
        %v1290 = vadd.f32 0.0, %v1289
        %v1291 = vpop.f32.mrb[0].mxu0
        %v1292 = vadd.f32 0.0, %v1291
        %1293 = vmatprep.mubr.bf16.mxu0 0
        %1294 = vmatmul.mubr.bf16.gmra.mrb[0].mxu0 %v614
        %v1295 = vpop.f32.mrb[0].mxu0
        %v1296 = vadd.f32 0.0, %v1295
        %v1297 = vpop.f32.mrb[0].mxu0
        %v1298 = vadd.f32 0.0, %v1297
        %v1299 = vpop.f32.mrb[0].mxu0
        %v1300 = vadd.f32 0.0, %v1299
        %v1301 = vpop.f32.mrb[0].mxu0
        %v1302 = vadd.f32 0.0, %v1301
        %1303 = vmatprep.mubr.bf16.mxu0 0
        %1304 = vmatmul.mubr.bf16.gmra.mrb[0].mxu0 %v617
        %v1305 = vpop.f32.mrb[0].mxu0
        %v1306 = vadd.f32 0.0, %v1305
        %v1307 = vpop.f32.mrb[0].mxu0
        %v1308 = vadd.f32 0.0, %v1307
        %v1309 = vpop.f32.mrb[0].mxu0
        %v1310 = vadd.f32 0.0, %v1309
        %v1311 = vpop.f32.mrb[0].mxu0
        %v1312 = vadd.f32 0.0, %v1311
        %1313 = vmatprep.mubr.bf16.mxu0 0
        %1314 = vmatmul.mubr.bf16.gmra.mrb[0].mxu0 %v620
        %v1315 = vpop.f32.mrb[0].mxu0
        %v1316 = vadd.f32 0.0, %v1315
        %v1317 = vpop.f32.mrb[0].mxu0
        %v1318 = vadd.f32 0.0, %v1317
        %v1319 = vpop.f32.mrb[0].mxu0
        %v1320 = vadd.f32 0.0, %v1319
        %v1321 = vpop.f32.mrb[0].mxu0
        %v1322 = vadd.f32 0.0, %v1321
        %1323 = vmatprep.mubr.bf16.mxu0 0
        %1324 = vmatmul.mubr.bf16.gmra.mrb[0].mxu0 %v623
        %v1325 = vpop.f32.mrb[0].mxu0
        %v1326 = vadd.f32 0.0, %v1325
        %v1327 = vpop.f32.mrb[0].mxu0
        %v1328 = vadd.f32 0.0, %v1327
        %v1329 = vpop.f32.mrb[0].mxu0
        %v1330 = vadd.f32 0.0, %v1329
        %v1331 = vpop.f32.mrb[0].mxu0
        %v1332 = vadd.f32 0.0, %v1331
        %1333 = vmatprep.mubr.bf16.mxu0 0
        %1334 = vmatmul.mubr.bf16.gmra.mrb[0].mxu0 %v626
        %v1335 = vpop.f32.mrb[0].mxu0
        %v1336 = vadd.f32 0.0, %v1335
        %v1337 = vpop.f32.mrb[0].mxu0
        %v1338 = vadd.f32 0.0, %v1337
        %v1339 = vpop.f32.mrb[0].mxu0
        %v1340 = vadd.f32 0.0, %v1339
        %v1341 = vpop.f32.mrb[0].mxu0
        %v1342 = vadd.f32 0.0, %v1341
        %1343 = vmatprep.mubr.bf16.mxu0 0
        %1344 = vmatmul.mubr.bf16.gmra.mrb[0].mxu0 %v629
        %v1345 = vpop.f32.mrb[0].mxu0
        %v1346 = vadd.f32 0.0, %v1345
        %v1347 = vpop.f32.mrb[0].mxu0
        %v1348 = vadd.f32 0.0, %v1347
        %v1349 = vpop.f32.mrb[0].mxu0
        %v1350 = vadd.f32 0.0, %v1349
        %v1351 = vpop.f32.mrb[0].mxu0
        %v1352 = vadd.f32 0.0, %v1351
        %1353 = vmatprep.mubr.bf16.mxu0 0
        %1354 = vmatmul.mubr.bf16.gmra.mrb[0].mxu0 %v632
        %v1355 = vpop.f32.mrb[0].mxu0
        %v1356 = vadd.f32 0.0, %v1355
        %v1357 = vpop.f32.mrb[0].mxu0
        %v1358 = vadd.f32 0.0, %v1357
        %v1359 = vpop.f32.mrb[0].mxu0
        %v1360 = vadd.f32 0.0, %v1359
        %v1361 = vpop.f32.mrb[0].mxu0
        %v1362 = vadd.f32 0.0, %v1361
        %1363 = vmatprep.mubr.bf16.mxu0 0
        %1364 = vmatmul.mubr.bf16.gmra.mrb[0].mxu0 %v635
        %v1365 = vpop.f32.mrb[0].mxu0
        %v1366 = vadd.f32 0.0, %v1365
        %v1367 = vpop.f32.mrb[0].mxu0
        %v1368 = vadd.f32 0.0, %v1367
        %v1369 = vpop.f32.mrb[0].mxu0
        %v1370 = vadd.f32 0.0, %v1369
        %v1371 = vpop.f32.mrb[0].mxu0
        %v1372 = vadd.f32 0.0, %v1371
        %1373 = vmatprep.mubr.bf16.mxu0 0
        %1374 = vmatmul.mubr.bf16.gmra.mrb[0].mxu0 %v638
        %v1375 = vpop.f32.mrb[0].mxu0
        %v1376 = vadd.f32 0.0, %v1375
        %v1377 = vpop.f32.mrb[0].mxu0
        %v1378 = vadd.f32 0.0, %v1377
        %v1379 = vpop.f32.mrb[0].mxu0
        %v1380 = vadd.f32 0.0, %v1379
        %v1381 = vpop.f32.mrb[0].mxu0
        %v1382 = vadd.f32 0.0, %v1381
        %1383 = vmatprep.mubr.bf16.mxu0 0
        %1384 = vmatmul.mubr.bf16.gmra.mrb[0].mxu0 %v641
        %v1385 = vpop.f32.mrb[0].mxu0
        %v1386 = vadd.f32 0.0, %v1385
        %v1387 = vpop.f32.mrb[0].mxu0
        %v1388 = vadd.f32 0.0, %v1387
        %v1389 = vpop.f32.mrb[0].mxu0
        %v1390 = vadd.f32 0.0, %v1389
        %v1391 = vpop.f32.mrb[0].mxu0
        %v1392 = vadd.f32 0.0, %v1391
        %1393 = vmatprep.mubr.bf16.mxu0 0
        %1394 = vmatmul.mubr.bf16.gmra.mrb[0].mxu0 %v644
        %v1395 = vpop.f32.mrb[0].mxu0
        %v1396 = vadd.f32 0.0, %v1395
        %v1397 = vpop.f32.mrb[0].mxu0
        %v1398 = vadd.f32 0.0, %v1397
        %v1399 = vpop.f32.mrb[0].mxu0
        %v1400 = vadd.f32 0.0, %v1399
        %v1401 = vpop.f32.mrb[0].mxu0
        %v1402 = vadd.f32 0.0, %v1401
        %1403 = vmatprep.mubr.bf16.mxu0 0
        %1404 = vmatmul.mubr.bf16.gmra.mrb[0].mxu0 %v647
        %v1405 = vpop.f32.mrb[0].mxu0
        %v1406 = vadd.f32 0.0, %v1405
        %v1407 = vpop.f32.mrb[0].mxu0
        %v1408 = vadd.f32 0.0, %v1407
        %v1409 = vpop.f32.mrb[0].mxu0
        %v1410 = vadd.f32 0.0, %v1409
        %v1411 = vpop.f32.mrb[0].mxu0
        %v1412 = vadd.f32 0.0, %v1411
        %1413 = vmatprep.mubr.bf16.mxu0 0
        %1414 = vmatmul.mubr.bf16.gmra.mrb[0].mxu0 %v650
        %v1415 = vpop.f32.mrb[0].mxu0
        %v1416 = vadd.f32 0.0, %v1415
        %v1417 = vpop.f32.mrb[0].mxu0
        %v1418 = vadd.f32 0.0, %v1417
        %v1419 = vpop.f32.mrb[0].mxu0
        %v1420 = vadd.f32 0.0, %v1419
        %v1421 = vpop.f32.mrb[0].mxu0
        %v1422 = vadd.f32 0.0, %v1421
        %1423 = vmatprep.mubr.bf16.mxu0 0
        %1424 = vmatmul.mubr.bf16.gmra.mrb[0].mxu0 %v653
        %v1425 = vpop.f32.mrb[0].mxu0
        %v1426 = vadd.f32 0.0, %v1425
        %v1427 = vpop.f32.mrb[0].mxu0
        %v1428 = vadd.f32 0.0, %v1427
        %v1429 = vpop.f32.mrb[0].mxu0
        %v1430 = vadd.f32 0.0, %v1429
        %v1431 = vpop.f32.mrb[0].mxu0
        %v1432 = vadd.f32 0.0, %v1431
        %1433 = vmatprep.mubr.bf16.mxu0 0
        %1434 = vmatmul.mubr.bf16.gmra.mrb[0].mxu0 %v656
        %v1435 = vpop.f32.mrb[0].mxu0
        %v1436 = vadd.f32 0.0, %v1435
        %v1437 = vpop.f32.mrb[0].mxu0
        %v1438 = vadd.f32 0.0, %v1437
        %v1439 = vpop.f32.mrb[0].mxu0
        %v1440 = vadd.f32 0.0, %v1439
        %v1441 = vpop.f32.mrb[0].mxu0
        %v1442 = vadd.f32 0.0, %v1441
        %1443 = vmatprep.mubr.bf16.mxu0 0
        %1444 = vmatmul.mubr.bf16.gmra.mrb[0].mxu0 %v659
        %v1445 = vpop.f32.mrb[0].mxu0
        %v1446 = vadd.f32 0.0, %v1445
        %v1447 = vpop.f32.mrb[0].mxu0
        %v1448 = vadd.f32 0.0, %v1447
        %v1449 = vpop.f32.mrb[0].mxu0
        %v1450 = vadd.f32 0.0, %v1449
        %v1451 = vpop.f32.mrb[0].mxu0
        %v1452 = vadd.f32 0.0, %v1451
        %1453 = vmatprep.mubr.bf16.mxu0 0
        %1454 = vmatmul.mubr.bf16.gmra.mrb[0].mxu0 %v662
        %v1455 = vpop.f32.mrb[0].mxu0
        %v1456 = vadd.f32 0.0, %v1455
        %v1457 = vpop.f32.mrb[0].mxu0
        %v1458 = vadd.f32 0.0, %v1457
        %v1459 = vpop.f32.mrb[0].mxu0
        %v1460 = vadd.f32 0.0, %v1459
        %v1461 = vpop.f32.mrb[0].mxu0
        %v1462 = vadd.f32 0.0, %v1461
        %1463 = vmatprep.mubr.bf16.mxu0 0
        %1464 = vmatmul.mubr.bf16.gmra.mrb[0].mxu0 %v665
        %v1465 = vpop.f32.mrb[0].mxu0
        %v1466 = vadd.f32 0.0, %v1465
        %v1467 = vpop.f32.mrb[0].mxu0
        %v1468 = vadd.f32 0.0, %v1467
        %v1469 = vpop.f32.mrb[0].mxu0
        %v1470 = vadd.f32 0.0, %v1469
        %v1471 = vpop.f32.mrb[0].mxu0
        %v1472 = vadd.f32 0.0, %v1471
        %1473 = vmatprep.mubr.bf16.mxu0 0
        %1474 = vmatmul.mubr.bf16.gmra.mrb[0].mxu0 %v668
        %v1475 = vpop.f32.mrb[0].mxu0
        %v1476 = vadd.f32 0.0, %v1475
        %v1477 = vpop.f32.mrb[0].mxu0
        %v1478 = vadd.f32 0.0, %v1477
        %v1479 = vpop.f32.mrb[0].mxu0
        %v1480 = vadd.f32 0.0, %v1479
        %v1481 = vpop.f32.mrb[0].mxu0
        %v1482 = vadd.f32 0.0, %v1481
        %1483 = vmatprep.mubr.bf16.mxu0 0
        %1484 = vmatmul.mubr.bf16.gmra.mrb[0].mxu0 %v671
        %v1485 = vpop.f32.mrb[0].mxu0
        %v1486 = vadd.f32 0.0, %v1485
        %v1487 = vpop.f32.mrb[0].mxu0
        %v1488 = vadd.f32 0.0, %v1487
        %v1489 = vpop.f32.mrb[0].mxu0
        %v1490 = vadd.f32 0.0, %v1489
        %v1491 = vpop.f32.mrb[0].mxu0
        %v1492 = vadd.f32 0.0, %v1491
        %1493 = vmatprep.mubr.bf16.mxu0 0
        %1494 = vmatmul.mubr.bf16.gmra.mrb[0].mxu0 %v674
        %v1495 = vpop.f32.mrb[0].mxu0
        %v1496 = vadd.f32 0.0, %v1495
        %v1497 = vpop.f32.mrb[0].mxu0
        %v1498 = vadd.f32 0.0, %v1497
        %v1499 = vpop.f32.mrb[0].mxu0
        %v1500 = vadd.f32 0.0, %v1499
        %v1501 = vpop.f32.mrb[0].mxu0
        %v1502 = vadd.f32 0.0, %v1501
        %1503 = vmatprep.mubr.bf16.mxu0 0
        %1504 = vmatmul.mubr.bf16.gmra.mrb[0].mxu0 %v677
        %v1505 = vpop.f32.mrb[0].mxu0
        %v1506 = vadd.f32 0.0, %v1505
        %v1507 = vpop.f32.mrb[0].mxu0
        %v1508 = vadd.f32 0.0, %v1507
        %v1509 = vpop.f32.mrb[0].mxu0
        %v1510 = vadd.f32 0.0, %v1509
        %v1511 = vpop.f32.mrb[0].mxu0
        %v1512 = vadd.f32 0.0, %v1511
        %1513 = vmatprep.mubr.bf16.mxu0 0
        %1514 = vmatmul.mubr.bf16.gmra.mrb[0].mxu0 %v680
        %v1515 = vpop.f32.mrb[0].mxu0
        %v1516 = vadd.f32 0.0, %v1515
        %v1517 = vpop.f32.mrb[0].mxu0
        %v1518 = vadd.f32 0.0, %v1517
        %v1519 = vpop.f32.mrb[0].mxu0
        %v1520 = vadd.f32 0.0, %v1519
        %v1521 = vpop.f32.mrb[0].mxu0
        %v1522 = vadd.f32 0.0, %v1521
        %1523 = vmatprep.mubr.bf16.mxu0 0
        %1524 = vmatmul.mubr.bf16.gmra.mrb[0].mxu0 %v683
        %v1525 = vpop.f32.mrb[0].mxu0
        %v1526 = vadd.f32 0.0, %v1525
        %v1527 = vpop.f32.mrb[0].mxu0
        %v1528 = vadd.f32 0.0, %v1527
        %v1529 = vpop.f32.mrb[0].mxu0
        %v1530 = vadd.f32 0.0, %v1529
        %v1531 = vpop.f32.mrb[0].mxu0
        %v1532 = vadd.f32 0.0, %v1531
        %1533 = vmatprep.mubr.bf16.mxu0 0
        %1534 = vmatmul.mubr.bf16.gmra.mrb[0].mxu0 %v686
        %v1535 = vpop.f32.mrb[0].mxu0
        %v1536 = vadd.f32 0.0, %v1535
        %v1537 = vpop.f32.mrb[0].mxu0
        %v1538 = vadd.f32 0.0, %v1537
        %v1539 = vpop.f32.mrb[0].mxu0
        %v1540 = vadd.f32 0.0, %v1539
        %v1541 = vpop.f32.mrb[0].mxu0
        %v1542 = vadd.f32 0.0, %v1541
        %1543 = vmatprep.mubr.bf16.mxu0 0
        %1544 = vmatmul.mubr.bf16.gmra.mrb[0].mxu0 %v689
        %v1545 = vpop.f32.mrb[0].mxu0
        %v1546 = vadd.f32 0.0, %v1545
        %v1547 = vpop.f32.mrb[0].mxu0
        %v1548 = vadd.f32 0.0, %v1547
        %v1549 = vpop.f32.mrb[0].mxu0
        %v1550 = vadd.f32 0.0, %v1549
        %v1551 = vpop.f32.mrb[0].mxu0
        %v1552 = vadd.f32 0.0, %v1551
        %1553 = vmatprep.mubr.bf16.mxu0 0
        %1554 = vmatmul.mubr.bf16.gmra.mrb[0].mxu0 %v692
        %v1555 = vpop.f32.mrb[0].mxu0
        %v1556 = vadd.f32 0.0, %v1555
        %v1557 = vpop.f32.mrb[0].mxu0
        %v1558 = vadd.f32 0.0, %v1557
        %v1559 = vpop.f32.mrb[0].mxu0
        %v1560 = vadd.f32 0.0, %v1559
        %v1561 = vpop.f32.mrb[0].mxu0
        %v1562 = vadd.f32 0.0, %v1561
        %1563 = vmatprep.mubr.bf16.mxu0 0
        %1564 = vmatmul.mubr.bf16.gmra.mrb[0].mxu0 %v695
        %v1565 = vpop.f32.mrb[0].mxu0
        %v1566 = vadd.f32 0.0, %v1565
        %v1567 = vpop.f32.mrb[0].mxu0
        %v1568 = vadd.f32 0.0, %v1567
        %v1569 = vpop.f32.mrb[0].mxu0
        %v1570 = vadd.f32 0.0, %v1569
        %v1571 = vpop.f32.mrb[0].mxu0
        %v1572 = vadd.f32 0.0, %v1571
        %1573 = vmatprep.mubr.bf16.mxu0 0
        %1574 = vmatmul.mubr.bf16.gmra.mrb[0].mxu0 %v698
        %v1575 = vpop.f32.mrb[0].mxu0
        %v1576 = vadd.f32 0.0, %v1575
        %v1577 = vpop.f32.mrb[0].mxu0
        %v1578 = vadd.f32 0.0, %v1577
        %v1579 = vpop.f32.mrb[0].mxu0
        %v1580 = vadd.f32 0.0, %v1579
        %v1581 = vpop.f32.mrb[0].mxu0
        %v1582 = vadd.f32 0.0, %v1581
        %1583 = vmatprep.mubr.bf16.mxu0 0
        %1584 = vmatmul.mubr.bf16.gmra.mrb[0].mxu0 %v701
        %v1585 = vpop.f32.mrb[0].mxu0
        %v1586 = vadd.f32 0.0, %v1585
        %v1587 = vpop.f32.mrb[0].mxu0
        %v1588 = vadd.f32 0.0, %v1587
        %v1589 = vpop.f32.mrb[0].mxu0
        %v1590 = vadd.f32 0.0, %v1589
        %v1591 = vpop.f32.mrb[0].mxu0
        %v1592 = vadd.f32 0.0, %v1591
        %1593 = vmatprep.mubr.bf16.mxu0 0
        %1594 = vmatmul.mubr.bf16.gmra.mrb[0].mxu0 %v704
        %v1595 = vpop.f32.mrb[0].mxu0
        %v1596 = vadd.f32 0.0, %v1595
        %v1597 = vpop.f32.mrb[0].mxu0
        %v1598 = vadd.f32 0.0, %v1597
        %v1599 = vpop.f32.mrb[0].mxu0
        %v1600 = vadd.f32 0.0, %v1599
        %v1601 = vpop.f32.mrb[0].mxu0
        %v1602 = vadd.f32 0.0, %v1601
        %1603 = vmatprep.mubr.bf16.mxu0 0
        %1604 = vmatmul.mubr.bf16.gmra.mrb[0].mxu0 %v707
        %v1605 = vpop.f32.mrb[0].mxu0
        %v1606 = vadd.f32 0.0, %v1605
        %v1607 = vpop.f32.mrb[0].mxu0
        %v1608 = vadd.f32 0.0, %v1607
        %v1609 = vpop.f32.mrb[0].mxu0
        %v1610 = vadd.f32 0.0, %v1609
        %v1611 = vpop.f32.mrb[0].mxu0
        %v1612 = vadd.f32 0.0, %v1611
        %1613 = vmatprep.mubr.bf16.mxu0 0
        %1614 = vmatmul.mubr.bf16.gmra.mrb[0].mxu0 %v710
        %v1615 = vpop.f32.mrb[0].mxu0
        %v1616 = vadd.f32 0.0, %v1615
        %v1617 = vpop.f32.mrb[0].mxu0
        %v1618 = vadd.f32 0.0, %v1617
        %v1619 = vpop.f32.mrb[0].mxu0
        %v1620 = vadd.f32 0.0, %v1619
        %v1621 = vpop.f32.mrb[0].mxu0
        %v1622 = vadd.f32 0.0, %v1621
        %1623 = vmatprep.mubr.bf16.mxu0 0
        %1624 = vmatmul.mubr.bf16.gmra.mrb[0].mxu0 %v713
        %v1625 = vpop.f32.mrb[0].mxu0
        %v1626 = vadd.f32 0.0, %v1625
        %v1627 = vpop.f32.mrb[0].mxu0
        %v1628 = vadd.f32 0.0, %v1627
        %v1629 = vpop.f32.mrb[0].mxu0
        %v1630 = vadd.f32 0.0, %v1629
        %v1631 = vpop.f32.mrb[0].mxu0
        %v1632 = vadd.f32 0.0, %v1631
        %1633 = vmatprep.mubr.bf16.mxu0 0
        %1634 = vmatmul.mubr.bf16.gmra.mrb[0].mxu0 %v716
        %v1635 = vpop.f32.mrb[0].mxu0
        %v1636 = vadd.f32 0.0, %v1635
        %v1637 = vpop.f32.mrb[0].mxu0
        %v1638 = vadd.f32 0.0, %v1637
        %v1639 = vpop.f32.mrb[0].mxu0
        %v1640 = vadd.f32 0.0, %v1639
        %v1641 = vpop.f32.mrb[0].mxu0
        %v1642 = vadd.f32 0.0, %v1641
        %1643 = vmatprep.mubr.bf16.mxu0 0
        %1644 = vmatmul.mubr.bf16.gmra.mrb[0].mxu0 %v719
        %v1645 = vpop.f32.mrb[0].mxu0
        %v1646 = vadd.f32 0.0, %v1645
        %v1647 = vpop.f32.mrb[0].mxu0
        %v1648 = vadd.f32 0.0, %v1647
        %v1649 = vpop.f32.mrb[0].mxu0
        %v1650 = vadd.f32 0.0, %v1649
        %v1651 = vpop.f32.mrb[0].mxu0
        %v1652 = vadd.f32 0.0, %v1651
        %1653 = vmatprep.mubr.bf16.mxu0 0
        %1654 = vmatmul.mubr.bf16.gmra.mrb[0].mxu0 %v722
        %v1655 = vpop.f32.mrb[0].mxu0
        %v1656 = vadd.f32 0.0, %v1655
        %v1657 = vpop.f32.mrb[0].mxu0
        %v1658 = vadd.f32 0.0, %v1657
        %v1659 = vpop.f32.mrb[0].mxu0
        %v1660 = vadd.f32 0.0, %v1659
        %v1661 = vpop.f32.mrb[0].mxu0
        %v1662 = vadd.f32 0.0, %v1661
        %1663 = vmatprep.mubr.bf16.mxu0 0
        %1664 = vmatmul.mubr.bf16.gmra.mrb[0].mxu0 %v725
        %v1665 = vpop.f32.mrb[0].mxu0
        %v1666 = vadd.f32 0.0, %v1665
        %v1667 = vpop.f32.mrb[0].mxu0
        %v1668 = vadd.f32 0.0, %v1667
        %v1669 = vpop.f32.mrb[0].mxu0
        %v1670 = vadd.f32 0.0, %v1669
        %v1671 = vpop.f32.mrb[0].mxu0
        %v1672 = vadd.f32 0.0, %v1671
        %1673 = vmatprep.mubr.bf16.mxu0 0
        %1674 = vmatmul.mubr.bf16.gmra.mrb[0].mxu0 %v728
        %v1675 = vpop.f32.mrb[0].mxu0
        %v1676 = vadd.f32 0.0, %v1675
        %v1677 = vpop.f32.mrb[0].mxu0
        %v1678 = vadd.f32 0.0, %v1677
        %v1679 = vpop.f32.mrb[0].mxu0
        %v1680 = vadd.f32 0.0, %v1679
        %v1681 = vpop.f32.mrb[0].mxu0
        %v1682 = vadd.f32 0.0, %v1681
        %1683 = vmatprep.mubr.bf16.mxu0 0
        %1684 = vmatmul.mubr.bf16.gmra.mrb[0].mxu0 %v731
        %v1685 = vpop.f32.mrb[0].mxu0
        %v1686 = vadd.f32 0.0, %v1685
        %v1687 = vpop.f32.mrb[0].mxu0
        %v1688 = vadd.f32 0.0, %v1687
        %v1689 = vpop.f32.mrb[0].mxu0
        %v1690 = vadd.f32 0.0, %v1689
        %v1691 = vpop.f32.mrb[0].mxu0
        %v1692 = vadd.f32 0.0, %v1691
        %1693 = vmatprep.mubr.bf16.mxu0 0
        %1694 = vmatmul.mubr.bf16.gmra.mrb[0].mxu0 %v734
        %v1695 = vpop.f32.mrb[0].mxu0
        %v1696 = vadd.f32 0.0, %v1695
        %v1697 = vpop.f32.mrb[0].mxu0
        %v1698 = vadd.f32 0.0, %v1697
        %v1699 = vpop.f32.mrb[0].mxu0
        %v1700 = vadd.f32 0.0, %v1699
        %v1701 = vpop.f32.mrb[0].mxu0
        %v1702 = vadd.f32 0.0, %v1701
        %1703 = vmatprep.mubr.bf16.mxu0 0
        %1704 = vmatmul.mubr.bf16.gmra.mrb[0].mxu0 %v737
        %v1705 = vpop.f32.mrb[0].mxu0
        %v1706 = vadd.f32 0.0, %v1705
        %v1707 = vpop.f32.mrb[0].mxu0
        %v1708 = vadd.f32 0.0, %v1707
        %v1709 = vpop.f32.mrb[0].mxu0
        %v1710 = vadd.f32 0.0, %v1709
        %v1711 = vpop.f32.mrb[0].mxu0
        %v1712 = vadd.f32 0.0, %v1711
        %1713 = vmatprep.mubr.bf16.mxu0 0
        %1714 = vmatmul.mubr.bf16.gmra.mrb[0].mxu0 %v740
        %v1715 = vpop.f32.mrb[0].mxu0
        %v1716 = vadd.f32 0.0, %v1715
        %v1717 = vpop.f32.mrb[0].mxu0
        %v1718 = vadd.f32 0.0, %v1717
        %v1719 = vpop.f32.mrb[0].mxu0
        %v1720 = vadd.f32 0.0, %v1719
        %v1721 = vpop.f32.mrb[0].mxu0
        %v1722 = vadd.f32 0.0, %v1721
        %1723 = vmatprep.mubr.bf16.mxu0 0
        %1724 = vmatmul.mubr.bf16.gmra.mrb[0].mxu0 %v743
        %v1725 = vpop.f32.mrb[0].mxu0
        %v1726 = vadd.f32 0.0, %v1725
        %v1727 = vpop.f32.mrb[0].mxu0
        %v1728 = vadd.f32 0.0, %v1727
        %v1729 = vpop.f32.mrb[0].mxu0
        %v1730 = vadd.f32 0.0, %v1729
        %v1731 = vpop.f32.mrb[0].mxu0
        %v1732 = vadd.f32 0.0, %v1731
        %1733 = vmatprep.mubr.bf16.mxu0 0
        %1734 = vmatmul.mubr.bf16.gmra.mrb[0].mxu0 %v746
        %v1735 = vpop.f32.mrb[0].mxu0
        %v1736 = vadd.f32 0.0, %v1735
        %v1737 = vpop.f32.mrb[0].mxu0
        %v1738 = vadd.f32 0.0, %v1737
        %v1739 = vpop.f32.mrb[0].mxu0
        %v1740 = vadd.f32 0.0, %v1739
        %v1741 = vpop.f32.mrb[0].mxu0
        %v1742 = vadd.f32 0.0, %v1741
        %1743 = vmatprep.mubr.bf16.mxu0 0
        %1744 = vmatmul.mubr.bf16.gmra.mrb[0].mxu0 %v749
        %v1745 = vpop.f32.mrb[0].mxu0
        %v1746 = vadd.f32 0.0, %v1745
        %v1747 = vpop.f32.mrb[0].mxu0
        %v1748 = vadd.f32 0.0, %v1747
        %v1749 = vpop.f32.mrb[0].mxu0
        %v1750 = vadd.f32 0.0, %v1749
        %v1751 = vpop.f32.mrb[0].mxu0
        %v1752 = vadd.f32 0.0, %v1751
        %1753 = vmatprep.mubr.bf16.mxu0 0
        %1754 = vmatmul.mubr.bf16.gmra.mrb[0].mxu0 %v752
        %v1755 = vpop.f32.mrb[0].mxu0
        %v1756 = vadd.f32 0.0, %v1755
        %v1757 = vpop.f32.mrb[0].mxu0
        %v1758 = vadd.f32 0.0, %v1757
        %v1759 = vpop.f32.mrb[0].mxu0
        %v1760 = vadd.f32 0.0, %v1759
        %v1761 = vpop.f32.mrb[0].mxu0
        %v1762 = vadd.f32 0.0, %v1761
        %1763 = vmatprep.mubr.bf16.mxu0 0
        %1764 = vmatmul.mubr.bf16.gmra.mrb[0].mxu0 %v755
        %v1765 = vpop.f32.mrb[0].mxu0
        %v1766 = vadd.f32 0.0, %v1765
        %v1767 = vpop.f32.mrb[0].mxu0
        %v1768 = vadd.f32 0.0, %v1767
        %v1769 = vpop.f32.mrb[0].mxu0
        %v1770 = vadd.f32 0.0, %v1769
        %v1771 = vpop.f32.mrb[0].mxu0
        %v1772 = vadd.f32 0.0, %v1771
        %1773 = vmatprep.mubr.bf16.mxu0 0
        %1774 = vmatmul.mubr.bf16.gmra.mrb[0].mxu0 %v758
        %v1775 = vpop.f32.mrb[0].mxu0
        %v1776 = vadd.f32 0.0, %v1775
        %v1777 = vpop.f32.mrb[0].mxu0
        %v1778 = vadd.f32 0.0, %v1777
        %v1779 = vpop.f32.mrb[0].mxu0
        %v1780 = vadd.f32 0.0, %v1779
        %v1781 = vpop.f32.mrb[0].mxu0
        %v1782 = vadd.f32 0.0, %v1781
        %1783 = vmatprep.mubr.bf16.mxu0 0
        %1784 = vmatmul.mubr.bf16.gmra.mrb[0].mxu0 %v761
        %v1785 = vpop.f32.mrb[0].mxu0
        %v1786 = vadd.f32 0.0, %v1785
        %v1787 = vpop.f32.mrb[0].mxu0
        %v1788 = vadd.f32 0.0, %v1787
        %v1789 = vpop.f32.mrb[0].mxu0
        %v1790 = vadd.f32 0.0, %v1789
        %v1791 = vpop.f32.mrb[0].mxu0
        %v1792 = vadd.f32 0.0, %v1791
        %1793 = vmatprep.mubr.bf16.mxu0 0
        %1794 = vmatmul.mubr.bf16.gmra.mrb[0].mxu0 %v764
        %v1795 = vpop.f32.mrb[0].mxu0
        %v1796 = vadd.f32 0.0, %v1795
        %v1797 = vpop.f32.mrb[0].mxu0
        %v1798 = vadd.f32 0.0, %v1797
        %v1799 = vpop.f32.mrb[0].mxu0
        %v1800 = vadd.f32 0.0, %v1799
        %v1801 = vpop.f32.mrb[0].mxu0
        %v1802 = vadd.f32 0.0, %v1801
        %1803 = vmatprep.mubr.bf16.mxu0 0
        %1804 = vmatmul.mubr.bf16.gmra.mrb[0].mxu0 %v767
        %v1805 = vpop.f32.mrb[0].mxu0
        %v1806 = vadd.f32 0.0, %v1805
        %v1807 = vpop.f32.mrb[0].mxu0
        %v1808 = vadd.f32 0.0, %v1807
        %v1809 = vpop.f32.mrb[0].mxu0
        %v1810 = vadd.f32 0.0, %v1809
        %v1811 = vpop.f32.mrb[0].mxu0
        %v1812 = vadd.f32 0.0, %v1811
        %1813 = vmatprep.mubr.bf16.mxu0 0
        %1814 = vmatmul.mubr.bf16.gmra.mrb[0].mxu0 %v770
        %v1815 = vpop.f32.mrb[0].mxu0
        %v1816 = vadd.f32 0.0, %v1815
        %v1817 = vpop.f32.mrb[0].mxu0
        %v1818 = vadd.f32 0.0, %v1817
        %v1819 = vpop.f32.mrb[0].mxu0
        %v1820 = vadd.f32 0.0, %v1819
        %v1821 = vpop.f32.mrb[0].mxu0
        %v1822 = vadd.f32 0.0, %v1821
        %1823 = vmatprep.mubr.bf16.mxu0 0
        %1824 = vmatmul.mubr.bf16.gmra.mrb[0].mxu0 %v773
        %v1825 = vpop.f32.mrb[0].mxu0
        %v1826 = vadd.f32 0.0, %v1825
        %v1827 = vpop.f32.mrb[0].mxu0
        %v1828 = vadd.f32 0.0, %v1827
        %v1829 = vpop.f32.mrb[0].mxu0
        %v1830 = vadd.f32 0.0, %v1829
        %v1831 = vpop.f32.mrb[0].mxu0
        %v1832 = vadd.f32 0.0, %v1831
        %1833 = vmatprep.mubr.bf16.mxu0 0
        %1834 = vmatmul.mubr.bf16.gmra.mrb[0].mxu0 %v776
        %v1835 = vpop.f32.mrb[0].mxu0
        %v1836 = vadd.f32 0.0, %v1835
        %v1837 = vpop.f32.mrb[0].mxu0
        %v1838 = vadd.f32 0.0, %v1837
        %v1839 = vpop.f32.mrb[0].mxu0
        %v1840 = vadd.f32 0.0, %v1839
        %v1841 = vpop.f32.mrb[0].mxu0
        %v1842 = vadd.f32 0.0, %v1841
        %1843 = vmatprep.mubr.bf16.mxu0 0
        %1844 = vmatmul.mubr.bf16.gmra.mrb[0].mxu0 %v779
        %v1845 = vpop.f32.mrb[0].mxu0
        %v1846 = vadd.f32 0.0, %v1845
        %v1847 = vpop.f32.mrb[0].mxu0
        %v1848 = vadd.f32 0.0, %v1847
        %v1849 = vpop.f32.mrb[0].mxu0
        %v1850 = vpop.f32.mrb[0].mxu0
        %1851 = vdwg.mxu0
        %v1852 = vpack.c.bf16 %v820, %v816
        %v1853 = vpack.c.bf16 %v822, %v818
        %v1854 = vpack.c.bf16 %v830, %v826
        %v1855 = vpack.c.bf16 %v832, %v828
        %v1856 = vpack.c.bf16 %v840, %v836
        %v1857 = vpack.c.bf16 %v842, %v838
        %v1858 = vpack.c.bf16 %v850, %v846
        %v1859 = vpack.c.bf16 %v852, %v848
        %v1860 = vpack.c.bf16 %v860, %v856
        %v1861 = vpack.c.bf16 %v862, %v858
        %v1862 = vpack.c.bf16 %v870, %v866
        %v1863 = vpack.c.bf16 %v872, %v868
        %v1864 = vpack.c.bf16 %v880, %v876
        %v1865 = vpack.c.bf16 %v882, %v878
        %v1866 = vpack.c.bf16 %v890, %v886
        %v1867 = vpack.c.bf16 %v892, %v888
        %v1868 = vpack.c.bf16 %v900, %v896
        %v1869 = vpack.c.bf16 %v902, %v898
        %v1870 = vpack.c.bf16 %v910, %v906
        %v1871 = vpack.c.bf16 %v912, %v908
        %v1872 = vpack.c.bf16 %v920, %v916
        %v1873 = vpack.c.bf16 %v922, %v918
        %v1874 = vpack.c.bf16 %v930, %v926
        %v1875 = vpack.c.bf16 %v932, %v928
        %v1876 = vpack.c.bf16 %v940, %v936
        %v1877 = vpack.c.bf16 %v942, %v938
        %v1878 = vpack.c.bf16 %v950, %v946
        %v1879 = vpack.c.bf16 %v952, %v948
        %v1880 = vpack.c.bf16 %v960, %v956
        %v1881 = vpack.c.bf16 %v962, %v958
        %v1882 = vpack.c.bf16 %v970, %v966
        %v1883 = vpack.c.bf16 %v972, %v968
        %v1884 = vpack.c.bf16 %v980, %v976
        %v1885 = vpack.c.bf16 %v982, %v978
        %v1886 = vpack.c.bf16 %v990, %v986
        %v1887 = vpack.c.bf16 %v992, %v988
        %v1888 = vpack.c.bf16 %v1000, %v996
        %v1889 = vpack.c.bf16 %v1002, %v998
        %v1890 = vpack.c.bf16 %v1010, %v1006
        %v1891 = vpack.c.bf16 %v1012, %v1008
        %v1892 = vpack.c.bf16 %v1020, %v1016
        %v1893 = vpack.c.bf16 %v1022, %v1018
        %v1894 = vpack.c.bf16 %v1030, %v1026
        %v1895 = vpack.c.bf16 %v1032, %v1028
        %v1896 = vpack.c.bf16 %v1040, %v1036
        %v1897 = vpack.c.bf16 %v1042, %v1038
        %v1898 = vpack.c.bf16 %v1050, %v1046
        %v1899 = vpack.c.bf16 %v1052, %v1048
        %v1900 = vpack.c.bf16 %v1060, %v1056
        %v1901 = vpack.c.bf16 %v1062, %v1058
        %v1902 = vpack.c.bf16 %v1070, %v1066
        %v1903 = vpack.c.bf16 %v1072, %v1068
        %v1904 = vpack.c.bf16 %v1080, %v1076
        %v1905 = vpack.c.bf16 %v1082, %v1078
        %v1906 = vpack.c.bf16 %v1090, %v1086
        %v1907 = vpack.c.bf16 %v1092, %v1088
        %v1908 = vpack.c.bf16 %v1100, %v1096
        %v1909 = vpack.c.bf16 %v1102, %v1098
        %v1910 = vpack.c.bf16 %v1110, %v1106
        %v1911 = vpack.c.bf16 %v1112, %v1108
        %v1912 = vpack.c.bf16 %v1120, %v1116
        %v1913 = vpack.c.bf16 %v1122, %v1118
        %v1914 = vpack.c.bf16 %v1130, %v1126
        %v1915 = vpack.c.bf16 %v1132, %v1128
        %v1916 = vpack.c.bf16 %v1140, %v1136
        %v1917 = vpack.c.bf16 %v1142, %v1138
        %v1918 = vpack.c.bf16 %v1150, %v1146
        %v1919 = vpack.c.bf16 %v1152, %v1148
        %v1920 = vpack.c.bf16 %v1160, %v1156
        %v1921 = vpack.c.bf16 %v1162, %v1158
        %v1922 = vpack.c.bf16 %v1170, %v1166
        %v1923 = vpack.c.bf16 %v1172, %v1168
        %v1924 = vpack.c.bf16 %v1180, %v1176
        %v1925 = vpack.c.bf16 %v1182, %v1178
        %v1926 = vpack.c.bf16 %v1190, %v1186
        %v1927 = vpack.c.bf16 %v1192, %v1188
        %v1928 = vpack.c.bf16 %v1200, %v1196
        %v1929 = vpack.c.bf16 %v1202, %v1198
        %v1930 = vpack.c.bf16 %v1210, %v1206
        %v1931 = vpack.c.bf16 %v1212, %v1208
        %v1932 = vpack.c.bf16 %v1220, %v1216
        %v1933 = vpack.c.bf16 %v1222, %v1218
        %v1934 = vpack.c.bf16 %v1230, %v1226
        %v1935 = vpack.c.bf16 %v1232, %v1228
        %v1936 = vpack.c.bf16 %v1240, %v1236
        %v1937 = vpack.c.bf16 %v1242, %v1238
        %v1938 = vpack.c.bf16 %v1250, %v1246
        %v1939 = vpack.c.bf16 %v1252, %v1248
        %v1940 = vpack.c.bf16 %v1260, %v1256
        %v1941 = vpack.c.bf16 %v1262, %v1258
        %v1942 = vpack.c.bf16 %v1270, %v1266
        %v1943 = vpack.c.bf16 %v1272, %v1268
        %v1944 = vpack.c.bf16 %v1280, %v1276
        %v1945 = vpack.c.bf16 %v1282, %v1278
        %v1946 = vpack.c.bf16 %v1290, %v1286
        %v1947 = vpack.c.bf16 %v1292, %v1288
        %v1948 = vpack.c.bf16 %v1300, %v1296
        %v1949 = vpack.c.bf16 %v1302, %v1298
        %v1950 = vpack.c.bf16 %v1310, %v1306
        %v1951 = vpack.c.bf16 %v1312, %v1308
        %v1952 = vpack.c.bf16 %v1320, %v1316
        %v1953 = vpack.c.bf16 %v1322, %v1318
        %v1954 = vpack.c.bf16 %v1330, %v1326
        %v1955 = vpack.c.bf16 %v1332, %v1328
        %v1956 = vpack.c.bf16 %v1340, %v1336
        %v1957 = vpack.c.bf16 %v1342, %v1338
        %v1958 = vpack.c.bf16 %v1350, %v1346
        %v1959 = vpack.c.bf16 %v1352, %v1348
        %v1960 = vpack.c.bf16 %v1360, %v1356
        %v1961 = vpack.c.bf16 %v1362, %v1358
        %v1962 = vpack.c.bf16 %v1370, %v1366
        %v1963 = vpack.c.bf16 %v1372, %v1368
        %v1964 = vpack.c.bf16 %v1380, %v1376
        %v1965 = vpack.c.bf16 %v1382, %v1378
        %v1966 = vpack.c.bf16 %v1390, %v1386
        %v1967 = vpack.c.bf16 %v1392, %v1388
        %v1968 = vpack.c.bf16 %v1400, %v1396
        %v1969 = vpack.c.bf16 %v1402, %v1398
        %v1970 = vpack.c.bf16 %v1410, %v1406
        %v1971 = vpack.c.bf16 %v1412, %v1408
        %v1972 = vpack.c.bf16 %v1420, %v1416
        %v1973 = vpack.c.bf16 %v1422, %v1418
        %v1974 = vpack.c.bf16 %v1430, %v1426
        %v1975 = vpack.c.bf16 %v1432, %v1428
        %v1976 = vpack.c.bf16 %v1440, %v1436
        %v1977 = vpack.c.bf16 %v1442, %v1438
        %v1978 = vpack.c.bf16 %v1450, %v1446
        %v1979 = vpack.c.bf16 %v1452, %v1448
        %v1980 = vpack.c.bf16 %v1460, %v1456
        %v1981 = vpack.c.bf16 %v1462, %v1458
        %v1982 = vpack.c.bf16 %v1470, %v1466
        %v1983 = vpack.c.bf16 %v1472, %v1468
        %v1984 = vpack.c.bf16 %v1480, %v1476
        %v1985 = vpack.c.bf16 %v1482, %v1478
        %v1986 = vpack.c.bf16 %v1490, %v1486
        %v1987 = vpack.c.bf16 %v1492, %v1488
        %v1988 = vpack.c.bf16 %v1500, %v1496
        %v1989 = vpack.c.bf16 %v1502, %v1498
        %v1990 = vpack.c.bf16 %v1510, %v1506
        %v1991 = vpack.c.bf16 %v1512, %v1508
        %v1992 = vpack.c.bf16 %v1520, %v1516
        %v1993 = vpack.c.bf16 %v1522, %v1518
        %v1994 = vpack.c.bf16 %v1530, %v1526
        %v1995 = vpack.c.bf16 %v1532, %v1528
        %v1996 = vpack.c.bf16 %v1540, %v1536
        %v1997 = vpack.c.bf16 %v1542, %v1538
        %v1998 = vpack.c.bf16 %v1550, %v1546
        %v1999 = vpack.c.bf16 %v1552, %v1548
        %v2000 = vpack.c.bf16 %v1560, %v1556
        %v2001 = vpack.c.bf16 %v1562, %v1558
        %v2002 = vpack.c.bf16 %v1570, %v1566
        %v2003 = vpack.c.bf16 %v1572, %v1568
        %v2004 = vpack.c.bf16 %v1580, %v1576
        %v2005 = vpack.c.bf16 %v1582, %v1578
        %v2006 = vpack.c.bf16 %v1590, %v1586
        %v2007 = vpack.c.bf16 %v1592, %v1588
        %v2008 = vpack.c.bf16 %v1600, %v1596
        %v2009 = vpack.c.bf16 %v1602, %v1598
        %v2010 = vpack.c.bf16 %v1610, %v1606
        %v2011 = vpack.c.bf16 %v1612, %v1608
        %v2012 = vpack.c.bf16 %v1620, %v1616
        %v2013 = vpack.c.bf16 %v1622, %v1618
        %v2014 = vpack.c.bf16 %v1630, %v1626
        %v2015 = vpack.c.bf16 %v1632, %v1628
        %v2016 = vpack.c.bf16 %v1640, %v1636
        %v2017 = vpack.c.bf16 %v1642, %v1638
        %v2018 = vpack.c.bf16 %v1650, %v1646
        %v2019 = vpack.c.bf16 %v1652, %v1648
        %v2020 = vpack.c.bf16 %v1660, %v1656
        %v2021 = vpack.c.bf16 %v1662, %v1658
        %v2022 = vpack.c.bf16 %v1670, %v1666
        %v2023 = vpack.c.bf16 %v1672, %v1668
        %v2024 = vpack.c.bf16 %v1680, %v1676
        %v2025 = vpack.c.bf16 %v1682, %v1678
        %v2026 = vpack.c.bf16 %v1690, %v1686
        %v2027 = vpack.c.bf16 %v1692, %v1688
        %v2028 = vpack.c.bf16 %v1700, %v1696
        %v2029 = vpack.c.bf16 %v1702, %v1698
        %v2030 = vpack.c.bf16 %v1710, %v1706
        %v2031 = vpack.c.bf16 %v1712, %v1708
        %v2032 = vpack.c.bf16 %v1720, %v1716
        %v2033 = vpack.c.bf16 %v1722, %v1718
        %v2034 = vpack.c.bf16 %v1730, %v1726
        %v2035 = vpack.c.bf16 %v1732, %v1728
        %v2036 = vpack.c.bf16 %v1740, %v1736
        %v2037 = vpack.c.bf16 %v1742, %v1738
        %v2038 = vpack.c.bf16 %v1750, %v1746
        %v2039 = vpack.c.bf16 %v1752, %v1748
        %v2040 = vpack.c.bf16 %v1760, %v1756
        %v2041 = vpack.c.bf16 %v1762, %v1758
        %v2042 = vpack.c.bf16 %v1770, %v1766
        %v2043 = vpack.c.bf16 %v1772, %v1768
        %v2044 = vpack.c.bf16 %v1780, %v1776
        %v2045 = vpack.c.bf16 %v1782, %v1778
        %v2046 = vpack.c.bf16 %v1790, %v1786
        %v2047 = vpack.c.bf16 %v1792, %v1788
        %v2048 = vpack.c.bf16 %v1800, %v1796
        %v2049 = vpack.c.bf16 %v1802, %v1798
        %v2050 = vpack.c.bf16 %v1810, %v1806
        %v2051 = vpack.c.bf16 %v1812, %v1808
        %v2052 = vpack.c.bf16 %v1820, %v1816
        %v2053 = vpack.c.bf16 %v1822, %v1818
        %v2054 = vpack.c.bf16 %v1830, %v1826
        %v2055 = vpack.c.bf16 %v1832, %v1828
        %v2056 = vpack.c.bf16 %v1840, %v1836
        %v2057 = vpack.c.bf16 %v1842, %v1838
        %v2058 = vpack.c.bf16 %v1846, %v1846
        %v2059 = vpack.c.bf16 %v1848, %v1848
        %v2268 = vunpack.c.l.b16 %v1852
        %v2269 = vunpack.c.l.b16 %v1853
        %v2270 = vunpack.c.h.b16 %v1852
        %v2271 = vunpack.c.h.b16 %v1853
        %v2272 = vunpack.c.l.b16 %v1854
        %v2273 = vunpack.c.l.b16 %v1855
        %v2274 = vunpack.c.h.b16 %v1854
        %v2275 = vunpack.c.h.b16 %v1855
        %v2276 = vunpack.c.l.b16 %v1856
        %v2277 = vunpack.c.l.b16 %v1857
        %v2278 = vunpack.c.h.b16 %v1856
        %v2279 = vunpack.c.h.b16 %v1857
        %v2280 = vunpack.c.l.b16 %v1858
        %v2281 = vunpack.c.l.b16 %v1859
        %v2282 = vunpack.c.h.b16 %v1858
        %v2283 = vunpack.c.h.b16 %v1859
        %v2284 = vunpack.c.l.b16 %v1860
        %v2285 = vunpack.c.l.b16 %v1861
        %v2286 = vunpack.c.h.b16 %v1860
        %v2287 = vunpack.c.h.b16 %v1861
        %v2288 = vunpack.c.l.b16 %v1862
        %v2289 = vunpack.c.l.b16 %v1863
        %v2290 = vunpack.c.h.b16 %v1862
        %v2291 = vunpack.c.h.b16 %v1863
        %v2292 = vunpack.c.l.b16 %v1864
        %v2293 = vunpack.c.l.b16 %v1865
        %v2294 = vunpack.c.h.b16 %v1864
        %v2295 = vunpack.c.h.b16 %v1865
        %v2296 = vunpack.c.l.b16 %v1866
        %v2297 = vunpack.c.l.b16 %v1867
        %v2298 = vunpack.c.h.b16 %v1866
        %v2299 = vunpack.c.h.b16 %v1867
        %v2300 = vunpack.c.l.b16 %v1868
        %v2301 = vunpack.c.l.b16 %v1869
        %v2302 = vunpack.c.h.b16 %v1868
        %v2303 = vunpack.c.h.b16 %v1869
        %v2304 = vunpack.c.l.b16 %v1870
        %v2305 = vunpack.c.l.b16 %v1871
        %v2306 = vunpack.c.h.b16 %v1870
        %v2307 = vunpack.c.h.b16 %v1871
        %v2308 = vunpack.c.l.b16 %v1872
        %v2309 = vunpack.c.l.b16 %v1873
        %v2310 = vunpack.c.h.b16 %v1872
        %v2311 = vunpack.c.h.b16 %v1873
        %v2312 = vunpack.c.l.b16 %v1874
        %v2313 = vunpack.c.l.b16 %v1875
        %v2314 = vunpack.c.h.b16 %v1874
        %v2315 = vunpack.c.h.b16 %v1875
        %v2316 = vunpack.c.l.b16 %v1876
        %v2317 = vunpack.c.l.b16 %v1877
        %v2318 = vunpack.c.h.b16 %v1876
        %v2319 = vunpack.c.h.b16 %v1877
        %v2320 = vunpack.c.l.b16 %v1878
        %v2321 = vunpack.c.l.b16 %v1879
        %v2322 = vunpack.c.h.b16 %v1878
        %v2323 = vunpack.c.h.b16 %v1879
        %v2324 = vunpack.c.l.b16 %v1880
        %v2325 = vunpack.c.l.b16 %v1881
        %v2326 = vunpack.c.h.b16 %v1880
        %v2327 = vunpack.c.h.b16 %v1881
        %v2328 = vunpack.c.l.b16 %v1882
        %v2329 = vunpack.c.l.b16 %v1883
        %v2330 = vunpack.c.h.b16 %v1882
        %v2331 = vunpack.c.h.b16 %v1883
        %v2332 = vunpack.c.l.b16 %v1884
        %v2333 = vunpack.c.l.b16 %v1885
        %v2334 = vunpack.c.h.b16 %v1884
        %v2335 = vunpack.c.h.b16 %v1885
        %v2336 = vunpack.c.l.b16 %v1886
        %v2337 = vunpack.c.l.b16 %v1887
        %v2338 = vunpack.c.h.b16 %v1886
        %v2339 = vunpack.c.h.b16 %v1887
        %v2340 = vunpack.c.l.b16 %v1888
        %v2341 = vunpack.c.l.b16 %v1889
        %v2342 = vunpack.c.h.b16 %v1888
        %v2343 = vunpack.c.h.b16 %v1889
        %v2344 = vunpack.c.l.b16 %v1890
        %v2345 = vunpack.c.l.b16 %v1891
        %v2346 = vunpack.c.h.b16 %v1890
        %v2347 = vunpack.c.h.b16 %v1891
        %v2348 = vunpack.c.l.b16 %v1892
        %v2349 = vunpack.c.l.b16 %v1893
        %v2350 = vunpack.c.h.b16 %v1892
        %v2351 = vunpack.c.h.b16 %v1893
        %v2352 = vunpack.c.l.b16 %v1894
        %v2353 = vunpack.c.l.b16 %v1895
        %v2354 = vunpack.c.h.b16 %v1894
        %v2355 = vunpack.c.h.b16 %v1895
        %v2356 = vunpack.c.l.b16 %v1896
        %v2357 = vunpack.c.l.b16 %v1897
        %v2358 = vunpack.c.h.b16 %v1896
        %v2359 = vunpack.c.h.b16 %v1897
        %v2360 = vunpack.c.l.b16 %v1898
        %v2361 = vunpack.c.l.b16 %v1899
        %v2362 = vunpack.c.h.b16 %v1898
        %v2363 = vunpack.c.h.b16 %v1899
        %v2364 = vunpack.c.l.b16 %v1900
        %v2365 = vunpack.c.l.b16 %v1901
        %v2366 = vunpack.c.h.b16 %v1900
        %v2367 = vunpack.c.h.b16 %v1901
        %v2368 = vunpack.c.l.b16 %v1902
        %v2369 = vunpack.c.l.b16 %v1903
        %v2370 = vunpack.c.h.b16 %v1902
        %v2371 = vunpack.c.h.b16 %v1903
        %v2372 = vunpack.c.l.b16 %v1904
        %v2373 = vunpack.c.l.b16 %v1905
        %v2374 = vunpack.c.h.b16 %v1904
        %v2375 = vunpack.c.h.b16 %v1905
        %v2376 = vunpack.c.l.b16 %v1906
        %v2377 = vunpack.c.l.b16 %v1907
        %v2378 = vunpack.c.h.b16 %v1906
        %v2379 = vunpack.c.h.b16 %v1907
        %v2380 = vunpack.c.l.b16 %v1908
        %v2381 = vunpack.c.l.b16 %v1909
        %v2382 = vunpack.c.h.b16 %v1908
        %v2383 = vunpack.c.h.b16 %v1909
        %v2384 = vunpack.c.l.b16 %v1910
        %v2385 = vunpack.c.l.b16 %v1911
        %v2386 = vunpack.c.h.b16 %v1910
        %v2387 = vunpack.c.h.b16 %v1911
        %v2388 = vunpack.c.l.b16 %v1912
        %v2389 = vunpack.c.l.b16 %v1913
        %v2390 = vunpack.c.h.b16 %v1912
        %v2391 = vunpack.c.h.b16 %v1913
        %v2392 = vunpack.c.l.b16 %v1914
        %v2393 = vunpack.c.l.b16 %v1915
        %v2394 = vunpack.c.h.b16 %v1914
        %v2395 = vunpack.c.h.b16 %v1915
        %v2396 = vunpack.c.l.b16 %v1916
        %v2397 = vunpack.c.l.b16 %v1917
        %v2398 = vunpack.c.h.b16 %v1916
        %v2399 = vunpack.c.h.b16 %v1917
        %v2400 = vunpack.c.l.b16 %v1918
        %v2401 = vunpack.c.l.b16 %v1919
        %v2402 = vunpack.c.h.b16 %v1918
        %v2403 = vunpack.c.h.b16 %v1919
        %v2404 = vunpack.c.l.b16 %v1920
        %v2405 = vunpack.c.l.b16 %v1921
        %v2406 = vunpack.c.h.b16 %v1920
        %v2407 = vunpack.c.h.b16 %v1921
        %v2408 = vunpack.c.l.b16 %v1922
        %v2409 = vunpack.c.l.b16 %v1923
        %v2410 = vunpack.c.h.b16 %v1922
        %v2411 = vunpack.c.h.b16 %v1923
        %v2412 = vunpack.c.l.b16 %v1924
        %v2413 = vunpack.c.l.b16 %v1925
        %v2414 = vunpack.c.h.b16 %v1924
        %v2415 = vunpack.c.h.b16 %v1925
        %v2416 = vunpack.c.l.b16 %v1926
        %v2417 = vunpack.c.l.b16 %v1927
        %v2418 = vunpack.c.h.b16 %v1926
        %v2419 = vunpack.c.h.b16 %v1927
        %v2420 = vunpack.c.l.b16 %v1928
        %v2421 = vunpack.c.l.b16 %v1929
        %v2422 = vunpack.c.h.b16 %v1928
        %v2423 = vunpack.c.h.b16 %v1929
        %v2424 = vunpack.c.l.b16 %v1930
        %v2425 = vunpack.c.l.b16 %v1931
        %v2426 = vunpack.c.h.b16 %v1930
        %v2427 = vunpack.c.h.b16 %v1931
        %v2428 = vunpack.c.l.b16 %v1932
        %v2429 = vunpack.c.l.b16 %v1933
        %v2430 = vunpack.c.h.b16 %v1932
        %v2431 = vunpack.c.h.b16 %v1933
        %v2432 = vunpack.c.l.b16 %v1934
        %v2433 = vunpack.c.l.b16 %v1935
        %v2434 = vunpack.c.h.b16 %v1934
        %v2435 = vunpack.c.h.b16 %v1935
        %v2436 = vunpack.c.l.b16 %v1936
        %v2437 = vunpack.c.l.b16 %v1937
        %v2438 = vunpack.c.h.b16 %v1936
        %v2439 = vunpack.c.h.b16 %v1937
        %v2440 = vunpack.c.l.b16 %v1938
        %v2441 = vunpack.c.l.b16 %v1939
        %v2442 = vunpack.c.h.b16 %v1938
        %v2443 = vunpack.c.h.b16 %v1939
        %v2444 = vunpack.c.l.b16 %v1940
        %v2445 = vunpack.c.l.b16 %v1941
        %v2446 = vunpack.c.h.b16 %v1940
        %v2447 = vunpack.c.h.b16 %v1941
        %v2448 = vunpack.c.l.b16 %v1942
        %v2449 = vunpack.c.l.b16 %v1943
        %v2450 = vunpack.c.h.b16 %v1942
        %v2451 = vunpack.c.h.b16 %v1943
        %v2452 = vunpack.c.l.b16 %v1944
        %v2453 = vunpack.c.l.b16 %v1945
        %v2454 = vunpack.c.h.b16 %v1944
        %v2455 = vunpack.c.h.b16 %v1945
        %v2456 = vunpack.c.l.b16 %v1946
        %v2457 = vunpack.c.l.b16 %v1947
        %v2458 = vunpack.c.h.b16 %v1946
        %v2459 = vunpack.c.h.b16 %v1947
        %v2460 = vunpack.c.l.b16 %v1948
        %v2461 = vunpack.c.l.b16 %v1949
        %v2462 = vunpack.c.h.b16 %v1948
        %v2463 = vunpack.c.h.b16 %v1949
        %v2464 = vunpack.c.l.b16 %v1950
        %v2465 = vunpack.c.l.b16 %v1951
        %v2466 = vunpack.c.h.b16 %v1950
        %v2467 = vunpack.c.h.b16 %v1951
        %v2468 = vunpack.c.l.b16 %v1952
        %v2469 = vunpack.c.l.b16 %v1953
        %v2470 = vunpack.c.h.b16 %v1952
        %v2471 = vunpack.c.h.b16 %v1953
        %v2472 = vunpack.c.l.b16 %v1954
        %v2473 = vunpack.c.l.b16 %v1955
        %v2474 = vunpack.c.h.b16 %v1954
        %v2475 = vunpack.c.h.b16 %v1955
        %v2476 = vunpack.c.l.b16 %v1956
        %v2477 = vunpack.c.l.b16 %v1957
        %v2478 = vunpack.c.h.b16 %v1956
        %v2479 = vunpack.c.h.b16 %v1957
        %v2480 = vunpack.c.l.b16 %v1958
        %v2481 = vunpack.c.l.b16 %v1959
        %v2482 = vunpack.c.h.b16 %v1958
        %v2483 = vunpack.c.h.b16 %v1959
        %v2484 = vunpack.c.l.b16 %v1960
        %v2485 = vunpack.c.l.b16 %v1961
        %v2486 = vunpack.c.h.b16 %v1960
        %v2487 = vunpack.c.h.b16 %v1961
        %v2488 = vunpack.c.l.b16 %v1962
        %v2489 = vunpack.c.l.b16 %v1963
        %v2490 = vunpack.c.h.b16 %v1962
        %v2491 = vunpack.c.h.b16 %v1963
        %v2492 = vunpack.c.l.b16 %v1964
        %v2493 = vunpack.c.l.b16 %v1965
        %v2494 = vunpack.c.h.b16 %v1964
        %v2495 = vunpack.c.h.b16 %v1965
        %v2496 = vunpack.c.l.b16 %v1966
        %v2497 = vunpack.c.l.b16 %v1967
        %v2498 = vunpack.c.h.b16 %v1966
        %v2499 = vunpack.c.h.b16 %v1967
        %v2500 = vunpack.c.l.b16 %v1968
        %v2501 = vunpack.c.l.b16 %v1969
        %v2502 = vunpack.c.h.b16 %v1968
        %v2503 = vunpack.c.h.b16 %v1969
        %v2504 = vunpack.c.l.b16 %v1970
        %v2505 = vunpack.c.l.b16 %v1971
        %v2506 = vunpack.c.h.b16 %v1970
        %v2507 = vunpack.c.h.b16 %v1971
        %v2508 = vunpack.c.l.b16 %v1972
        %v2509 = vunpack.c.l.b16 %v1973
        %v2510 = vunpack.c.h.b16 %v1972
        %v2511 = vunpack.c.h.b16 %v1973
        %v2512 = vunpack.c.l.b16 %v1974
        %v2513 = vunpack.c.l.b16 %v1975
        %v2514 = vunpack.c.h.b16 %v1974
        %v2515 = vunpack.c.h.b16 %v1975
        %v2516 = vunpack.c.l.b16 %v1976
        %v2517 = vunpack.c.l.b16 %v1977
        %v2518 = vunpack.c.h.b16 %v1976
        %v2519 = vunpack.c.h.b16 %v1977
        %v2520 = vunpack.c.l.b16 %v1978
        %v2521 = vunpack.c.l.b16 %v1979
        %v2522 = vunpack.c.h.b16 %v1978
        %v2523 = vunpack.c.h.b16 %v1979
        %v2524 = vunpack.c.l.b16 %v1980
        %v2525 = vunpack.c.l.b16 %v1981
        %v2526 = vunpack.c.h.b16 %v1980
        %v2527 = vunpack.c.h.b16 %v1981
        %v2528 = vunpack.c.l.b16 %v1982
        %v2529 = vunpack.c.l.b16 %v1983
        %v2530 = vunpack.c.h.b16 %v1982
        %v2531 = vunpack.c.h.b16 %v1983
        %v2532 = vunpack.c.l.b16 %v1984
        %v2533 = vunpack.c.l.b16 %v1985
        %v2534 = vunpack.c.h.b16 %v1984
        %v2535 = vunpack.c.h.b16 %v1985
        %v2536 = vunpack.c.l.b16 %v1986
        %v2537 = vunpack.c.l.b16 %v1987
        %v2538 = vunpack.c.h.b16 %v1986
        %v2539 = vunpack.c.h.b16 %v1987
        %v2540 = vunpack.c.l.b16 %v1988
        %v2541 = vunpack.c.l.b16 %v1989
        %v2542 = vunpack.c.h.b16 %v1988
        %v2543 = vunpack.c.h.b16 %v1989
        %v2544 = vunpack.c.l.b16 %v1990
        %v2545 = vunpack.c.l.b16 %v1991
        %v2546 = vunpack.c.h.b16 %v1990
        %v2547 = vunpack.c.h.b16 %v1991
        %v2548 = vunpack.c.l.b16 %v1992
        %v2549 = vunpack.c.l.b16 %v1993
        %v2550 = vunpack.c.h.b16 %v1992
        %v2551 = vunpack.c.h.b16 %v1993
        %v2552 = vunpack.c.l.b16 %v1994
        %v2553 = vunpack.c.l.b16 %v1995
        %v2554 = vunpack.c.h.b16 %v1994
        %v2555 = vunpack.c.h.b16 %v1995
        %v2556 = vunpack.c.l.b16 %v1996
        %v2557 = vunpack.c.l.b16 %v1997
        %v2558 = vunpack.c.h.b16 %v1996
        %v2559 = vunpack.c.h.b16 %v1997
        %v2560 = vunpack.c.l.b16 %v1998
        %v2561 = vunpack.c.l.b16 %v1999
        %v2562 = vunpack.c.h.b16 %v1998
        %v2563 = vunpack.c.h.b16 %v1999
        %v2564 = vunpack.c.l.b16 %v2000
        %v2565 = vunpack.c.l.b16 %v2001
        %v2566 = vunpack.c.h.b16 %v2000
        %v2567 = vunpack.c.h.b16 %v2001
        %v2568 = vunpack.c.l.b16 %v2002
        %v2569 = vunpack.c.l.b16 %v2003
        %v2570 = vunpack.c.h.b16 %v2002
        %v2571 = vunpack.c.h.b16 %v2003
        %v2572 = vunpack.c.l.b16 %v2004
        %v2573 = vunpack.c.l.b16 %v2005
        %v2574 = vunpack.c.h.b16 %v2004
        %v2575 = vunpack.c.h.b16 %v2005
        %v2576 = vunpack.c.l.b16 %v2006
        %v2577 = vunpack.c.l.b16 %v2007
        %v2578 = vunpack.c.h.b16 %v2006
        %v2579 = vunpack.c.h.b16 %v2007
        %v2580 = vunpack.c.l.b16 %v2008
        %v2581 = vunpack.c.l.b16 %v2009
        %v2582 = vunpack.c.h.b16 %v2008
        %v2583 = vunpack.c.h.b16 %v2009
        %v2584 = vunpack.c.l.b16 %v2010
        %v2585 = vunpack.c.l.b16 %v2011
        %v2586 = vunpack.c.h.b16 %v2010
        %v2587 = vunpack.c.h.b16 %v2011
        %v2588 = vunpack.c.l.b16 %v2012
        %v2589 = vunpack.c.l.b16 %v2013
        %v2590 = vunpack.c.h.b16 %v2012
        %v2591 = vunpack.c.h.b16 %v2013
        %v2592 = vunpack.c.l.b16 %v2014
        %v2593 = vunpack.c.l.b16 %v2015
        %v2594 = vunpack.c.h.b16 %v2014
        %v2595 = vunpack.c.h.b16 %v2015
        %v2596 = vunpack.c.l.b16 %v2016
        %v2597 = vunpack.c.l.b16 %v2017
        %v2598 = vunpack.c.h.b16 %v2016
        %v2599 = vunpack.c.h.b16 %v2017
        %v2600 = vunpack.c.l.b16 %v2018
        %v2601 = vunpack.c.l.b16 %v2019
        %v2602 = vunpack.c.h.b16 %v2018
        %v2603 = vunpack.c.h.b16 %v2019
        %v2604 = vunpack.c.l.b16 %v2020
        %v2605 = vunpack.c.l.b16 %v2021
        %v2606 = vunpack.c.h.b16 %v2020
        %v2607 = vunpack.c.h.b16 %v2021
        %v2608 = vunpack.c.l.b16 %v2022
        %v2609 = vunpack.c.l.b16 %v2023
        %v2610 = vunpack.c.h.b16 %v2022
        %v2611 = vunpack.c.h.b16 %v2023
        %v2612 = vunpack.c.l.b16 %v2024
        %v2613 = vunpack.c.l.b16 %v2025
        %v2614 = vunpack.c.h.b16 %v2024
        %v2615 = vunpack.c.h.b16 %v2025
        %v2616 = vunpack.c.l.b16 %v2026
        %v2617 = vunpack.c.l.b16 %v2027
        %v2618 = vunpack.c.h.b16 %v2026
        %v2619 = vunpack.c.h.b16 %v2027
        %v2620 = vunpack.c.l.b16 %v2028
        %v2621 = vunpack.c.l.b16 %v2029
        %v2622 = vunpack.c.h.b16 %v2028
        %v2623 = vunpack.c.h.b16 %v2029
        %v2624 = vunpack.c.l.b16 %v2030
        %v2625 = vunpack.c.l.b16 %v2031
        %v2626 = vunpack.c.h.b16 %v2030
        %v2627 = vunpack.c.h.b16 %v2031
        %v2628 = vunpack.c.l.b16 %v2032
        %v2629 = vunpack.c.l.b16 %v2033
        %v2630 = vunpack.c.h.b16 %v2032
        %v2631 = vunpack.c.h.b16 %v2033
        %v2632 = vunpack.c.l.b16 %v2034
        %v2633 = vunpack.c.l.b16 %v2035
        %v2634 = vunpack.c.h.b16 %v2034
        %v2635 = vunpack.c.h.b16 %v2035
        %v2636 = vunpack.c.l.b16 %v2036
        %v2637 = vunpack.c.l.b16 %v2037
        %v2638 = vunpack.c.h.b16 %v2036
        %v2639 = vunpack.c.h.b16 %v2037
        %v2640 = vunpack.c.l.b16 %v2038
        %v2641 = vunpack.c.l.b16 %v2039
        %v2642 = vunpack.c.h.b16 %v2038
        %v2643 = vunpack.c.h.b16 %v2039
        %v2644 = vunpack.c.l.b16 %v2040
        %v2645 = vunpack.c.l.b16 %v2041
        %v2646 = vunpack.c.h.b16 %v2040
        %v2647 = vunpack.c.h.b16 %v2041
        %v2648 = vunpack.c.l.b16 %v2042
        %v2649 = vunpack.c.l.b16 %v2043
        %v2650 = vunpack.c.h.b16 %v2042
        %v2651 = vunpack.c.h.b16 %v2043
        %v2652 = vunpack.c.l.b16 %v2044
        %v2653 = vunpack.c.l.b16 %v2045
        %v2654 = vunpack.c.h.b16 %v2044
        %v2655 = vunpack.c.h.b16 %v2045
        %v2656 = vunpack.c.l.b16 %v2046
        %v2657 = vunpack.c.l.b16 %v2047
        %v2658 = vunpack.c.h.b16 %v2046
        %v2659 = vunpack.c.h.b16 %v2047
        %v2660 = vunpack.c.l.b16 %v2048
        %v2661 = vunpack.c.l.b16 %v2049
        %v2662 = vunpack.c.h.b16 %v2048
        %v2663 = vunpack.c.h.b16 %v2049
        %v2664 = vunpack.c.l.b16 %v2050
        %v2665 = vunpack.c.l.b16 %v2051
        %v2666 = vunpack.c.h.b16 %v2050
        %v2667 = vunpack.c.h.b16 %v2051
        %v2668 = vunpack.c.l.b16 %v2052
        %v2669 = vunpack.c.l.b16 %v2053
        %v2670 = vunpack.c.h.b16 %v2052
        %v2671 = vunpack.c.h.b16 %v2053
        %v2672 = vunpack.c.l.b16 %v2054
        %v2673 = vunpack.c.l.b16 %v2055
        %v2674 = vunpack.c.h.b16 %v2054
        %v2675 = vunpack.c.h.b16 %v2055
        %v2676 = vunpack.c.l.b16 %v2056
        %v2677 = vunpack.c.l.b16 %v2057
        %v2678 = vunpack.c.h.b16 %v2056
        %v2679 = vunpack.c.h.b16 %v2057
        %v2680 = vunpack.c.l.b16 %v2058
        %v2681 = vunpack.c.l.b16 %v2059
        %v2682 = vpack.c.b16 %v2269, %v2268
        %v2683 = vpack.c.b16 %v2271, %v2270
        %v2684 = vpack.c.b16 %v2273, %v2272
        %v2685 = vpack.c.b16 %v2275, %v2274
        %v2686 = vpack.c.b16 %v2277, %v2276
        %v2687 = vpack.c.b16 %v2279, %v2278
        %v2688 = vpack.c.b16 %v2281, %v2280
        %v2689 = vpack.c.b16 %v2283, %v2282
        %v2690 = vpack.c.b16 %v2285, %v2284
        %v2691 = vpack.c.b16 %v2287, %v2286
        %v2692 = vpack.c.b16 %v2289, %v2288
        %v2693 = vpack.c.b16 %v2291, %v2290
        %v2694 = vpack.c.b16 %v2293, %v2292
        %v2695 = vpack.c.b16 %v2295, %v2294
        %v2696 = vpack.c.b16 %v2297, %v2296
        %v2697 = vpack.c.b16 %v2299, %v2298
        %v2698 = vpack.c.b16 %v2301, %v2300
        %v2699 = vpack.c.b16 %v2303, %v2302
        %v2700 = vpack.c.b16 %v2305, %v2304
        %v2701 = vpack.c.b16 %v2307, %v2306
        %v2702 = vpack.c.b16 %v2309, %v2308
        %v2703 = vpack.c.b16 %v2311, %v2310
        %v2704 = vpack.c.b16 %v2313, %v2312
        %v2705 = vpack.c.b16 %v2315, %v2314
        %v2706 = vpack.c.b16 %v2317, %v2316
        %v2707 = vpack.c.b16 %v2319, %v2318
        %v2708 = vpack.c.b16 %v2321, %v2320
        %v2709 = vpack.c.b16 %v2323, %v2322
        %v2710 = vpack.c.b16 %v2325, %v2324
        %v2711 = vpack.c.b16 %v2327, %v2326
        %v2712 = vpack.c.b16 %v2329, %v2328
        %v2713 = vpack.c.b16 %v2331, %v2330
        %v2714 = vpack.c.b16 %v2333, %v2332
        %v2715 = vpack.c.b16 %v2335, %v2334
        %v2716 = vpack.c.b16 %v2337, %v2336
        %v2717 = vpack.c.b16 %v2339, %v2338
        %v2718 = vpack.c.b16 %v2341, %v2340
        %v2719 = vpack.c.b16 %v2343, %v2342
        %v2720 = vpack.c.b16 %v2345, %v2344
        %v2721 = vpack.c.b16 %v2347, %v2346
        %v2722 = vpack.c.b16 %v2349, %v2348
        %v2723 = vpack.c.b16 %v2351, %v2350
        %v2724 = vpack.c.b16 %v2353, %v2352
        %v2725 = vpack.c.b16 %v2355, %v2354
        %v2726 = vpack.c.b16 %v2357, %v2356
        %v2727 = vpack.c.b16 %v2359, %v2358
        %v2728 = vpack.c.b16 %v2361, %v2360
        %v2729 = vpack.c.b16 %v2363, %v2362
        %v2730 = vpack.c.b16 %v2365, %v2364
        %v2731 = vpack.c.b16 %v2367, %v2366
        %v2732 = vpack.c.b16 %v2369, %v2368
        %v2733 = vpack.c.b16 %v2371, %v2370
        %v2734 = vpack.c.b16 %v2373, %v2372
        %v2735 = vpack.c.b16 %v2375, %v2374
        %v2736 = vpack.c.b16 %v2377, %v2376
        %v2737 = vpack.c.b16 %v2379, %v2378
        %v2738 = vpack.c.b16 %v2381, %v2380
        %v2739 = vpack.c.b16 %v2383, %v2382
        %v2740 = vpack.c.b16 %v2385, %v2384
        %v2741 = vpack.c.b16 %v2387, %v2386
        %v2742 = vpack.c.b16 %v2389, %v2388
        %v2743 = vpack.c.b16 %v2391, %v2390
        %v2744 = vpack.c.b16 %v2393, %v2392
        %v2745 = vpack.c.b16 %v2395, %v2394
        %v2746 = vpack.c.b16 %v2397, %v2396
        %v2747 = vpack.c.b16 %v2399, %v2398
        %v2748 = vpack.c.b16 %v2401, %v2400
        %v2749 = vpack.c.b16 %v2403, %v2402
        %v2750 = vpack.c.b16 %v2405, %v2404
        %v2751 = vpack.c.b16 %v2407, %v2406
        %v2752 = vpack.c.b16 %v2409, %v2408
        %v2753 = vpack.c.b16 %v2411, %v2410
        %v2754 = vpack.c.b16 %v2413, %v2412
        %v2755 = vpack.c.b16 %v2415, %v2414
        %v2756 = vpack.c.b16 %v2417, %v2416
        %v2757 = vpack.c.b16 %v2419, %v2418
        %v2758 = vpack.c.b16 %v2421, %v2420
        %v2759 = vpack.c.b16 %v2423, %v2422
        %v2760 = vpack.c.b16 %v2425, %v2424
        %v2761 = vpack.c.b16 %v2427, %v2426
        %v2762 = vpack.c.b16 %v2429, %v2428
        %v2763 = vpack.c.b16 %v2431, %v2430
        %v2764 = vpack.c.b16 %v2433, %v2432
        %v2765 = vpack.c.b16 %v2435, %v2434
        %v2766 = vpack.c.b16 %v2437, %v2436
        %v2767 = vpack.c.b16 %v2439, %v2438
        %v2768 = vpack.c.b16 %v2441, %v2440
        %v2769 = vpack.c.b16 %v2443, %v2442
        %v2770 = vpack.c.b16 %v2445, %v2444
        %v2771 = vpack.c.b16 %v2447, %v2446
        %v2772 = vpack.c.b16 %v2449, %v2448
        %v2773 = vpack.c.b16 %v2451, %v2450
        %v2774 = vpack.c.b16 %v2453, %v2452
        %v2775 = vpack.c.b16 %v2455, %v2454
        %v2776 = vpack.c.b16 %v2457, %v2456
        %v2777 = vpack.c.b16 %v2459, %v2458
        %v2778 = vpack.c.b16 %v2461, %v2460
        %v2779 = vpack.c.b16 %v2463, %v2462
        %v2780 = vpack.c.b16 %v2465, %v2464
        %v2781 = vpack.c.b16 %v2467, %v2466
        %v2782 = vpack.c.b16 %v2469, %v2468
        %v2783 = vpack.c.b16 %v2471, %v2470
        %v2784 = vpack.c.b16 %v2473, %v2472
        %v2785 = vpack.c.b16 %v2475, %v2474
        %v2786 = vpack.c.b16 %v2477, %v2476
        %v2787 = vpack.c.b16 %v2479, %v2478
        %v2788 = vpack.c.b16 %v2481, %v2480
        %v2789 = vpack.c.b16 %v2483, %v2482
        %v2790 = vpack.c.b16 %v2485, %v2484
        %v2791 = vpack.c.b16 %v2487, %v2486
        %v2792 = vpack.c.b16 %v2489, %v2488
        %v2793 = vpack.c.b16 %v2491, %v2490
        %v2794 = vpack.c.b16 %v2493, %v2492
        %v2795 = vpack.c.b16 %v2495, %v2494
        %v2796 = vpack.c.b16 %v2497, %v2496
        %v2797 = vpack.c.b16 %v2499, %v2498
        %v2798 = vpack.c.b16 %v2501, %v2500
        %v2799 = vpack.c.b16 %v2503, %v2502
        %v2800 = vpack.c.b16 %v2505, %v2504
        %v2801 = vpack.c.b16 %v2507, %v2506
        %v2802 = vpack.c.b16 %v2509, %v2508
        %v2803 = vpack.c.b16 %v2511, %v2510
        %v2804 = vpack.c.b16 %v2513, %v2512
        %v2805 = vpack.c.b16 %v2515, %v2514
        %v2806 = vpack.c.b16 %v2517, %v2516
        %v2807 = vpack.c.b16 %v2519, %v2518
        %v2808 = vpack.c.b16 %v2521, %v2520
        %v2809 = vpack.c.b16 %v2523, %v2522
        %v2810 = vpack.c.b16 %v2525, %v2524
        %v2811 = vpack.c.b16 %v2527, %v2526
        %v2812 = vpack.c.b16 %v2529, %v2528
        %v2813 = vpack.c.b16 %v2531, %v2530
        %v2814 = vpack.c.b16 %v2533, %v2532
        %v2815 = vpack.c.b16 %v2535, %v2534
        %v2816 = vpack.c.b16 %v2537, %v2536
        %v2817 = vpack.c.b16 %v2539, %v2538
        %v2818 = vpack.c.b16 %v2541, %v2540
        %v2819 = vpack.c.b16 %v2543, %v2542
        %v2820 = vpack.c.b16 %v2545, %v2544
        %v2821 = vpack.c.b16 %v2547, %v2546
        %v2822 = vpack.c.b16 %v2549, %v2548
        %v2823 = vpack.c.b16 %v2551, %v2550
        %v2824 = vpack.c.b16 %v2553, %v2552
        %v2825 = vpack.c.b16 %v2555, %v2554
        %v2826 = vpack.c.b16 %v2557, %v2556
        %v2827 = vpack.c.b16 %v2559, %v2558
        %v2828 = vpack.c.b16 %v2561, %v2560
        %v2829 = vpack.c.b16 %v2563, %v2562
        %v2830 = vpack.c.b16 %v2565, %v2564
        %v2831 = vpack.c.b16 %v2567, %v2566
        %v2832 = vpack.c.b16 %v2569, %v2568
        %v2833 = vpack.c.b16 %v2571, %v2570
        %v2834 = vpack.c.b16 %v2573, %v2572
        %v2835 = vpack.c.b16 %v2575, %v2574
        %v2836 = vpack.c.b16 %v2577, %v2576
        %v2837 = vpack.c.b16 %v2579, %v2578
        %v2838 = vpack.c.b16 %v2581, %v2580
        %v2839 = vpack.c.b16 %v2583, %v2582
        %v2840 = vpack.c.b16 %v2585, %v2584
        %v2841 = vpack.c.b16 %v2587, %v2586
        %v2842 = vpack.c.b16 %v2589, %v2588
        %v2843 = vpack.c.b16 %v2591, %v2590
        %v2844 = vpack.c.b16 %v2593, %v2592
        %v2845 = vpack.c.b16 %v2595, %v2594
        %v2846 = vpack.c.b16 %v2597, %v2596
        %v2847 = vpack.c.b16 %v2599, %v2598
        %v2848 = vpack.c.b16 %v2601, %v2600
        %v2849 = vpack.c.b16 %v2603, %v2602
        %v2850 = vpack.c.b16 %v2605, %v2604
        %v2851 = vpack.c.b16 %v2607, %v2606
        %v2852 = vpack.c.b16 %v2609, %v2608
        %v2853 = vpack.c.b16 %v2611, %v2610
        %v2854 = vpack.c.b16 %v2613, %v2612
        %v2855 = vpack.c.b16 %v2615, %v2614
        %v2856 = vpack.c.b16 %v2617, %v2616
        %v2857 = vpack.c.b16 %v2619, %v2618
        %v2858 = vpack.c.b16 %v2621, %v2620
        %v2859 = vpack.c.b16 %v2623, %v2622
        %v2860 = vpack.c.b16 %v2625, %v2624
        %v2861 = vpack.c.b16 %v2627, %v2626
        %v2862 = vpack.c.b16 %v2629, %v2628
        %v2863 = vpack.c.b16 %v2631, %v2630
        %v2864 = vpack.c.b16 %v2633, %v2632
        %v2865 = vpack.c.b16 %v2635, %v2634
        %v2866 = vpack.c.b16 %v2637, %v2636
        %v2867 = vpack.c.b16 %v2639, %v2638
        %v2868 = vpack.c.b16 %v2641, %v2640
        %v2869 = vpack.c.b16 %v2643, %v2642
        %v2870 = vpack.c.b16 %v2645, %v2644
        %v2871 = vpack.c.b16 %v2647, %v2646
        %v2872 = vpack.c.b16 %v2649, %v2648
        %v2873 = vpack.c.b16 %v2651, %v2650
        %v2874 = vpack.c.b16 %v2653, %v2652
        %v2875 = vpack.c.b16 %v2655, %v2654
        %v2876 = vpack.c.b16 %v2657, %v2656
        %v2877 = vpack.c.b16 %v2659, %v2658
        %v2878 = vpack.c.b16 %v2661, %v2660
        %v2879 = vpack.c.b16 %v2663, %v2662
        %v2880 = vpack.c.b16 %v2665, %v2664
        %v2881 = vpack.c.b16 %v2667, %v2666
        %v2882 = vpack.c.b16 %v2669, %v2668
        %v2883 = vpack.c.b16 %v2671, %v2670
        %v2884 = vpack.c.b16 %v2673, %v2672
        %v2885 = vpack.c.b16 %v2675, %v2674
        %v2886 = vpack.c.b16 %v2677, %v2676
        %v2887 = vpack.c.b16 %v2679, %v2678
        %v2888 = vpack.c.b16 %v2681, %v2680
        %3096 = vst [vmem:[%s165] sm:$0xff] %v2682
        %3097 = vst [vmem:[%s165 + $0x8] sm:$0xff] %v2683
        %3098 = vst [vmem:[%s165 + $0x10] sm:$0xff] %v2684
        %3099 = vst [vmem:[%s165 + $0x18] sm:$0xff] %v2685
        %3100 = vst [vmem:[%s165 + $0x20] sm:$0xff] %v2686
        %3101 = vst [vmem:[%s165 + $0x28] sm:$0xff] %v2687
        %3102 = vst [vmem:[%s165 + $0x30] sm:$0xff] %v2688
        %3103 = vst [vmem:[%s165 + $0x38] sm:$0xff] %v2689
        %3104 = vst [vmem:[%s165 + $0x40] sm:$0xff] %v2690
        %3105 = vst [vmem:[%s165 + $0x48] sm:$0xff] %v2691
        %3106 = vst [vmem:[%s165 + $0x50] sm:$0xff] %v2692
        %3107 = vst [vmem:[%s165 + $0x58] sm:$0xff] %v2693
        %3108 = vst [vmem:[%s165 + $0x60] sm:$0xff] %v2694
        %3109 = vst [vmem:[%s165 + $0x68] sm:$0xff] %v2695
        %3110 = vst [vmem:[%s165 + $0x70] sm:$0xff] %v2696
        %3111 = vst [vmem:[%s165 + $0x78] sm:$0xff] %v2697
        %3112 = vst [vmem:[%s165 + $0x80] sm:$0xff] %v2698
        %3113 = vst [vmem:[%s165 + $0x88] sm:$0xff] %v2699
        %3114 = vst [vmem:[%s165 + $0x90] sm:$0xff] %v2700
        %3115 = vst [vmem:[%s165 + $0x98] sm:$0xff] %v2701
        %3116 = vst [vmem:[%s165 + $0xa0] sm:$0xff] %v2702
        %3117 = vst [vmem:[%s165 + $0xa8] sm:$0xff] %v2703
        %3118 = vst [vmem:[%s165 + $0xb0] sm:$0xff] %v2704
        %3119 = vst [vmem:[%s165 + $0xb8] sm:$0xff] %v2705
        %3120 = vst [vmem:[%s165 + $0xc0] sm:$0xff] %v2706
        %3121 = vst [vmem:[%s165 + $0xc8] sm:$0xff] %v2707
        %3122 = vst [vmem:[%s165 + $0xd0] sm:$0xff] %v2708
        %3123 = vst [vmem:[%s165 + $0xd8] sm:$0xff] %v2709
        %3124 = vst [vmem:[%s165 + $0xe0] sm:$0xff] %v2710
        %3125 = vst [vmem:[%s165 + $0xe8] sm:$0xff] %v2711
        %3126 = vst [vmem:[%s165 + $0xf0] sm:$0xff] %v2712
        %3127 = vst [vmem:[%s165 + $0xf8] sm:$0xff] %v2713
        %3128 = vst [vmem:[%s165 + $0x100] sm:$0xff] %v2714
        %3129 = vst [vmem:[%s165 + $0x108] sm:$0xff] %v2715
        %3130 = vst [vmem:[%s165 + $0x110] sm:$0xff] %v2716
        %3131 = vst [vmem:[%s165 + $0x118] sm:$0xff] %v2717
        %3132 = vst [vmem:[%s165 + $0x120] sm:$0xff] %v2718
        %3133 = vst [vmem:[%s165 + $0x128] sm:$0xff] %v2719
        %3134 = vst [vmem:[%s165 + $0x130] sm:$0xff] %v2720
        %3135 = vst [vmem:[%s165 + $0x138] sm:$0xff] %v2721
        %3136 = vst [vmem:[%s165 + $0x140] sm:$0xff] %v2722
        %3137 = vst [vmem:[%s165 + $0x148] sm:$0xff] %v2723
        %3138 = vst [vmem:[%s165 + $0x150] sm:$0xff] %v2724
        %3139 = vst [vmem:[%s165 + $0x158] sm:$0xff] %v2725
        %3140 = vst [vmem:[%s165 + $0x160] sm:$0xff] %v2726
        %3141 = vst [vmem:[%s165 + $0x168] sm:$0xff] %v2727
        %3142 = vst [vmem:[%s165 + $0x170] sm:$0xff] %v2728
        %3143 = vst [vmem:[%s165 + $0x178] sm:$0xff] %v2729
        %3144 = vst [vmem:[%s165 + $0x180] sm:$0xff] %v2730
        %3145 = vst [vmem:[%s165 + $0x188] sm:$0xff] %v2731
        %3146 = vst [vmem:[%s165 + $0x190] sm:$0xff] %v2732
        %3147 = vst [vmem:[%s165 + $0x198] sm:$0xff] %v2733
        %3148 = vst [vmem:[%s165 + $0x1a0] sm:$0xff] %v2734
        %3149 = vst [vmem:[%s165 + $0x1a8] sm:$0xff] %v2735
        %3150 = vst [vmem:[%s165 + $0x1b0] sm:$0xff] %v2736
        %3151 = vst [vmem:[%s165 + $0x1b8] sm:$0xff] %v2737
        %3152 = vst [vmem:[%s165 + $0x1c0] sm:$0xff] %v2738
        %3153 = vst [vmem:[%s165 + $0x1c8] sm:$0xff] %v2739
        %3154 = vst [vmem:[%s165 + $0x1d0] sm:$0xff] %v2740
        %3155 = vst [vmem:[%s165 + $0x1d8] sm:$0xff] %v2741
        %3156 = vst [vmem:[%s165 + $0x1e0] sm:$0xff] %v2742
        %3157 = vst [vmem:[%s165 + $0x1e8] sm:$0xff] %v2743
        %3158 = vst [vmem:[%s165 + $0x1f0] sm:$0xff] %v2744
        %3159 = vst [vmem:[%s165 + $0x1f8] sm:$0xff] %v2745
        %3160 = vst [vmem:[%s165 + $0x200] sm:$0xff] %v2746
        %3161 = vst [vmem:[%s165 + $0x208] sm:$0xff] %v2747
        %3162 = vst [vmem:[%s165 + $0x210] sm:$0xff] %v2748
        %3163 = vst [vmem:[%s165 + $0x218] sm:$0xff] %v2749
        %3164 = vst [vmem:[%s165 + $0x220] sm:$0xff] %v2750
        %3165 = vst [vmem:[%s165 + $0x228] sm:$0xff] %v2751
        %3166 = vst [vmem:[%s165 + $0x230] sm:$0xff] %v2752
        %3167 = vst [vmem:[%s165 + $0x238] sm:$0xff] %v2753
        %3168 = vst [vmem:[%s165 + $0x240] sm:$0xff] %v2754
        %3169 = vst [vmem:[%s165 + $0x248] sm:$0xff] %v2755
        %3170 = vst [vmem:[%s165 + $0x250] sm:$0xff] %v2756
        %3171 = vst [vmem:[%s165 + $0x258] sm:$0xff] %v2757
        %3172 = vst [vmem:[%s165 + $0x260] sm:$0xff] %v2758
        %3173 = vst [vmem:[%s165 + $0x268] sm:$0xff] %v2759
        %3174 = vst [vmem:[%s165 + $0x270] sm:$0xff] %v2760
        %3175 = vst [vmem:[%s165 + $0x278] sm:$0xff] %v2761
        %3176 = vst [vmem:[%s165 + $0x280] sm:$0xff] %v2762
        %3177 = vst [vmem:[%s165 + $0x288] sm:$0xff] %v2763
        %3178 = vst [vmem:[%s165 + $0x290] sm:$0xff] %v2764
        %3179 = vst [vmem:[%s165 + $0x298] sm:$0xff] %v2765
        %3180 = vst [vmem:[%s165 + $0x2a0] sm:$0xff] %v2766
        %3181 = vst [vmem:[%s165 + $0x2a8] sm:$0xff] %v2767
        %3182 = vst [vmem:[%s165 + $0x2b0] sm:$0xff] %v2768
        %3183 = vst [vmem:[%s165 + $0x2b8] sm:$0xff] %v2769
        %3184 = vst [vmem:[%s165 + $0x2c0] sm:$0xff] %v2770
        %3185 = vst [vmem:[%s165 + $0x2c8] sm:$0xff] %v2771
        %3186 = vst [vmem:[%s165 + $0x2d0] sm:$0xff] %v2772
        %3187 = vst [vmem:[%s165 + $0x2d8] sm:$0xff] %v2773
        %3188 = vst [vmem:[%s165 + $0x2e0] sm:$0xff] %v2774
        %3189 = vst [vmem:[%s165 + $0x2e8] sm:$0xff] %v2775
        %3190 = vst [vmem:[%s165 + $0x2f0] sm:$0xff] %v2776
        %3191 = vst [vmem:[%s165 + $0x2f8] sm:$0xff] %v2777
        %3192 = vst [vmem:[%s165 + $0x300] sm:$0xff] %v2778
        %3193 = vst [vmem:[%s165 + $0x308] sm:$0xff] %v2779
        %3194 = vst [vmem:[%s165 + $0x310] sm:$0xff] %v2780
        %3195 = vst [vmem:[%s165 + $0x318] sm:$0xff] %v2781
        %3196 = vst [vmem:[%s165 + $0x320] sm:$0xff] %v2782
        %3197 = vst [vmem:[%s165 + $0x328] sm:$0xff] %v2783
        %3198 = vst [vmem:[%s165 + $0x330] sm:$0xff] %v2784
        %3199 = vst [vmem:[%s165 + $0x338] sm:$0xff] %v2785
        %3200 = vst [vmem:[%s165 + $0x340] sm:$0xff] %v2786
        %3201 = vst [vmem:[%s165 + $0x348] sm:$0xff] %v2787
        %3202 = vst [vmem:[%s165 + $0x350] sm:$0xff] %v2788
        %3203 = vst [vmem:[%s165 + $0x358] sm:$0xff] %v2789
        %3204 = vst [vmem:[%s165 + $0x360] sm:$0xff] %v2790
        %3205 = vst [vmem:[%s165 + $0x368] sm:$0xff] %v2791
        %3206 = vst [vmem:[%s165 + $0x370] sm:$0xff] %v2792
        %3207 = vst [vmem:[%s165 + $0x378] sm:$0xff] %v2793
        %3208 = vst [vmem:[%s165 + $0x380] sm:$0xff] %v2794
        %3209 = vst [vmem:[%s165 + $0x388] sm:$0xff] %v2795
        %3210 = vst [vmem:[%s165 + $0x390] sm:$0xff] %v2796
        %3211 = vst [vmem:[%s165 + $0x398] sm:$0xff] %v2797
        %3212 = vst [vmem:[%s165 + $0x3a0] sm:$0xff] %v2798
        %3213 = vst [vmem:[%s165 + $0x3a8] sm:$0xff] %v2799
        %3214 = vst [vmem:[%s165 + $0x3b0] sm:$0xff] %v2800
        %3215 = vst [vmem:[%s165 + $0x3b8] sm:$0xff] %v2801
        %3216 = vst [vmem:[%s165 + $0x3c0] sm:$0xff] %v2802
        %3217 = vst [vmem:[%s165 + $0x3c8] sm:$0xff] %v2803
        %3218 = vst [vmem:[%s165 + $0x3d0] sm:$0xff] %v2804
        %3219 = vst [vmem:[%s165 + $0x3d8] sm:$0xff] %v2805
        %3220 = vst [vmem:[%s165 + $0x3e0] sm:$0xff] %v2806
        %3221 = vst [vmem:[%s165 + $0x3e8] sm:$0xff] %v2807
        %3222 = vst [vmem:[%s165 + $0x3f0] sm:$0xff] %v2808
        %3223 = vst [vmem:[%s165 + $0x3f8] sm:$0xff] %v2809
        %3224 = vst [vmem:[%s165 + $0x400] sm:$0xff] %v2810
        %3225 = vst [vmem:[%s165 + $0x408] sm:$0xff] %v2811
        %3226 = vst [vmem:[%s165 + $0x410] sm:$0xff] %v2812
        %3227 = vst [vmem:[%s165 + $0x418] sm:$0xff] %v2813
        %3228 = vst [vmem:[%s165 + $0x420] sm:$0xff] %v2814
        %3229 = vst [vmem:[%s165 + $0x428] sm:$0xff] %v2815
        %3230 = vst [vmem:[%s165 + $0x430] sm:$0xff] %v2816
        %3231 = vst [vmem:[%s165 + $0x438] sm:$0xff] %v2817
        %3232 = vst [vmem:[%s165 + $0x440] sm:$0xff] %v2818
        %3233 = vst [vmem:[%s165 + $0x448] sm:$0xff] %v2819
        %3234 = vst [vmem:[%s165 + $0x450] sm:$0xff] %v2820
        %3235 = vst [vmem:[%s165 + $0x458] sm:$0xff] %v2821
        %3236 = vst [vmem:[%s165 + $0x460] sm:$0xff] %v2822
        %3237 = vst [vmem:[%s165 + $0x468] sm:$0xff] %v2823
        %3238 = vst [vmem:[%s165 + $0x470] sm:$0xff] %v2824
        %3239 = vst [vmem:[%s165 + $0x478] sm:$0xff] %v2825
        %3240 = vst [vmem:[%s165 + $0x480] sm:$0xff] %v2826
        %3241 = vst [vmem:[%s165 + $0x488] sm:$0xff] %v2827
        %3242 = vst [vmem:[%s165 + $0x490] sm:$0xff] %v2828
        %3243 = vst [vmem:[%s165 + $0x498] sm:$0xff] %v2829
        %3244 = vst [vmem:[%s165 + $0x4a0] sm:$0xff] %v2830
        %3245 = vst [vmem:[%s165 + $0x4a8] sm:$0xff] %v2831
        %3246 = vst [vmem:[%s165 + $0x4b0] sm:$0xff] %v2832
        %3247 = vst [vmem:[%s165 + $0x4b8] sm:$0xff] %v2833
        %3248 = vst [vmem:[%s165 + $0x4c0] sm:$0xff] %v2834
        %3249 = vst [vmem:[%s165 + $0x4c8] sm:$0xff] %v2835
        %3250 = vst [vmem:[%s165 + $0x4d0] sm:$0xff] %v2836
        %3251 = vst [vmem:[%s165 + $0x4d8] sm:$0xff] %v2837
        %3252 = vst [vmem:[%s165 + $0x4e0] sm:$0xff] %v2838
        %3253 = vst [vmem:[%s165 + $0x4e8] sm:$0xff] %v2839
        %3254 = vst [vmem:[%s165 + $0x4f0] sm:$0xff] %v2840
        %3255 = vst [vmem:[%s165 + $0x4f8] sm:$0xff] %v2841
        %3256 = vst [vmem:[%s165 + $0x500] sm:$0xff] %v2842
        %3257 = vst [vmem:[%s165 + $0x508] sm:$0xff] %v2843
        %3258 = vst [vmem:[%s165 + $0x510] sm:$0xff] %v2844
        %3259 = vst [vmem:[%s165 + $0x518] sm:$0xff] %v2845
        %3260 = vst [vmem:[%s165 + $0x520] sm:$0xff] %v2846
        %3261 = vst [vmem:[%s165 + $0x528] sm:$0xff] %v2847
        %3262 = vst [vmem:[%s165 + $0x530] sm:$0xff] %v2848
        %3263 = vst [vmem:[%s165 + $0x538] sm:$0xff] %v2849
        %3264 = vst [vmem:[%s165 + $0x540] sm:$0xff] %v2850
        %3265 = vst [vmem:[%s165 + $0x548] sm:$0xff] %v2851
        %3266 = vst [vmem:[%s165 + $0x550] sm:$0xff] %v2852
        %3267 = vst [vmem:[%s165 + $0x558] sm:$0xff] %v2853
        %3268 = vst [vmem:[%s165 + $0x560] sm:$0xff] %v2854
        %3269 = vst [vmem:[%s165 + $0x568] sm:$0xff] %v2855
        %3270 = vst [vmem:[%s165 + $0x570] sm:$0xff] %v2856
        %3271 = vst [vmem:[%s165 + $0x578] sm:$0xff] %v2857
        %3272 = vst [vmem:[%s165 + $0x580] sm:$0xff] %v2858
        %3273 = vst [vmem:[%s165 + $0x588] sm:$0xff] %v2859
        %3274 = vst [vmem:[%s165 + $0x590] sm:$0xff] %v2860
        %3275 = vst [vmem:[%s165 + $0x598] sm:$0xff] %v2861
        %3276 = vst [vmem:[%s165 + $0x5a0] sm:$0xff] %v2862
        %3277 = vst [vmem:[%s165 + $0x5a8] sm:$0xff] %v2863
        %3278 = vst [vmem:[%s165 + $0x5b0] sm:$0xff] %v2864
        %3279 = vst [vmem:[%s165 + $0x5b8] sm:$0xff] %v2865
        %3280 = vst [vmem:[%s165 + $0x5c0] sm:$0xff] %v2866
        %3281 = vst [vmem:[%s165 + $0x5c8] sm:$0xff] %v2867
        %3282 = vst [vmem:[%s165 + $0x5d0] sm:$0xff] %v2868
        %3283 = vst [vmem:[%s165 + $0x5d8] sm:$0xff] %v2869
        %3284 = vst [vmem:[%s165 + $0x5e0] sm:$0xff] %v2870
        %3285 = vst [vmem:[%s165 + $0x5e8] sm:$0xff] %v2871
        %3286 = vst [vmem:[%s165 + $0x5f0] sm:$0xff] %v2872
        %3287 = vst [vmem:[%s165 + $0x5f8] sm:$0xff] %v2873
        %3288 = vst [vmem:[%s165 + $0x600] sm:$0xff] %v2874
        %3289 = vst [vmem:[%s165 + $0x608] sm:$0xff] %v2875
        %3290 = vst [vmem:[%s165 + $0x610] sm:$0xff] %v2876
        %3291 = vst [vmem:[%s165 + $0x618] sm:$0xff] %v2877
        %3292 = vst [vmem:[%s165 + $0x620] sm:$0xff] %v2878
        %3293 = vst [vmem:[%s165 + $0x628] sm:$0xff] %v2879
        %3294 = vst [vmem:[%s165 + $0x630] sm:$0xff] %v2880
        %3295 = vst [vmem:[%s165 + $0x638] sm:$0xff] %v2881
        %3296 = vst [vmem:[%s165 + $0x640] sm:$0xff] %v2882
        %3297 = vst [vmem:[%s165 + $0x648] sm:$0xff] %v2883
        %3298 = vst [vmem:[%s165 + $0x650] sm:$0xff] %v2884
        %3299 = vst [vmem:[%s165 + $0x658] sm:$0xff] %v2885
        %3300 = vst [vmem:[%s165 + $0x660] sm:$0xff] %v2886
        %3301 = vst [vmem:[%s165 + $0x668] sm:$0xff] %v2887
        %3302 = vst [vmem:[%s165 + $0x670] sm:$0xff] %v2888
        %s3303 = scalar_lea.vmem %s158, 16
        %v3304 = vld [vmem:[%s3303] sm:$0xff]
        %v3305 = vld [vmem:[%s3303 + $0x8] sm:$0xff]
        %v3308 = vunpack.c.l.b16 %v3304
        %v3309 = vunpack.c.h.b16 %v3304
        %v3310 = vunpack.c.l.b16 %v3305
        %v3311 = vunpack.c.h.b16 %v3305
        %v3312 = vpack.c.b16 %v3310, %v3308
        %v3313 = vpack.c.b16 %v3311, %v3309
        %3316 = vmatprep.subr.bf16.mxu0 %v3313
        %3317 = vmatpush1.bf16.msra.mxu0 %v3312
        %3318 = vmatprep.subr.bf16.mxu0 0
        %3319 = vmatpush1.bf16.msra.mxu0 0
        %3320 = vmatprep.subr.bf16.mxu0 0
        %3321 = vmatpush1.bf16.msra.mxu0 0
        %3322 = vmatprep.subr.bf16.mxu0 0
        %3323 = vmatpush1.bf16.msra.mxu0 0
        %3324 = vmatprep.subr.bf16.mxu0 0
        %3325 = vmatpush1.bf16.msra.mxu0 0
        %3326 = vmatprep.subr.bf16.mxu0 0
        %3327 = vmatpush1.bf16.msra.mxu0 0
        %3328 = vmatprep.subr.bf16.mxu0 0
        %3329 = vmatpush1.bf16.msra.mxu0 0
        %3330 = vmatprep.subr.bf16.mxu0 0
        %3331 = vmatpush1.bf16.msra.mxu0 0
        %3332 = vmatprep.subr.bf16.mxu0 0
        %3333 = vmatpush1.bf16.msra.mxu0 0
        %3334 = vmatprep.subr.bf16.mxu0 0
        %3335 = vmatpush1.bf16.msra.mxu0 0
        %3336 = vmatprep.subr.bf16.mxu0 0
        %3337 = vmatpush1.bf16.msra.mxu0 0
        %3338 = vmatprep.subr.bf16.mxu0 0
        %3339 = vmatpush1.bf16.msra.mxu0 0
        %3340 = vmatprep.subr.bf16.mxu0 0
        %3341 = vmatpush1.bf16.msra.mxu0 0
        %3342 = vmatprep.subr.bf16.mxu0 0
        %3343 = vmatpush1.bf16.msra.mxu0 0
        %3344 = vmatprep.subr.bf16.mxu0 0
        %3345 = vmatpush1.bf16.msra.mxu0 0
        %3346 = vmatprep.subr.bf16.mxu0 0
        %3347 = vmatpush1.bf16.msra.mxu0 0
        %3348 = vmatprep.mubr.bf16.mxu0 0
        %3349 = vmatmul.mubr.bf16.gmra.mrb[0].mxu0 %v470
        %v3350 = vpop.f32.mrb[0].mxu0
        %v3351 = vadd.f32 0.0, %v3350
        %v3352 = vpop.f32.mrb[0].mxu0
        %v3353 = vadd.f32 0.0, %v3352
        %v3354 = vpop.f32.mrb[0].mxu0
        %v3355 = vadd.f32 0.0, %v3354
        %v3356 = vpop.f32.mrb[0].mxu0
        %v3357 = vadd.f32 0.0, %v3356
        %3358 = vmatprep.mubr.bf16.mxu0 0
        %3359 = vmatmul.mubr.bf16.gmra.mrb[0].mxu0 %v473
        %v3360 = vpop.f32.mrb[0].mxu0
        %v3361 = vadd.f32 0.0, %v3360
        %v3362 = vpop.f32.mrb[0].mxu0
        %v3363 = vadd.f32 0.0, %v3362
        %v3364 = vpop.f32.mrb[0].mxu0
        %v3365 = vadd.f32 0.0, %v3364
        %v3366 = vpop.f32.mrb[0].mxu0
        %v3367 = vadd.f32 0.0, %v3366
        %3368 = vmatprep.mubr.bf16.mxu0 0
        %3369 = vmatmul.mubr.bf16.gmra.mrb[0].mxu0 %v476
        %v3370 = vpop.f32.mrb[0].mxu0
        %v3371 = vadd.f32 0.0, %v3370
        %v3372 = vpop.f32.mrb[0].mxu0
        %v3373 = vadd.f32 0.0, %v3372
        %v3374 = vpop.f32.mrb[0].mxu0
        %v3375 = vadd.f32 0.0, %v3374
        %v3376 = vpop.f32.mrb[0].mxu0
        %v3377 = vadd.f32 0.0, %v3376
        %3378 = vmatprep.mubr.bf16.mxu0 0
        %3379 = vmatmul.mubr.bf16.gmra.mrb[0].mxu0 %v479
        %v3380 = vpop.f32.mrb[0].mxu0
        %v3381 = vadd.f32 0.0, %v3380
        %v3382 = vpop.f32.mrb[0].mxu0
        %v3383 = vadd.f32 0.0, %v3382
        %v3384 = vpop.f32.mrb[0].mxu0
        %v3385 = vadd.f32 0.0, %v3384
        %v3386 = vpop.f32.mrb[0].mxu0
        %v3387 = vadd.f32 0.0, %v3386
        %3388 = vmatprep.mubr.bf16.mxu0 0
        %3389 = vmatmul.mubr.bf16.gmra.mrb[0].mxu0 %v482
        %v3390 = vpop.f32.mrb[0].mxu0
        %v3391 = vadd.f32 0.0, %v3390
        %v3392 = vpop.f32.mrb[0].mxu0
        %v3393 = vadd.f32 0.0, %v3392
        %v3394 = vpop.f32.mrb[0].mxu0
        %v3395 = vadd.f32 0.0, %v3394
        %v3396 = vpop.f32.mrb[0].mxu0
        %v3397 = vadd.f32 0.0, %v3396
        %3398 = vmatprep.mubr.bf16.mxu0 0
        %3399 = vmatmul.mubr.bf16.gmra.mrb[0].mxu0 %v485
        %v3400 = vpop.f32.mrb[0].mxu0
        %v3401 = vadd.f32 0.0, %v3400
        %v3402 = vpop.f32.mrb[0].mxu0
        %v3403 = vadd.f32 0.0, %v3402
        %v3404 = vpop.f32.mrb[0].mxu0
        %v3405 = vadd.f32 0.0, %v3404
        %v3406 = vpop.f32.mrb[0].mxu0
        %v3407 = vadd.f32 0.0, %v3406
        %3408 = vmatprep.mubr.bf16.mxu0 0
        %3409 = vmatmul.mubr.bf16.gmra.mrb[0].mxu0 %v488
        %v3410 = vpop.f32.mrb[0].mxu0
        %v3411 = vadd.f32 0.0, %v3410
        %v3412 = vpop.f32.mrb[0].mxu0
        %v3413 = vadd.f32 0.0, %v3412
        %v3414 = vpop.f32.mrb[0].mxu0
        %v3415 = vadd.f32 0.0, %v3414
        %v3416 = vpop.f32.mrb[0].mxu0
        %v3417 = vadd.f32 0.0, %v3416
        %3418 = vmatprep.mubr.bf16.mxu0 0
        %3419 = vmatmul.mubr.bf16.gmra.mrb[0].mxu0 %v491
        %v3420 = vpop.f32.mrb[0].mxu0
        %v3421 = vadd.f32 0.0, %v3420
        %v3422 = vpop.f32.mrb[0].mxu0
        %v3423 = vadd.f32 0.0, %v3422
        %v3424 = vpop.f32.mrb[0].mxu0
        %v3425 = vadd.f32 0.0, %v3424
        %v3426 = vpop.f32.mrb[0].mxu0
        %v3427 = vadd.f32 0.0, %v3426
        %3428 = vmatprep.mubr.bf16.mxu0 0
        %3429 = vmatmul.mubr.bf16.gmra.mrb[0].mxu0 %v494
        %v3430 = vpop.f32.mrb[0].mxu0
        %v3431 = vadd.f32 0.0, %v3430
        %v3432 = vpop.f32.mrb[0].mxu0
        %v3433 = vadd.f32 0.0, %v3432
        %v3434 = vpop.f32.mrb[0].mxu0
        %v3435 = vadd.f32 0.0, %v3434
        %v3436 = vpop.f32.mrb[0].mxu0
        %v3437 = vadd.f32 0.0, %v3436
        %3438 = vmatprep.mubr.bf16.mxu0 0
        %3439 = vmatmul.mubr.bf16.gmra.mrb[0].mxu0 %v497
        %v3440 = vpop.f32.mrb[0].mxu0
        %v3441 = vadd.f32 0.0, %v3440
        %v3442 = vpop.f32.mrb[0].mxu0
        %v3443 = vadd.f32 0.0, %v3442
        %v3444 = vpop.f32.mrb[0].mxu0
        %v3445 = vadd.f32 0.0, %v3444
        %v3446 = vpop.f32.mrb[0].mxu0
        %v3447 = vadd.f32 0.0, %v3446
        %3448 = vmatprep.mubr.bf16.mxu0 0
        %3449 = vmatmul.mubr.bf16.gmra.mrb[0].mxu0 %v500
        %v3450 = vpop.f32.mrb[0].mxu0
        %v3451 = vadd.f32 0.0, %v3450
        %v3452 = vpop.f32.mrb[0].mxu0
        %v3453 = vadd.f32 0.0, %v3452
        %v3454 = vpop.f32.mrb[0].mxu0
        %v3455 = vadd.f32 0.0, %v3454
        %v3456 = vpop.f32.mrb[0].mxu0
        %v3457 = vadd.f32 0.0, %v3456
        %3458 = vmatprep.mubr.bf16.mxu0 0
        %3459 = vmatmul.mubr.bf16.gmra.mrb[0].mxu0 %v503
        %v3460 = vpop.f32.mrb[0].mxu0
        %v3461 = vadd.f32 0.0, %v3460
        %v3462 = vpop.f32.mrb[0].mxu0
        %v3463 = vadd.f32 0.0, %v3462
        %v3464 = vpop.f32.mrb[0].mxu0
        %v3465 = vadd.f32 0.0, %v3464
        %v3466 = vpop.f32.mrb[0].mxu0
        %v3467 = vadd.f32 0.0, %v3466
        %3468 = vmatprep.mubr.bf16.mxu0 0
        %3469 = vmatmul.mubr.bf16.gmra.mrb[0].mxu0 %v506
        %v3470 = vpop.f32.mrb[0].mxu0
        %v3471 = vadd.f32 0.0, %v3470
        %v3472 = vpop.f32.mrb[0].mxu0
        %v3473 = vadd.f32 0.0, %v3472
        %v3474 = vpop.f32.mrb[0].mxu0
        %v3475 = vadd.f32 0.0, %v3474
        %v3476 = vpop.f32.mrb[0].mxu0
        %v3477 = vadd.f32 0.0, %v3476
        %3478 = vmatprep.mubr.bf16.mxu0 0
        %3479 = vmatmul.mubr.bf16.gmra.mrb[0].mxu0 %v509
        %v3480 = vpop.f32.mrb[0].mxu0
        %v3481 = vadd.f32 0.0, %v3480
        %v3482 = vpop.f32.mrb[0].mxu0
        %v3483 = vadd.f32 0.0, %v3482
        %v3484 = vpop.f32.mrb[0].mxu0
        %v3485 = vadd.f32 0.0, %v3484
        %v3486 = vpop.f32.mrb[0].mxu0
        %v3487 = vadd.f32 0.0, %v3486
        %3488 = vmatprep.mubr.bf16.mxu0 0
        %3489 = vmatmul.mubr.bf16.gmra.mrb[0].mxu0 %v512
        %v3490 = vpop.f32.mrb[0].mxu0
        %v3491 = vadd.f32 0.0, %v3490
        %v3492 = vpop.f32.mrb[0].mxu0
        %v3493 = vadd.f32 0.0, %v3492
        %v3494 = vpop.f32.mrb[0].mxu0
        %v3495 = vadd.f32 0.0, %v3494
        %v3496 = vpop.f32.mrb[0].mxu0
        %v3497 = vadd.f32 0.0, %v3496
        %3498 = vmatprep.mubr.bf16.mxu0 0
        %3499 = vmatmul.mubr.bf16.gmra.mrb[0].mxu0 %v515
        %v3500 = vpop.f32.mrb[0].mxu0
        %v3501 = vadd.f32 0.0, %v3500
        %v3502 = vpop.f32.mrb[0].mxu0
        %v3503 = vadd.f32 0.0, %v3502
        %v3504 = vpop.f32.mrb[0].mxu0
        %v3505 = vadd.f32 0.0, %v3504
        %v3506 = vpop.f32.mrb[0].mxu0
        %v3507 = vadd.f32 0.0, %v3506
        %3508 = vmatprep.mubr.bf16.mxu0 0
        %3509 = vmatmul.mubr.bf16.gmra.mrb[0].mxu0 %v518
        %v3510 = vpop.f32.mrb[0].mxu0
        %v3511 = vadd.f32 0.0, %v3510
        %v3512 = vpop.f32.mrb[0].mxu0
        %v3513 = vadd.f32 0.0, %v3512
        %v3514 = vpop.f32.mrb[0].mxu0
        %v3515 = vadd.f32 0.0, %v3514
        %v3516 = vpop.f32.mrb[0].mxu0
        %v3517 = vadd.f32 0.0, %v3516
        %3518 = vmatprep.mubr.bf16.mxu0 0
        %3519 = vmatmul.mubr.bf16.gmra.mrb[0].mxu0 %v521
        %v3520 = vpop.f32.mrb[0].mxu0
        %v3521 = vadd.f32 0.0, %v3520
        %v3522 = vpop.f32.mrb[0].mxu0
        %v3523 = vadd.f32 0.0, %v3522
        %v3524 = vpop.f32.mrb[0].mxu0
        %v3525 = vadd.f32 0.0, %v3524
        %v3526 = vpop.f32.mrb[0].mxu0
        %v3527 = vadd.f32 0.0, %v3526
        %3528 = vmatprep.mubr.bf16.mxu0 0
        %3529 = vmatmul.mubr.bf16.gmra.mrb[0].mxu0 %v524
        %v3530 = vpop.f32.mrb[0].mxu0
        %v3531 = vadd.f32 0.0, %v3530
        %v3532 = vpop.f32.mrb[0].mxu0
        %v3533 = vadd.f32 0.0, %v3532
        %v3534 = vpop.f32.mrb[0].mxu0
        %v3535 = vadd.f32 0.0, %v3534
        %v3536 = vpop.f32.mrb[0].mxu0
        %v3537 = vadd.f32 0.0, %v3536
        %3538 = vmatprep.mubr.bf16.mxu0 0
        %3539 = vmatmul.mubr.bf16.gmra.mrb[0].mxu0 %v527
        %v3540 = vpop.f32.mrb[0].mxu0
        %v3541 = vadd.f32 0.0, %v3540
        %v3542 = vpop.f32.mrb[0].mxu0
        %v3543 = vadd.f32 0.0, %v3542
        %v3544 = vpop.f32.mrb[0].mxu0
        %v3545 = vadd.f32 0.0, %v3544
        %v3546 = vpop.f32.mrb[0].mxu0
        %v3547 = vadd.f32 0.0, %v3546
        %3548 = vmatprep.mubr.bf16.mxu0 0
        %3549 = vmatmul.mubr.bf16.gmra.mrb[0].mxu0 %v530
        %v3550 = vpop.f32.mrb[0].mxu0
        %v3551 = vadd.f32 0.0, %v3550
        %v3552 = vpop.f32.mrb[0].mxu0
        %v3553 = vadd.f32 0.0, %v3552
        %v3554 = vpop.f32.mrb[0].mxu0
        %v3555 = vadd.f32 0.0, %v3554
        %v3556 = vpop.f32.mrb[0].mxu0
        %v3557 = vadd.f32 0.0, %v3556
        %3558 = vmatprep.mubr.bf16.mxu0 0
        %3559 = vmatmul.mubr.bf16.gmra.mrb[0].mxu0 %v533
        %v3560 = vpop.f32.mrb[0].mxu0
        %v3561 = vadd.f32 0.0, %v3560
        %v3562 = vpop.f32.mrb[0].mxu0
        %v3563 = vadd.f32 0.0, %v3562
        %v3564 = vpop.f32.mrb[0].mxu0
        %v3565 = vadd.f32 0.0, %v3564
        %v3566 = vpop.f32.mrb[0].mxu0
        %v3567 = vadd.f32 0.0, %v3566
        %3568 = vmatprep.mubr.bf16.mxu0 0
        %3569 = vmatmul.mubr.bf16.gmra.mrb[0].mxu0 %v536
        %v3570 = vpop.f32.mrb[0].mxu0
        %v3571 = vadd.f32 0.0, %v3570
        %v3572 = vpop.f32.mrb[0].mxu0
        %v3573 = vadd.f32 0.0, %v3572
        %v3574 = vpop.f32.mrb[0].mxu0
        %v3575 = vadd.f32 0.0, %v3574
        %v3576 = vpop.f32.mrb[0].mxu0
        %v3577 = vadd.f32 0.0, %v3576
        %3578 = vmatprep.mubr.bf16.mxu0 0
        %3579 = vmatmul.mubr.bf16.gmra.mrb[0].mxu0 %v539
        %v3580 = vpop.f32.mrb[0].mxu0
        %v3581 = vadd.f32 0.0, %v3580
        %v3582 = vpop.f32.mrb[0].mxu0
        %v3583 = vadd.f32 0.0, %v3582
        %v3584 = vpop.f32.mrb[0].mxu0
        %v3585 = vadd.f32 0.0, %v3584
        %v3586 = vpop.f32.mrb[0].mxu0
        %v3587 = vadd.f32 0.0, %v3586
        %3588 = vmatprep.mubr.bf16.mxu0 0
        %3589 = vmatmul.mubr.bf16.gmra.mrb[0].mxu0 %v542
        %v3590 = vpop.f32.mrb[0].mxu0
        %v3591 = vadd.f32 0.0, %v3590
        %v3592 = vpop.f32.mrb[0].mxu0
        %v3593 = vadd.f32 0.0, %v3592
        %v3594 = vpop.f32.mrb[0].mxu0
        %v3595 = vadd.f32 0.0, %v3594
        %v3596 = vpop.f32.mrb[0].mxu0
        %v3597 = vadd.f32 0.0, %v3596
        %3598 = vmatprep.mubr.bf16.mxu0 0
        %3599 = vmatmul.mubr.bf16.gmra.mrb[0].mxu0 %v545
        %v3600 = vpop.f32.mrb[0].mxu0
        %v3601 = vadd.f32 0.0, %v3600
        %v3602 = vpop.f32.mrb[0].mxu0
        %v3603 = vadd.f32 0.0, %v3602
        %v3604 = vpop.f32.mrb[0].mxu0
        %v3605 = vadd.f32 0.0, %v3604
        %v3606 = vpop.f32.mrb[0].mxu0
        %v3607 = vadd.f32 0.0, %v3606
        %3608 = vmatprep.mubr.bf16.mxu0 0
        %3609 = vmatmul.mubr.bf16.gmra.mrb[0].mxu0 %v548
        %v3610 = vpop.f32.mrb[0].mxu0
        %v3611 = vadd.f32 0.0, %v3610
        %v3612 = vpop.f32.mrb[0].mxu0
        %v3613 = vadd.f32 0.0, %v3612
        %v3614 = vpop.f32.mrb[0].mxu0
        %v3615 = vadd.f32 0.0, %v3614
        %v3616 = vpop.f32.mrb[0].mxu0
        %v3617 = vadd.f32 0.0, %v3616
        %3618 = vmatprep.mubr.bf16.mxu0 0
        %3619 = vmatmul.mubr.bf16.gmra.mrb[0].mxu0 %v551
        %v3620 = vpop.f32.mrb[0].mxu0
        %v3621 = vadd.f32 0.0, %v3620
        %v3622 = vpop.f32.mrb[0].mxu0
        %v3623 = vadd.f32 0.0, %v3622
        %v3624 = vpop.f32.mrb[0].mxu0
        %v3625 = vadd.f32 0.0, %v3624
        %v3626 = vpop.f32.mrb[0].mxu0
        %v3627 = vadd.f32 0.0, %v3626
        %3628 = vmatprep.mubr.bf16.mxu0 0
        %3629 = vmatmul.mubr.bf16.gmra.mrb[0].mxu0 %v554
        %v3630 = vpop.f32.mrb[0].mxu0
        %v3631 = vadd.f32 0.0, %v3630
        %v3632 = vpop.f32.mrb[0].mxu0
        %v3633 = vadd.f32 0.0, %v3632
        %v3634 = vpop.f32.mrb[0].mxu0
        %v3635 = vadd.f32 0.0, %v3634
        %v3636 = vpop.f32.mrb[0].mxu0
        %v3637 = vadd.f32 0.0, %v3636
        %3638 = vmatprep.mubr.bf16.mxu0 0
        %3639 = vmatmul.mubr.bf16.gmra.mrb[0].mxu0 %v557
        %v3640 = vpop.f32.mrb[0].mxu0
        %v3641 = vadd.f32 0.0, %v3640
        %v3642 = vpop.f32.mrb[0].mxu0
        %v3643 = vadd.f32 0.0, %v3642
        %v3644 = vpop.f32.mrb[0].mxu0
        %v3645 = vadd.f32 0.0, %v3644
        %v3646 = vpop.f32.mrb[0].mxu0
        %v3647 = vadd.f32 0.0, %v3646
        %3648 = vmatprep.mubr.bf16.mxu0 0
        %3649 = vmatmul.mubr.bf16.gmra.mrb[0].mxu0 %v560
        %v3650 = vpop.f32.mrb[0].mxu0
        %v3651 = vadd.f32 0.0, %v3650
        %v3652 = vpop.f32.mrb[0].mxu0
        %v3653 = vadd.f32 0.0, %v3652
        %v3654 = vpop.f32.mrb[0].mxu0
        %v3655 = vadd.f32 0.0, %v3654
        %v3656 = vpop.f32.mrb[0].mxu0
        %v3657 = vadd.f32 0.0, %v3656
        %3658 = vmatprep.mubr.bf16.mxu0 0
        %3659 = vmatmul.mubr.bf16.gmra.mrb[0].mxu0 %v563
        %v3660 = vpop.f32.mrb[0].mxu0
        %v3661 = vadd.f32 0.0, %v3660
        %v3662 = vpop.f32.mrb[0].mxu0
        %v3663 = vadd.f32 0.0, %v3662
        %v3664 = vpop.f32.mrb[0].mxu0
        %v3665 = vadd.f32 0.0, %v3664
        %v3666 = vpop.f32.mrb[0].mxu0
        %v3667 = vadd.f32 0.0, %v3666
        %3668 = vmatprep.mubr.bf16.mxu0 0
        %3669 = vmatmul.mubr.bf16.gmra.mrb[0].mxu0 %v566
        %v3670 = vpop.f32.mrb[0].mxu0
        %v3671 = vadd.f32 0.0, %v3670
        %v3672 = vpop.f32.mrb[0].mxu0
        %v3673 = vadd.f32 0.0, %v3672
        %v3674 = vpop.f32.mrb[0].mxu0
        %v3675 = vadd.f32 0.0, %v3674
        %v3676 = vpop.f32.mrb[0].mxu0
        %v3677 = vadd.f32 0.0, %v3676
        %3678 = vmatprep.mubr.bf16.mxu0 0
        %3679 = vmatmul.mubr.bf16.gmra.mrb[0].mxu0 %v569
        %v3680 = vpop.f32.mrb[0].mxu0
        %v3681 = vadd.f32 0.0, %v3680
        %v3682 = vpop.f32.mrb[0].mxu0
        %v3683 = vadd.f32 0.0, %v3682
        %v3684 = vpop.f32.mrb[0].mxu0
        %v3685 = vadd.f32 0.0, %v3684
        %v3686 = vpop.f32.mrb[0].mxu0
        %v3687 = vadd.f32 0.0, %v3686
        %3688 = vmatprep.mubr.bf16.mxu0 0
        %3689 = vmatmul.mubr.bf16.gmra.mrb[0].mxu0 %v572
        %v3690 = vpop.f32.mrb[0].mxu0
        %v3691 = vadd.f32 0.0, %v3690
        %v3692 = vpop.f32.mrb[0].mxu0
        %v3693 = vadd.f32 0.0, %v3692
        %v3694 = vpop.f32.mrb[0].mxu0
        %v3695 = vadd.f32 0.0, %v3694
        %v3696 = vpop.f32.mrb[0].mxu0
        %v3697 = vadd.f32 0.0, %v3696
        %3698 = vmatprep.mubr.bf16.mxu0 0
        %3699 = vmatmul.mubr.bf16.gmra.mrb[0].mxu0 %v575
        %v3700 = vpop.f32.mrb[0].mxu0
        %v3701 = vadd.f32 0.0, %v3700
        %v3702 = vpop.f32.mrb[0].mxu0
        %v3703 = vadd.f32 0.0, %v3702
        %v3704 = vpop.f32.mrb[0].mxu0
        %v3705 = vadd.f32 0.0, %v3704
        %v3706 = vpop.f32.mrb[0].mxu0
        %v3707 = vadd.f32 0.0, %v3706
        %3708 = vmatprep.mubr.bf16.mxu0 0
        %3709 = vmatmul.mubr.bf16.gmra.mrb[0].mxu0 %v578
        %v3710 = vpop.f32.mrb[0].mxu0
        %v3711 = vadd.f32 0.0, %v3710
        %v3712 = vpop.f32.mrb[0].mxu0
        %v3713 = vadd.f32 0.0, %v3712
        %v3714 = vpop.f32.mrb[0].mxu0
        %v3715 = vadd.f32 0.0, %v3714
        %v3716 = vpop.f32.mrb[0].mxu0
        %v3717 = vadd.f32 0.0, %v3716
        %3718 = vmatprep.mubr.bf16.mxu0 0
        %3719 = vmatmul.mubr.bf16.gmra.mrb[0].mxu0 %v581
        %v3720 = vpop.f32.mrb[0].mxu0
        %v3721 = vadd.f32 0.0, %v3720
        %v3722 = vpop.f32.mrb[0].mxu0
        %v3723 = vadd.f32 0.0, %v3722
        %v3724 = vpop.f32.mrb[0].mxu0
        %v3725 = vadd.f32 0.0, %v3724
        %v3726 = vpop.f32.mrb[0].mxu0
        %v3727 = vadd.f32 0.0, %v3726
        %3728 = vmatprep.mubr.bf16.mxu0 0
        %3729 = vmatmul.mubr.bf16.gmra.mrb[0].mxu0 %v584
        %v3730 = vpop.f32.mrb[0].mxu0
        %v3731 = vadd.f32 0.0, %v3730
        %v3732 = vpop.f32.mrb[0].mxu0
        %v3733 = vadd.f32 0.0, %v3732
        %v3734 = vpop.f32.mrb[0].mxu0
        %v3735 = vadd.f32 0.0, %v3734
        %v3736 = vpop.f32.mrb[0].mxu0
        %v3737 = vadd.f32 0.0, %v3736
        %3738 = vmatprep.mubr.bf16.mxu0 0
        %3739 = vmatmul.mubr.bf16.gmra.mrb[0].mxu0 %v587
        %v3740 = vpop.f32.mrb[0].mxu0
        %v3741 = vadd.f32 0.0, %v3740
        %v3742 = vpop.f32.mrb[0].mxu0
        %v3743 = vadd.f32 0.0, %v3742
        %v3744 = vpop.f32.mrb[0].mxu0
        %v3745 = vadd.f32 0.0, %v3744
        %v3746 = vpop.f32.mrb[0].mxu0
        %v3747 = vadd.f32 0.0, %v3746
        %3748 = vmatprep.mubr.bf16.mxu0 0
        %3749 = vmatmul.mubr.bf16.gmra.mrb[0].mxu0 %v590
        %v3750 = vpop.f32.mrb[0].mxu0
        %v3751 = vadd.f32 0.0, %v3750
        %v3752 = vpop.f32.mrb[0].mxu0
        %v3753 = vadd.f32 0.0, %v3752
        %v3754 = vpop.f32.mrb[0].mxu0
        %v3755 = vadd.f32 0.0, %v3754
        %v3756 = vpop.f32.mrb[0].mxu0
        %v3757 = vadd.f32 0.0, %v3756
        %3758 = vmatprep.mubr.bf16.mxu0 0
        %3759 = vmatmul.mubr.bf16.gmra.mrb[0].mxu0 %v593
        %v3760 = vpop.f32.mrb[0].mxu0
        %v3761 = vadd.f32 0.0, %v3760
        %v3762 = vpop.f32.mrb[0].mxu0
        %v3763 = vadd.f32 0.0, %v3762
        %v3764 = vpop.f32.mrb[0].mxu0
        %v3765 = vadd.f32 0.0, %v3764
        %v3766 = vpop.f32.mrb[0].mxu0
        %v3767 = vadd.f32 0.0, %v3766
        %3768 = vmatprep.mubr.bf16.mxu0 0
        %3769 = vmatmul.mubr.bf16.gmra.mrb[0].mxu0 %v596
        %v3770 = vpop.f32.mrb[0].mxu0
        %v3771 = vadd.f32 0.0, %v3770
        %v3772 = vpop.f32.mrb[0].mxu0
        %v3773 = vadd.f32 0.0, %v3772
        %v3774 = vpop.f32.mrb[0].mxu0
        %v3775 = vadd.f32 0.0, %v3774
        %v3776 = vpop.f32.mrb[0].mxu0
        %v3777 = vadd.f32 0.0, %v3776
        %3778 = vmatprep.mubr.bf16.mxu0 0
        %3779 = vmatmul.mubr.bf16.gmra.mrb[0].mxu0 %v599
        %v3780 = vpop.f32.mrb[0].mxu0
        %v3781 = vadd.f32 0.0, %v3780
        %v3782 = vpop.f32.mrb[0].mxu0
        %v3783 = vadd.f32 0.0, %v3782
        %v3784 = vpop.f32.mrb[0].mxu0
        %v3785 = vadd.f32 0.0, %v3784
        %v3786 = vpop.f32.mrb[0].mxu0
        %v3787 = vadd.f32 0.0, %v3786
        %3788 = vmatprep.mubr.bf16.mxu0 0
        %3789 = vmatmul.mubr.bf16.gmra.mrb[0].mxu0 %v602
        %v3790 = vpop.f32.mrb[0].mxu0
        %v3791 = vadd.f32 0.0, %v3790
        %v3792 = vpop.f32.mrb[0].mxu0
        %v3793 = vadd.f32 0.0, %v3792
        %v3794 = vpop.f32.mrb[0].mxu0
        %v3795 = vadd.f32 0.0, %v3794
        %v3796 = vpop.f32.mrb[0].mxu0
        %v3797 = vadd.f32 0.0, %v3796
        %3798 = vmatprep.mubr.bf16.mxu0 0
        %3799 = vmatmul.mubr.bf16.gmra.mrb[0].mxu0 %v605
        %v3800 = vpop.f32.mrb[0].mxu0
        %v3801 = vadd.f32 0.0, %v3800
        %v3802 = vpop.f32.mrb[0].mxu0
        %v3803 = vadd.f32 0.0, %v3802
        %v3804 = vpop.f32.mrb[0].mxu0
        %v3805 = vadd.f32 0.0, %v3804
        %v3806 = vpop.f32.mrb[0].mxu0
        %v3807 = vadd.f32 0.0, %v3806
        %3808 = vmatprep.mubr.bf16.mxu0 0
        %3809 = vmatmul.mubr.bf16.gmra.mrb[0].mxu0 %v608
        %v3810 = vpop.f32.mrb[0].mxu0
        %v3811 = vadd.f32 0.0, %v3810
        %v3812 = vpop.f32.mrb[0].mxu0
        %v3813 = vadd.f32 0.0, %v3812
        %v3814 = vpop.f32.mrb[0].mxu0
        %v3815 = vadd.f32 0.0, %v3814
        %v3816 = vpop.f32.mrb[0].mxu0
        %v3817 = vadd.f32 0.0, %v3816
        %3818 = vmatprep.mubr.bf16.mxu0 0
        %3819 = vmatmul.mubr.bf16.gmra.mrb[0].mxu0 %v611
        %v3820 = vpop.f32.mrb[0].mxu0
        %v3821 = vadd.f32 0.0, %v3820
        %v3822 = vpop.f32.mrb[0].mxu0
        %v3823 = vadd.f32 0.0, %v3822
        %v3824 = vpop.f32.mrb[0].mxu0
        %v3825 = vadd.f32 0.0, %v3824
        %v3826 = vpop.f32.mrb[0].mxu0
        %v3827 = vadd.f32 0.0, %v3826
        %3828 = vmatprep.mubr.bf16.mxu0 0
        %3829 = vmatmul.mubr.bf16.gmra.mrb[0].mxu0 %v614
        %v3830 = vpop.f32.mrb[0].mxu0
        %v3831 = vadd.f32 0.0, %v3830
        %v3832 = vpop.f32.mrb[0].mxu0
        %v3833 = vadd.f32 0.0, %v3832
        %v3834 = vpop.f32.mrb[0].mxu0
        %v3835 = vadd.f32 0.0, %v3834
        %v3836 = vpop.f32.mrb[0].mxu0
        %v3837 = vadd.f32 0.0, %v3836
        %3838 = vmatprep.mubr.bf16.mxu0 0
        %3839 = vmatmul.mubr.bf16.gmra.mrb[0].mxu0 %v617
        %v3840 = vpop.f32.mrb[0].mxu0
        %v3841 = vadd.f32 0.0, %v3840
        %v3842 = vpop.f32.mrb[0].mxu0
        %v3843 = vadd.f32 0.0, %v3842
        %v3844 = vpop.f32.mrb[0].mxu0
        %v3845 = vadd.f32 0.0, %v3844
        %v3846 = vpop.f32.mrb[0].mxu0
        %v3847 = vadd.f32 0.0, %v3846
        %3848 = vmatprep.mubr.bf16.mxu0 0
        %3849 = vmatmul.mubr.bf16.gmra.mrb[0].mxu0 %v620
        %v3850 = vpop.f32.mrb[0].mxu0
        %v3851 = vadd.f32 0.0, %v3850
        %v3852 = vpop.f32.mrb[0].mxu0
        %v3853 = vadd.f32 0.0, %v3852
        %v3854 = vpop.f32.mrb[0].mxu0
        %v3855 = vadd.f32 0.0, %v3854
        %v3856 = vpop.f32.mrb[0].mxu0
        %v3857 = vadd.f32 0.0, %v3856
        %3858 = vmatprep.mubr.bf16.mxu0 0
        %3859 = vmatmul.mubr.bf16.gmra.mrb[0].mxu0 %v623
        %v3860 = vpop.f32.mrb[0].mxu0
        %v3861 = vadd.f32 0.0, %v3860
        %v3862 = vpop.f32.mrb[0].mxu0
        %v3863 = vadd.f32 0.0, %v3862
        %v3864 = vpop.f32.mrb[0].mxu0
        %v3865 = vadd.f32 0.0, %v3864
        %v3866 = vpop.f32.mrb[0].mxu0
        %v3867 = vadd.f32 0.0, %v3866
        %3868 = vmatprep.mubr.bf16.mxu0 0
        %3869 = vmatmul.mubr.bf16.gmra.mrb[0].mxu0 %v626
        %v3870 = vpop.f32.mrb[0].mxu0
        %v3871 = vadd.f32 0.0, %v3870
        %v3872 = vpop.f32.mrb[0].mxu0
        %v3873 = vadd.f32 0.0, %v3872
        %v3874 = vpop.f32.mrb[0].mxu0
        %v3875 = vadd.f32 0.0, %v3874
        %v3876 = vpop.f32.mrb[0].mxu0
        %v3877 = vadd.f32 0.0, %v3876
        %3878 = vmatprep.mubr.bf16.mxu0 0
        %3879 = vmatmul.mubr.bf16.gmra.mrb[0].mxu0 %v629
        %v3880 = vpop.f32.mrb[0].mxu0
        %v3881 = vadd.f32 0.0, %v3880
        %v3882 = vpop.f32.mrb[0].mxu0
        %v3883 = vadd.f32 0.0, %v3882
        %v3884 = vpop.f32.mrb[0].mxu0
        %v3885 = vadd.f32 0.0, %v3884
        %v3886 = vpop.f32.mrb[0].mxu0
        %v3887 = vadd.f32 0.0, %v3886
        %3888 = vmatprep.mubr.bf16.mxu0 0
        %3889 = vmatmul.mubr.bf16.gmra.mrb[0].mxu0 %v632
        %v3890 = vpop.f32.mrb[0].mxu0
        %v3891 = vadd.f32 0.0, %v3890
        %v3892 = vpop.f32.mrb[0].mxu0
        %v3893 = vadd.f32 0.0, %v3892
        %v3894 = vpop.f32.mrb[0].mxu0
        %v3895 = vadd.f32 0.0, %v3894
        %v3896 = vpop.f32.mrb[0].mxu0
        %v3897 = vadd.f32 0.0, %v3896
        %3898 = vmatprep.mubr.bf16.mxu0 0
        %3899 = vmatmul.mubr.bf16.gmra.mrb[0].mxu0 %v635
        %v3900 = vpop.f32.mrb[0].mxu0
        %v3901 = vadd.f32 0.0, %v3900
        %v3902 = vpop.f32.mrb[0].mxu0
        %v3903 = vadd.f32 0.0, %v3902
        %v3904 = vpop.f32.mrb[0].mxu0
        %v3905 = vadd.f32 0.0, %v3904
        %v3906 = vpop.f32.mrb[0].mxu0
        %v3907 = vadd.f32 0.0, %v3906
        %3908 = vmatprep.mubr.bf16.mxu0 0
        %3909 = vmatmul.mubr.bf16.gmra.mrb[0].mxu0 %v638
        %v3910 = vpop.f32.mrb[0].mxu0
        %v3911 = vadd.f32 0.0, %v3910
        %v3912 = vpop.f32.mrb[0].mxu0
        %v3913 = vadd.f32 0.0, %v3912
        %v3914 = vpop.f32.mrb[0].mxu0
        %v3915 = vadd.f32 0.0, %v3914
        %v3916 = vpop.f32.mrb[0].mxu0
        %v3917 = vadd.f32 0.0, %v3916
        %3918 = vmatprep.mubr.bf16.mxu0 0
        %3919 = vmatmul.mubr.bf16.gmra.mrb[0].mxu0 %v641
        %v3920 = vpop.f32.mrb[0].mxu0
        %v3921 = vadd.f32 0.0, %v3920
        %v3922 = vpop.f32.mrb[0].mxu0
        %v3923 = vadd.f32 0.0, %v3922
        %v3924 = vpop.f32.mrb[0].mxu0
        %v3925 = vadd.f32 0.0, %v3924
        %v3926 = vpop.f32.mrb[0].mxu0
        %v3927 = vadd.f32 0.0, %v3926
        %3928 = vmatprep.mubr.bf16.mxu0 0
        %3929 = vmatmul.mubr.bf16.gmra.mrb[0].mxu0 %v644
        %v3930 = vpop.f32.mrb[0].mxu0
        %v3931 = vadd.f32 0.0, %v3930
        %v3932 = vpop.f32.mrb[0].mxu0
        %v3933 = vadd.f32 0.0, %v3932
        %v3934 = vpop.f32.mrb[0].mxu0
        %v3935 = vadd.f32 0.0, %v3934
        %v3936 = vpop.f32.mrb[0].mxu0
        %v3937 = vadd.f32 0.0, %v3936
        %3938 = vmatprep.mubr.bf16.mxu0 0
        %3939 = vmatmul.mubr.bf16.gmra.mrb[0].mxu0 %v647
        %v3940 = vpop.f32.mrb[0].mxu0
        %v3941 = vadd.f32 0.0, %v3940
        %v3942 = vpop.f32.mrb[0].mxu0
        %v3943 = vadd.f32 0.0, %v3942
        %v3944 = vpop.f32.mrb[0].mxu0
        %v3945 = vadd.f32 0.0, %v3944
        %v3946 = vpop.f32.mrb[0].mxu0
        %v3947 = vadd.f32 0.0, %v3946
        %3948 = vmatprep.mubr.bf16.mxu0 0
        %3949 = vmatmul.mubr.bf16.gmra.mrb[0].mxu0 %v650
        %v3950 = vpop.f32.mrb[0].mxu0
        %v3951 = vadd.f32 0.0, %v3950
        %v3952 = vpop.f32.mrb[0].mxu0
        %v3953 = vadd.f32 0.0, %v3952
        %v3954 = vpop.f32.mrb[0].mxu0
        %v3955 = vadd.f32 0.0, %v3954
        %v3956 = vpop.f32.mrb[0].mxu0
        %v3957 = vadd.f32 0.0, %v3956
        %3958 = vmatprep.mubr.bf16.mxu0 0
        %3959 = vmatmul.mubr.bf16.gmra.mrb[0].mxu0 %v653
        %v3960 = vpop.f32.mrb[0].mxu0
        %v3961 = vadd.f32 0.0, %v3960
        %v3962 = vpop.f32.mrb[0].mxu0
        %v3963 = vadd.f32 0.0, %v3962
        %v3964 = vpop.f32.mrb[0].mxu0
        %v3965 = vadd.f32 0.0, %v3964
        %v3966 = vpop.f32.mrb[0].mxu0
        %v3967 = vadd.f32 0.0, %v3966
        %3968 = vmatprep.mubr.bf16.mxu0 0
        %3969 = vmatmul.mubr.bf16.gmra.mrb[0].mxu0 %v656
        %v3970 = vpop.f32.mrb[0].mxu0
        %v3971 = vadd.f32 0.0, %v3970
        %v3972 = vpop.f32.mrb[0].mxu0
        %v3973 = vadd.f32 0.0, %v3972
        %v3974 = vpop.f32.mrb[0].mxu0
        %v3975 = vadd.f32 0.0, %v3974
        %v3976 = vpop.f32.mrb[0].mxu0
        %v3977 = vadd.f32 0.0, %v3976
        %3978 = vmatprep.mubr.bf16.mxu0 0
        %3979 = vmatmul.mubr.bf16.gmra.mrb[0].mxu0 %v659
        %v3980 = vpop.f32.mrb[0].mxu0
        %v3981 = vadd.f32 0.0, %v3980
        %v3982 = vpop.f32.mrb[0].mxu0
        %v3983 = vadd.f32 0.0, %v3982
        %v3984 = vpop.f32.mrb[0].mxu0
        %v3985 = vadd.f32 0.0, %v3984
        %v3986 = vpop.f32.mrb[0].mxu0
        %v3987 = vadd.f32 0.0, %v3986
        %3988 = vmatprep.mubr.bf16.mxu0 0
        %3989 = vmatmul.mubr.bf16.gmra.mrb[0].mxu0 %v662
        %v3990 = vpop.f32.mrb[0].mxu0
        %v3991 = vadd.f32 0.0, %v3990
        %v3992 = vpop.f32.mrb[0].mxu0
        %v3993 = vadd.f32 0.0, %v3992
        %v3994 = vpop.f32.mrb[0].mxu0
        %v3995 = vadd.f32 0.0, %v3994
        %v3996 = vpop.f32.mrb[0].mxu0
        %v3997 = vadd.f32 0.0, %v3996
        %3998 = vmatprep.mubr.bf16.mxu0 0
        %3999 = vmatmul.mubr.bf16.gmra.mrb[0].mxu0 %v665
        %v4000 = vpop.f32.mrb[0].mxu0
        %v4001 = vadd.f32 0.0, %v4000
        %v4002 = vpop.f32.mrb[0].mxu0
        %v4003 = vadd.f32 0.0, %v4002
        %v4004 = vpop.f32.mrb[0].mxu0
        %v4005 = vadd.f32 0.0, %v4004
        %v4006 = vpop.f32.mrb[0].mxu0
        %v4007 = vadd.f32 0.0, %v4006
        %4008 = vmatprep.mubr.bf16.mxu0 0
        %4009 = vmatmul.mubr.bf16.gmra.mrb[0].mxu0 %v668
        %v4010 = vpop.f32.mrb[0].mxu0
        %v4011 = vadd.f32 0.0, %v4010
        %v4012 = vpop.f32.mrb[0].mxu0
        %v4013 = vadd.f32 0.0, %v4012
        %v4014 = vpop.f32.mrb[0].mxu0
        %v4015 = vadd.f32 0.0, %v4014
        %v4016 = vpop.f32.mrb[0].mxu0
        %v4017 = vadd.f32 0.0, %v4016
        %4018 = vmatprep.mubr.bf16.mxu0 0
        %4019 = vmatmul.mubr.bf16.gmra.mrb[0].mxu0 %v671
        %v4020 = vpop.f32.mrb[0].mxu0
        %v4021 = vadd.f32 0.0, %v4020
        %v4022 = vpop.f32.mrb[0].mxu0
        %v4023 = vadd.f32 0.0, %v4022
        %v4024 = vpop.f32.mrb[0].mxu0
        %v4025 = vadd.f32 0.0, %v4024
        %v4026 = vpop.f32.mrb[0].mxu0
        %v4027 = vadd.f32 0.0, %v4026
        %4028 = vmatprep.mubr.bf16.mxu0 0
        %4029 = vmatmul.mubr.bf16.gmra.mrb[0].mxu0 %v674
        %v4030 = vpop.f32.mrb[0].mxu0
        %v4031 = vadd.f32 0.0, %v4030
        %v4032 = vpop.f32.mrb[0].mxu0
        %v4033 = vadd.f32 0.0, %v4032
        %v4034 = vpop.f32.mrb[0].mxu0
        %v4035 = vadd.f32 0.0, %v4034
        %v4036 = vpop.f32.mrb[0].mxu0
        %v4037 = vadd.f32 0.0, %v4036
        %4038 = vmatprep.mubr.bf16.mxu0 0
        %4039 = vmatmul.mubr.bf16.gmra.mrb[0].mxu0 %v677
        %v4040 = vpop.f32.mrb[0].mxu0
        %v4041 = vadd.f32 0.0, %v4040
        %v4042 = vpop.f32.mrb[0].mxu0
        %v4043 = vadd.f32 0.0, %v4042
        %v4044 = vpop.f32.mrb[0].mxu0
        %v4045 = vadd.f32 0.0, %v4044
        %v4046 = vpop.f32.mrb[0].mxu0
        %v4047 = vadd.f32 0.0, %v4046
        %4048 = vmatprep.mubr.bf16.mxu0 0
        %4049 = vmatmul.mubr.bf16.gmra.mrb[0].mxu0 %v680
        %v4050 = vpop.f32.mrb[0].mxu0
        %v4051 = vadd.f32 0.0, %v4050
        %v4052 = vpop.f32.mrb[0].mxu0
        %v4053 = vadd.f32 0.0, %v4052
        %v4054 = vpop.f32.mrb[0].mxu0
        %v4055 = vadd.f32 0.0, %v4054
        %v4056 = vpop.f32.mrb[0].mxu0
        %v4057 = vadd.f32 0.0, %v4056
        %4058 = vmatprep.mubr.bf16.mxu0 0
        %4059 = vmatmul.mubr.bf16.gmra.mrb[0].mxu0 %v683
        %v4060 = vpop.f32.mrb[0].mxu0
        %v4061 = vadd.f32 0.0, %v4060
        %v4062 = vpop.f32.mrb[0].mxu0
        %v4063 = vadd.f32 0.0, %v4062
        %v4064 = vpop.f32.mrb[0].mxu0
        %v4065 = vadd.f32 0.0, %v4064
        %v4066 = vpop.f32.mrb[0].mxu0
        %v4067 = vadd.f32 0.0, %v4066
        %4068 = vmatprep.mubr.bf16.mxu0 0
        %4069 = vmatmul.mubr.bf16.gmra.mrb[0].mxu0 %v686
        %v4070 = vpop.f32.mrb[0].mxu0
        %v4071 = vadd.f32 0.0, %v4070
        %v4072 = vpop.f32.mrb[0].mxu0
        %v4073 = vadd.f32 0.0, %v4072
        %v4074 = vpop.f32.mrb[0].mxu0
        %v4075 = vadd.f32 0.0, %v4074
        %v4076 = vpop.f32.mrb[0].mxu0
        %v4077 = vadd.f32 0.0, %v4076
        %4078 = vmatprep.mubr.bf16.mxu0 0
        %4079 = vmatmul.mubr.bf16.gmra.mrb[0].mxu0 %v689
        %v4080 = vpop.f32.mrb[0].mxu0
        %v4081 = vadd.f32 0.0, %v4080
        %v4082 = vpop.f32.mrb[0].mxu0
        %v4083 = vadd.f32 0.0, %v4082
        %v4084 = vpop.f32.mrb[0].mxu0
        %v4085 = vadd.f32 0.0, %v4084
        %v4086 = vpop.f32.mrb[0].mxu0
        %v4087 = vadd.f32 0.0, %v4086
        %4088 = vmatprep.mubr.bf16.mxu0 0
        %4089 = vmatmul.mubr.bf16.gmra.mrb[0].mxu0 %v692
        %v4090 = vpop.f32.mrb[0].mxu0
        %v4091 = vadd.f32 0.0, %v4090
        %v4092 = vpop.f32.mrb[0].mxu0
        %v4093 = vadd.f32 0.0, %v4092
        %v4094 = vpop.f32.mrb[0].mxu0
        %v4095 = vadd.f32 0.0, %v4094
        %v4096 = vpop.f32.mrb[0].mxu0
        %v4097 = vadd.f32 0.0, %v4096
        %4098 = vmatprep.mubr.bf16.mxu0 0
        %4099 = vmatmul.mubr.bf16.gmra.mrb[0].mxu0 %v695
        %v4100 = vpop.f32.mrb[0].mxu0
        %v4101 = vadd.f32 0.0, %v4100
        %v4102 = vpop.f32.mrb[0].mxu0
        %v4103 = vadd.f32 0.0, %v4102
        %v4104 = vpop.f32.mrb[0].mxu0
        %v4105 = vadd.f32 0.0, %v4104
        %v4106 = vpop.f32.mrb[0].mxu0
        %v4107 = vadd.f32 0.0, %v4106
        %4108 = vmatprep.mubr.bf16.mxu0 0
        %4109 = vmatmul.mubr.bf16.gmra.mrb[0].mxu0 %v698
        %v4110 = vpop.f32.mrb[0].mxu0
        %v4111 = vadd.f32 0.0, %v4110
        %v4112 = vpop.f32.mrb[0].mxu0
        %v4113 = vadd.f32 0.0, %v4112
        %v4114 = vpop.f32.mrb[0].mxu0
        %v4115 = vadd.f32 0.0, %v4114
        %v4116 = vpop.f32.mrb[0].mxu0
        %v4117 = vadd.f32 0.0, %v4116
        %4118 = vmatprep.mubr.bf16.mxu0 0
        %4119 = vmatmul.mubr.bf16.gmra.mrb[0].mxu0 %v701
        %v4120 = vpop.f32.mrb[0].mxu0
        %v4121 = vadd.f32 0.0, %v4120
        %v4122 = vpop.f32.mrb[0].mxu0
        %v4123 = vadd.f32 0.0, %v4122
        %v4124 = vpop.f32.mrb[0].mxu0
        %v4125 = vadd.f32 0.0, %v4124
        %v4126 = vpop.f32.mrb[0].mxu0
        %v4127 = vadd.f32 0.0, %v4126
        %4128 = vmatprep.mubr.bf16.mxu0 0
        %4129 = vmatmul.mubr.bf16.gmra.mrb[0].mxu0 %v704
        %v4130 = vpop.f32.mrb[0].mxu0
        %v4131 = vadd.f32 0.0, %v4130
        %v4132 = vpop.f32.mrb[0].mxu0
        %v4133 = vadd.f32 0.0, %v4132
        %v4134 = vpop.f32.mrb[0].mxu0
        %v4135 = vadd.f32 0.0, %v4134
        %v4136 = vpop.f32.mrb[0].mxu0
        %v4137 = vadd.f32 0.0, %v4136
        %4138 = vmatprep.mubr.bf16.mxu0 0
        %4139 = vmatmul.mubr.bf16.gmra.mrb[0].mxu0 %v707
        %v4140 = vpop.f32.mrb[0].mxu0
        %v4141 = vadd.f32 0.0, %v4140
        %v4142 = vpop.f32.mrb[0].mxu0
        %v4143 = vadd.f32 0.0, %v4142
        %v4144 = vpop.f32.mrb[0].mxu0
        %v4145 = vadd.f32 0.0, %v4144
        %v4146 = vpop.f32.mrb[0].mxu0
        %v4147 = vadd.f32 0.0, %v4146
        %4148 = vmatprep.mubr.bf16.mxu0 0
        %4149 = vmatmul.mubr.bf16.gmra.mrb[0].mxu0 %v710
        %v4150 = vpop.f32.mrb[0].mxu0
        %v4151 = vadd.f32 0.0, %v4150
        %v4152 = vpop.f32.mrb[0].mxu0
        %v4153 = vadd.f32 0.0, %v4152
        %v4154 = vpop.f32.mrb[0].mxu0
        %v4155 = vadd.f32 0.0, %v4154
        %v4156 = vpop.f32.mrb[0].mxu0
        %v4157 = vadd.f32 0.0, %v4156
        %4158 = vmatprep.mubr.bf16.mxu0 0
        %4159 = vmatmul.mubr.bf16.gmra.mrb[0].mxu0 %v713
        %v4160 = vpop.f32.mrb[0].mxu0
        %v4161 = vadd.f32 0.0, %v4160
        %v4162 = vpop.f32.mrb[0].mxu0
        %v4163 = vadd.f32 0.0, %v4162
        %v4164 = vpop.f32.mrb[0].mxu0
        %v4165 = vadd.f32 0.0, %v4164
        %v4166 = vpop.f32.mrb[0].mxu0
        %v4167 = vadd.f32 0.0, %v4166
        %4168 = vmatprep.mubr.bf16.mxu0 0
        %4169 = vmatmul.mubr.bf16.gmra.mrb[0].mxu0 %v716
        %v4170 = vpop.f32.mrb[0].mxu0
        %v4171 = vadd.f32 0.0, %v4170
        %v4172 = vpop.f32.mrb[0].mxu0
        %v4173 = vadd.f32 0.0, %v4172
        %v4174 = vpop.f32.mrb[0].mxu0
        %v4175 = vadd.f32 0.0, %v4174
        %v4176 = vpop.f32.mrb[0].mxu0
        %v4177 = vadd.f32 0.0, %v4176
        %4178 = vmatprep.mubr.bf16.mxu0 0
        %4179 = vmatmul.mubr.bf16.gmra.mrb[0].mxu0 %v719
        %v4180 = vpop.f32.mrb[0].mxu0
        %v4181 = vadd.f32 0.0, %v4180
        %v4182 = vpop.f32.mrb[0].mxu0
        %v4183 = vadd.f32 0.0, %v4182
        %v4184 = vpop.f32.mrb[0].mxu0
        %v4185 = vadd.f32 0.0, %v4184
        %v4186 = vpop.f32.mrb[0].mxu0
        %v4187 = vadd.f32 0.0, %v4186
        %4188 = vmatprep.mubr.bf16.mxu0 0
        %4189 = vmatmul.mubr.bf16.gmra.mrb[0].mxu0 %v722
        %v4190 = vpop.f32.mrb[0].mxu0
        %v4191 = vadd.f32 0.0, %v4190
        %v4192 = vpop.f32.mrb[0].mxu0
        %v4193 = vadd.f32 0.0, %v4192
        %v4194 = vpop.f32.mrb[0].mxu0
        %v4195 = vadd.f32 0.0, %v4194
        %v4196 = vpop.f32.mrb[0].mxu0
        %v4197 = vadd.f32 0.0, %v4196
        %4198 = vmatprep.mubr.bf16.mxu0 0
        %4199 = vmatmul.mubr.bf16.gmra.mrb[0].mxu0 %v725
        %v4200 = vpop.f32.mrb[0].mxu0
        %v4201 = vadd.f32 0.0, %v4200
        %v4202 = vpop.f32.mrb[0].mxu0
        %v4203 = vadd.f32 0.0, %v4202
        %v4204 = vpop.f32.mrb[0].mxu0
        %v4205 = vadd.f32 0.0, %v4204
        %v4206 = vpop.f32.mrb[0].mxu0
        %v4207 = vadd.f32 0.0, %v4206
        %4208 = vmatprep.mubr.bf16.mxu0 0
        %4209 = vmatmul.mubr.bf16.gmra.mrb[0].mxu0 %v728
        %v4210 = vpop.f32.mrb[0].mxu0
        %v4211 = vadd.f32 0.0, %v4210
        %v4212 = vpop.f32.mrb[0].mxu0
        %v4213 = vadd.f32 0.0, %v4212
        %v4214 = vpop.f32.mrb[0].mxu0
        %v4215 = vadd.f32 0.0, %v4214
        %v4216 = vpop.f32.mrb[0].mxu0
        %v4217 = vadd.f32 0.0, %v4216
        %4218 = vmatprep.mubr.bf16.mxu0 0
        %4219 = vmatmul.mubr.bf16.gmra.mrb[0].mxu0 %v731
        %v4220 = vpop.f32.mrb[0].mxu0
        %v4221 = vadd.f32 0.0, %v4220
        %v4222 = vpop.f32.mrb[0].mxu0
        %v4223 = vadd.f32 0.0, %v4222
        %v4224 = vpop.f32.mrb[0].mxu0
        %v4225 = vadd.f32 0.0, %v4224
        %v4226 = vpop.f32.mrb[0].mxu0
        %v4227 = vadd.f32 0.0, %v4226
        %4228 = vmatprep.mubr.bf16.mxu0 0
        %4229 = vmatmul.mubr.bf16.gmra.mrb[0].mxu0 %v734
        %v4230 = vpop.f32.mrb[0].mxu0
        %v4231 = vadd.f32 0.0, %v4230
        %v4232 = vpop.f32.mrb[0].mxu0
        %v4233 = vadd.f32 0.0, %v4232
        %v4234 = vpop.f32.mrb[0].mxu0
        %v4235 = vadd.f32 0.0, %v4234
        %v4236 = vpop.f32.mrb[0].mxu0
        %v4237 = vadd.f32 0.0, %v4236
        %4238 = vmatprep.mubr.bf16.mxu0 0
        %4239 = vmatmul.mubr.bf16.gmra.mrb[0].mxu0 %v737
        %v4240 = vpop.f32.mrb[0].mxu0
        %v4241 = vadd.f32 0.0, %v4240
        %v4242 = vpop.f32.mrb[0].mxu0
        %v4243 = vadd.f32 0.0, %v4242
        %v4244 = vpop.f32.mrb[0].mxu0
        %v4245 = vadd.f32 0.0, %v4244
        %v4246 = vpop.f32.mrb[0].mxu0
        %v4247 = vadd.f32 0.0, %v4246
        %4248 = vmatprep.mubr.bf16.mxu0 0
        %4249 = vmatmul.mubr.bf16.gmra.mrb[0].mxu0 %v740
        %v4250 = vpop.f32.mrb[0].mxu0
        %v4251 = vadd.f32 0.0, %v4250
        %v4252 = vpop.f32.mrb[0].mxu0
        %v4253 = vadd.f32 0.0, %v4252
        %v4254 = vpop.f32.mrb[0].mxu0
        %v4255 = vadd.f32 0.0, %v4254
        %v4256 = vpop.f32.mrb[0].mxu0
        %v4257 = vadd.f32 0.0, %v4256
        %4258 = vmatprep.mubr.bf16.mxu0 0
        %4259 = vmatmul.mubr.bf16.gmra.mrb[0].mxu0 %v743
        %v4260 = vpop.f32.mrb[0].mxu0
        %v4261 = vadd.f32 0.0, %v4260
        %v4262 = vpop.f32.mrb[0].mxu0
        %v4263 = vadd.f32 0.0, %v4262
        %v4264 = vpop.f32.mrb[0].mxu0
        %v4265 = vadd.f32 0.0, %v4264
        %v4266 = vpop.f32.mrb[0].mxu0
        %v4267 = vadd.f32 0.0, %v4266
        %4268 = vmatprep.mubr.bf16.mxu0 0
        %4269 = vmatmul.mubr.bf16.gmra.mrb[0].mxu0 %v746
        %v4270 = vpop.f32.mrb[0].mxu0
        %v4271 = vadd.f32 0.0, %v4270
        %v4272 = vpop.f32.mrb[0].mxu0
        %v4273 = vadd.f32 0.0, %v4272
        %v4274 = vpop.f32.mrb[0].mxu0
        %v4275 = vadd.f32 0.0, %v4274
        %v4276 = vpop.f32.mrb[0].mxu0
        %v4277 = vadd.f32 0.0, %v4276
        %4278 = vmatprep.mubr.bf16.mxu0 0
        %4279 = vmatmul.mubr.bf16.gmra.mrb[0].mxu0 %v749
        %v4280 = vpop.f32.mrb[0].mxu0
        %v4281 = vadd.f32 0.0, %v4280
        %v4282 = vpop.f32.mrb[0].mxu0
        %v4283 = vadd.f32 0.0, %v4282
        %v4284 = vpop.f32.mrb[0].mxu0
        %v4285 = vadd.f32 0.0, %v4284
        %v4286 = vpop.f32.mrb[0].mxu0
        %v4287 = vadd.f32 0.0, %v4286
        %4288 = vmatprep.mubr.bf16.mxu0 0
        %4289 = vmatmul.mubr.bf16.gmra.mrb[0].mxu0 %v752
        %v4290 = vpop.f32.mrb[0].mxu0
        %v4291 = vadd.f32 0.0, %v4290
        %v4292 = vpop.f32.mrb[0].mxu0
        %v4293 = vadd.f32 0.0, %v4292
        %v4294 = vpop.f32.mrb[0].mxu0
        %v4295 = vadd.f32 0.0, %v4294
        %v4296 = vpop.f32.mrb[0].mxu0
        %v4297 = vadd.f32 0.0, %v4296
        %4298 = vmatprep.mubr.bf16.mxu0 0
        %4299 = vmatmul.mubr.bf16.gmra.mrb[0].mxu0 %v755
        %v4300 = vpop.f32.mrb[0].mxu0
        %v4301 = vadd.f32 0.0, %v4300
        %v4302 = vpop.f32.mrb[0].mxu0
        %v4303 = vadd.f32 0.0, %v4302
        %v4304 = vpop.f32.mrb[0].mxu0
        %v4305 = vadd.f32 0.0, %v4304
        %v4306 = vpop.f32.mrb[0].mxu0
        %v4307 = vadd.f32 0.0, %v4306
        %4308 = vmatprep.mubr.bf16.mxu0 0
        %4309 = vmatmul.mubr.bf16.gmra.mrb[0].mxu0 %v758
        %v4310 = vpop.f32.mrb[0].mxu0
        %v4311 = vadd.f32 0.0, %v4310
        %v4312 = vpop.f32.mrb[0].mxu0
        %v4313 = vadd.f32 0.0, %v4312
        %v4314 = vpop.f32.mrb[0].mxu0
        %v4315 = vadd.f32 0.0, %v4314
        %v4316 = vpop.f32.mrb[0].mxu0
        %v4317 = vadd.f32 0.0, %v4316
        %4318 = vmatprep.mubr.bf16.mxu0 0
        %4319 = vmatmul.mubr.bf16.gmra.mrb[0].mxu0 %v761
        %v4320 = vpop.f32.mrb[0].mxu0
        %v4321 = vadd.f32 0.0, %v4320
        %v4322 = vpop.f32.mrb[0].mxu0
        %v4323 = vadd.f32 0.0, %v4322
        %v4324 = vpop.f32.mrb[0].mxu0
        %v4325 = vadd.f32 0.0, %v4324
        %v4326 = vpop.f32.mrb[0].mxu0
        %v4327 = vadd.f32 0.0, %v4326
        %4328 = vmatprep.mubr.bf16.mxu0 0
        %4329 = vmatmul.mubr.bf16.gmra.mrb[0].mxu0 %v764
        %v4330 = vpop.f32.mrb[0].mxu0
        %v4331 = vadd.f32 0.0, %v4330
        %v4332 = vpop.f32.mrb[0].mxu0
        %v4333 = vadd.f32 0.0, %v4332
        %v4334 = vpop.f32.mrb[0].mxu0
        %v4335 = vadd.f32 0.0, %v4334
        %v4336 = vpop.f32.mrb[0].mxu0
        %v4337 = vadd.f32 0.0, %v4336
        %4338 = vmatprep.mubr.bf16.mxu0 0
        %4339 = vmatmul.mubr.bf16.gmra.mrb[0].mxu0 %v767
        %v4340 = vpop.f32.mrb[0].mxu0
        %v4341 = vadd.f32 0.0, %v4340
        %v4342 = vpop.f32.mrb[0].mxu0
        %v4343 = vadd.f32 0.0, %v4342
        %v4344 = vpop.f32.mrb[0].mxu0
        %v4345 = vadd.f32 0.0, %v4344
        %v4346 = vpop.f32.mrb[0].mxu0
        %v4347 = vadd.f32 0.0, %v4346
        %4348 = vmatprep.mubr.bf16.mxu0 0
        %4349 = vmatmul.mubr.bf16.gmra.mrb[0].mxu0 %v770
        %v4350 = vpop.f32.mrb[0].mxu0
        %v4351 = vadd.f32 0.0, %v4350
        %v4352 = vpop.f32.mrb[0].mxu0
        %v4353 = vadd.f32 0.0, %v4352
        %v4354 = vpop.f32.mrb[0].mxu0
        %v4355 = vadd.f32 0.0, %v4354
        %v4356 = vpop.f32.mrb[0].mxu0
        %v4357 = vadd.f32 0.0, %v4356
        %4358 = vmatprep.mubr.bf16.mxu0 0
        %4359 = vmatmul.mubr.bf16.gmra.mrb[0].mxu0 %v773
        %v4360 = vpop.f32.mrb[0].mxu0
        %v4361 = vadd.f32 0.0, %v4360
        %v4362 = vpop.f32.mrb[0].mxu0
        %v4363 = vadd.f32 0.0, %v4362
        %v4364 = vpop.f32.mrb[0].mxu0
        %v4365 = vadd.f32 0.0, %v4364
        %v4366 = vpop.f32.mrb[0].mxu0
        %v4367 = vadd.f32 0.0, %v4366
        %4368 = vmatprep.mubr.bf16.mxu0 0
        %4369 = vmatmul.mubr.bf16.gmra.mrb[0].mxu0 %v776
        %v4370 = vpop.f32.mrb[0].mxu0
        %v4371 = vadd.f32 0.0, %v4370
        %v4372 = vpop.f32.mrb[0].mxu0
        %v4373 = vadd.f32 0.0, %v4372
        %v4374 = vpop.f32.mrb[0].mxu0
        %v4375 = vadd.f32 0.0, %v4374
        %v4376 = vpop.f32.mrb[0].mxu0
        %v4377 = vadd.f32 0.0, %v4376
        %4378 = vmatprep.mubr.bf16.mxu0 0
        %4379 = vmatmul.mubr.bf16.gmra.mrb[0].mxu0 %v779
        %v4380 = vpop.f32.mrb[0].mxu0
        %v4381 = vadd.f32 0.0, %v4380
        %v4382 = vpop.f32.mrb[0].mxu0
        %v4383 = vadd.f32 0.0, %v4382
        %v4384 = vpop.f32.mrb[0].mxu0
        %v4385 = vpop.f32.mrb[0].mxu0
        %4386 = vdwg.mxu0
        %v4387 = vpack.c.bf16 %v3355, %v3351
        %v4388 = vpack.c.bf16 %v3357, %v3353
        %v4389 = vpack.c.bf16 %v3365, %v3361
        %v4390 = vpack.c.bf16 %v3367, %v3363
        %v4391 = vpack.c.bf16 %v3375, %v3371
        %v4392 = vpack.c.bf16 %v3377, %v3373
        %v4393 = vpack.c.bf16 %v3385, %v3381
        %v4394 = vpack.c.bf16 %v3387, %v3383
        %v4395 = vpack.c.bf16 %v3395, %v3391
        %v4396 = vpack.c.bf16 %v3397, %v3393
        %v4397 = vpack.c.bf16 %v3405, %v3401
        %v4398 = vpack.c.bf16 %v3407, %v3403
        %v4399 = vpack.c.bf16 %v3415, %v3411
        %v4400 = vpack.c.bf16 %v3417, %v3413
        %v4401 = vpack.c.bf16 %v3425, %v3421
        %v4402 = vpack.c.bf16 %v3427, %v3423
        %v4403 = vpack.c.bf16 %v3435, %v3431
        %v4404 = vpack.c.bf16 %v3437, %v3433
        %v4405 = vpack.c.bf16 %v3445, %v3441
        %v4406 = vpack.c.bf16 %v3447, %v3443
        %v4407 = vpack.c.bf16 %v3455, %v3451
        %v4408 = vpack.c.bf16 %v3457, %v3453
        %v4409 = vpack.c.bf16 %v3465, %v3461
        %v4410 = vpack.c.bf16 %v3467, %v3463
        %v4411 = vpack.c.bf16 %v3475, %v3471
        %v4412 = vpack.c.bf16 %v3477, %v3473
        %v4413 = vpack.c.bf16 %v3485, %v3481
        %v4414 = vpack.c.bf16 %v3487, %v3483
        %v4415 = vpack.c.bf16 %v3495, %v3491
        %v4416 = vpack.c.bf16 %v3497, %v3493
        %v4417 = vpack.c.bf16 %v3505, %v3501
        %v4418 = vpack.c.bf16 %v3507, %v3503
        %v4419 = vpack.c.bf16 %v3515, %v3511
        %v4420 = vpack.c.bf16 %v3517, %v3513
        %v4421 = vpack.c.bf16 %v3525, %v3521
        %v4422 = vpack.c.bf16 %v3527, %v3523
        %v4423 = vpack.c.bf16 %v3535, %v3531
        %v4424 = vpack.c.bf16 %v3537, %v3533
        %v4425 = vpack.c.bf16 %v3545, %v3541
        %v4426 = vpack.c.bf16 %v3547, %v3543
        %v4427 = vpack.c.bf16 %v3555, %v3551
        %v4428 = vpack.c.bf16 %v3557, %v3553
        %v4429 = vpack.c.bf16 %v3565, %v3561
        %v4430 = vpack.c.bf16 %v3567, %v3563
        %v4431 = vpack.c.bf16 %v3575, %v3571
        %v4432 = vpack.c.bf16 %v3577, %v3573
        %v4433 = vpack.c.bf16 %v3585, %v3581
        %v4434 = vpack.c.bf16 %v3587, %v3583
        %v4435 = vpack.c.bf16 %v3595, %v3591
        %v4436 = vpack.c.bf16 %v3597, %v3593
        %v4437 = vpack.c.bf16 %v3605, %v3601
        %v4438 = vpack.c.bf16 %v3607, %v3603
        %v4439 = vpack.c.bf16 %v3615, %v3611
        %v4440 = vpack.c.bf16 %v3617, %v3613
        %v4441 = vpack.c.bf16 %v3625, %v3621
        %v4442 = vpack.c.bf16 %v3627, %v3623
        %v4443 = vpack.c.bf16 %v3635, %v3631
        %v4444 = vpack.c.bf16 %v3637, %v3633
        %v4445 = vpack.c.bf16 %v3645, %v3641
        %v4446 = vpack.c.bf16 %v3647, %v3643
        %v4447 = vpack.c.bf16 %v3655, %v3651
        %v4448 = vpack.c.bf16 %v3657, %v3653
        %v4449 = vpack.c.bf16 %v3665, %v3661
        %v4450 = vpack.c.bf16 %v3667, %v3663
        %v4451 = vpack.c.bf16 %v3675, %v3671
        %v4452 = vpack.c.bf16 %v3677, %v3673
        %v4453 = vpack.c.bf16 %v3685, %v3681
        %v4454 = vpack.c.bf16 %v3687, %v3683
        %v4455 = vpack.c.bf16 %v3695, %v3691
        %v4456 = vpack.c.bf16 %v3697, %v3693
        %v4457 = vpack.c.bf16 %v3705, %v3701
        %v4458 = vpack.c.bf16 %v3707, %v3703
        %v4459 = vpack.c.bf16 %v3715, %v3711
        %v4460 = vpack.c.bf16 %v3717, %v3713
        %v4461 = vpack.c.bf16 %v3725, %v3721
        %v4462 = vpack.c.bf16 %v3727, %v3723
        %v4463 = vpack.c.bf16 %v3735, %v3731
        %v4464 = vpack.c.bf16 %v3737, %v3733
        %v4465 = vpack.c.bf16 %v3745, %v3741
        %v4466 = vpack.c.bf16 %v3747, %v3743
        %v4467 = vpack.c.bf16 %v3755, %v3751
        %v4468 = vpack.c.bf16 %v3757, %v3753
        %v4469 = vpack.c.bf16 %v3765, %v3761
        %v4470 = vpack.c.bf16 %v3767, %v3763
        %v4471 = vpack.c.bf16 %v3775, %v3771
        %v4472 = vpack.c.bf16 %v3777, %v3773
        %v4473 = vpack.c.bf16 %v3785, %v3781
        %v4474 = vpack.c.bf16 %v3787, %v3783
        %v4475 = vpack.c.bf16 %v3795, %v3791
        %v4476 = vpack.c.bf16 %v3797, %v3793
        %v4477 = vpack.c.bf16 %v3805, %v3801
        %v4478 = vpack.c.bf16 %v3807, %v3803
        %v4479 = vpack.c.bf16 %v3815, %v3811
        %v4480 = vpack.c.bf16 %v3817, %v3813
        %v4481 = vpack.c.bf16 %v3825, %v3821
        %v4482 = vpack.c.bf16 %v3827, %v3823
        %v4483 = vpack.c.bf16 %v3835, %v3831
        %v4484 = vpack.c.bf16 %v3837, %v3833
        %v4485 = vpack.c.bf16 %v3845, %v3841
        %v4486 = vpack.c.bf16 %v3847, %v3843
        %v4487 = vpack.c.bf16 %v3855, %v3851
        %v4488 = vpack.c.bf16 %v3857, %v3853
        %v4489 = vpack.c.bf16 %v3865, %v3861
        %v4490 = vpack.c.bf16 %v3867, %v3863
        %v4491 = vpack.c.bf16 %v3875, %v3871
        %v4492 = vpack.c.bf16 %v3877, %v3873
        %v4493 = vpack.c.bf16 %v3885, %v3881
        %v4494 = vpack.c.bf16 %v3887, %v3883
        %v4495 = vpack.c.bf16 %v3895, %v3891
        %v4496 = vpack.c.bf16 %v3897, %v3893
        %v4497 = vpack.c.bf16 %v3905, %v3901
        %v4498 = vpack.c.bf16 %v3907, %v3903
        %v4499 = vpack.c.bf16 %v3915, %v3911
        %v4500 = vpack.c.bf16 %v3917, %v3913
        %v4501 = vpack.c.bf16 %v3925, %v3921
        %v4502 = vpack.c.bf16 %v3927, %v3923
        %v4503 = vpack.c.bf16 %v3935, %v3931
        %v4504 = vpack.c.bf16 %v3937, %v3933
        %v4505 = vpack.c.bf16 %v3945, %v3941
        %v4506 = vpack.c.bf16 %v3947, %v3943
        %v4507 = vpack.c.bf16 %v3955, %v3951
        %v4508 = vpack.c.bf16 %v3957, %v3953
        %v4509 = vpack.c.bf16 %v3965, %v3961
        %v4510 = vpack.c.bf16 %v3967, %v3963
        %v4511 = vpack.c.bf16 %v3975, %v3971
        %v4512 = vpack.c.bf16 %v3977, %v3973
        %v4513 = vpack.c.bf16 %v3985, %v3981
        %v4514 = vpack.c.bf16 %v3987, %v3983
        %v4515 = vpack.c.bf16 %v3995, %v3991
        %v4516 = vpack.c.bf16 %v3997, %v3993
        %v4517 = vpack.c.bf16 %v4005, %v4001
        %v4518 = vpack.c.bf16 %v4007, %v4003
        %v4519 = vpack.c.bf16 %v4015, %v4011
        %v4520 = vpack.c.bf16 %v4017, %v4013
        %v4521 = vpack.c.bf16 %v4025, %v4021
        %v4522 = vpack.c.bf16 %v4027, %v4023
        %v4523 = vpack.c.bf16 %v4035, %v4031
        %v4524 = vpack.c.bf16 %v4037, %v4033
        %v4525 = vpack.c.bf16 %v4045, %v4041
        %v4526 = vpack.c.bf16 %v4047, %v4043
        %v4527 = vpack.c.bf16 %v4055, %v4051
        %v4528 = vpack.c.bf16 %v4057, %v4053
        %v4529 = vpack.c.bf16 %v4065, %v4061
        %v4530 = vpack.c.bf16 %v4067, %v4063
        %v4531 = vpack.c.bf16 %v4075, %v4071
        %v4532 = vpack.c.bf16 %v4077, %v4073
        %v4533 = vpack.c.bf16 %v4085, %v4081
        %v4534 = vpack.c.bf16 %v4087, %v4083
        %v4535 = vpack.c.bf16 %v4095, %v4091
        %v4536 = vpack.c.bf16 %v4097, %v4093
        %v4537 = vpack.c.bf16 %v4105, %v4101
        %v4538 = vpack.c.bf16 %v4107, %v4103
        %v4539 = vpack.c.bf16 %v4115, %v4111
        %v4540 = vpack.c.bf16 %v4117, %v4113
        %v4541 = vpack.c.bf16 %v4125, %v4121
        %v4542 = vpack.c.bf16 %v4127, %v4123
        %v4543 = vpack.c.bf16 %v4135, %v4131
        %v4544 = vpack.c.bf16 %v4137, %v4133
        %v4545 = vpack.c.bf16 %v4145, %v4141
        %v4546 = vpack.c.bf16 %v4147, %v4143
        %v4547 = vpack.c.bf16 %v4155, %v4151
        %v4548 = vpack.c.bf16 %v4157, %v4153
        %v4549 = vpack.c.bf16 %v4165, %v4161
        %v4550 = vpack.c.bf16 %v4167, %v4163
        %v4551 = vpack.c.bf16 %v4175, %v4171
        %v4552 = vpack.c.bf16 %v4177, %v4173
        %v4553 = vpack.c.bf16 %v4185, %v4181
        %v4554 = vpack.c.bf16 %v4187, %v4183
        %v4555 = vpack.c.bf16 %v4195, %v4191
        %v4556 = vpack.c.bf16 %v4197, %v4193
        %v4557 = vpack.c.bf16 %v4205, %v4201
        %v4558 = vpack.c.bf16 %v4207, %v4203
        %v4559 = vpack.c.bf16 %v4215, %v4211
        %v4560 = vpack.c.bf16 %v4217, %v4213
        %v4561 = vpack.c.bf16 %v4225, %v4221
        %v4562 = vpack.c.bf16 %v4227, %v4223
        %v4563 = vpack.c.bf16 %v4235, %v4231
        %v4564 = vpack.c.bf16 %v4237, %v4233
        %v4565 = vpack.c.bf16 %v4245, %v4241
        %v4566 = vpack.c.bf16 %v4247, %v4243
        %v4567 = vpack.c.bf16 %v4255, %v4251
        %v4568 = vpack.c.bf16 %v4257, %v4253
        %v4569 = vpack.c.bf16 %v4265, %v4261
        %v4570 = vpack.c.bf16 %v4267, %v4263
        %v4571 = vpack.c.bf16 %v4275, %v4271
        %v4572 = vpack.c.bf16 %v4277, %v4273
        %v4573 = vpack.c.bf16 %v4285, %v4281
        %v4574 = vpack.c.bf16 %v4287, %v4283
        %v4575 = vpack.c.bf16 %v4295, %v4291
        %v4576 = vpack.c.bf16 %v4297, %v4293
        %v4577 = vpack.c.bf16 %v4305, %v4301
        %v4578 = vpack.c.bf16 %v4307, %v4303
        %v4579 = vpack.c.bf16 %v4315, %v4311
        %v4580 = vpack.c.bf16 %v4317, %v4313
        %v4581 = vpack.c.bf16 %v4325, %v4321
        %v4582 = vpack.c.bf16 %v4327, %v4323
        %v4583 = vpack.c.bf16 %v4335, %v4331
        %v4584 = vpack.c.bf16 %v4337, %v4333
        %v4585 = vpack.c.bf16 %v4345, %v4341
        %v4586 = vpack.c.bf16 %v4347, %v4343
        %v4587 = vpack.c.bf16 %v4355, %v4351
        %v4588 = vpack.c.bf16 %v4357, %v4353
        %v4589 = vpack.c.bf16 %v4365, %v4361
        %v4590 = vpack.c.bf16 %v4367, %v4363
        %v4591 = vpack.c.bf16 %v4375, %v4371
        %v4592 = vpack.c.bf16 %v4377, %v4373
        %v4593 = vpack.c.bf16 %v4381, %v4381
        %v4594 = vpack.c.bf16 %v4383, %v4383
        %v4803 = vunpack.c.l.b16 %v4387
        %v4804 = vunpack.c.l.b16 %v4388
        %v4805 = vunpack.c.h.b16 %v4387
        %v4806 = vunpack.c.h.b16 %v4388
        %v4807 = vunpack.c.l.b16 %v4389
        %v4808 = vunpack.c.l.b16 %v4390
        %v4809 = vunpack.c.h.b16 %v4389
        %v4810 = vunpack.c.h.b16 %v4390
        %v4811 = vunpack.c.l.b16 %v4391
        %v4812 = vunpack.c.l.b16 %v4392
        %v4813 = vunpack.c.h.b16 %v4391
        %v4814 = vunpack.c.h.b16 %v4392
        %v4815 = vunpack.c.l.b16 %v4393
        %v4816 = vunpack.c.l.b16 %v4394
        %v4817 = vunpack.c.h.b16 %v4393
        %v4818 = vunpack.c.h.b16 %v4394
        %v4819 = vunpack.c.l.b16 %v4395
        %v4820 = vunpack.c.l.b16 %v4396
        %v4821 = vunpack.c.h.b16 %v4395
        %v4822 = vunpack.c.h.b16 %v4396
        %v4823 = vunpack.c.l.b16 %v4397
        %v4824 = vunpack.c.l.b16 %v4398
        %v4825 = vunpack.c.h.b16 %v4397
        %v4826 = vunpack.c.h.b16 %v4398
        %v4827 = vunpack.c.l.b16 %v4399
        %v4828 = vunpack.c.l.b16 %v4400
        %v4829 = vunpack.c.h.b16 %v4399
        %v4830 = vunpack.c.h.b16 %v4400
        %v4831 = vunpack.c.l.b16 %v4401
        %v4832 = vunpack.c.l.b16 %v4402
        %v4833 = vunpack.c.h.b16 %v4401
        %v4834 = vunpack.c.h.b16 %v4402
        %v4835 = vunpack.c.l.b16 %v4403
        %v4836 = vunpack.c.l.b16 %v4404
        %v4837 = vunpack.c.h.b16 %v4403
        %v4838 = vunpack.c.h.b16 %v4404
        %v4839 = vunpack.c.l.b16 %v4405
        %v4840 = vunpack.c.l.b16 %v4406
        %v4841 = vunpack.c.h.b16 %v4405
        %v4842 = vunpack.c.h.b16 %v4406
        %v4843 = vunpack.c.l.b16 %v4407
        %v4844 = vunpack.c.l.b16 %v4408
        %v4845 = vunpack.c.h.b16 %v4407
        %v4846 = vunpack.c.h.b16 %v4408
        %v4847 = vunpack.c.l.b16 %v4409
        %v4848 = vunpack.c.l.b16 %v4410
        %v4849 = vunpack.c.h.b16 %v4409
        %v4850 = vunpack.c.h.b16 %v4410
        %v4851 = vunpack.c.l.b16 %v4411
        %v4852 = vunpack.c.l.b16 %v4412
        %v4853 = vunpack.c.h.b16 %v4411
        %v4854 = vunpack.c.h.b16 %v4412
        %v4855 = vunpack.c.l.b16 %v4413
        %v4856 = vunpack.c.l.b16 %v4414
        %v4857 = vunpack.c.h.b16 %v4413
        %v4858 = vunpack.c.h.b16 %v4414
        %v4859 = vunpack.c.l.b16 %v4415
        %v4860 = vunpack.c.l.b16 %v4416
        %v4861 = vunpack.c.h.b16 %v4415
        %v4862 = vunpack.c.h.b16 %v4416
        %v4863 = vunpack.c.l.b16 %v4417
        %v4864 = vunpack.c.l.b16 %v4418
        %v4865 = vunpack.c.h.b16 %v4417
        %v4866 = vunpack.c.h.b16 %v4418
        %v4867 = vunpack.c.l.b16 %v4419
        %v4868 = vunpack.c.l.b16 %v4420
        %v4869 = vunpack.c.h.b16 %v4419
        %v4870 = vunpack.c.h.b16 %v4420
        %v4871 = vunpack.c.l.b16 %v4421
        %v4872 = vunpack.c.l.b16 %v4422
        %v4873 = vunpack.c.h.b16 %v4421
        %v4874 = vunpack.c.h.b16 %v4422
        %v4875 = vunpack.c.l.b16 %v4423
        %v4876 = vunpack.c.l.b16 %v4424
        %v4877 = vunpack.c.h.b16 %v4423
        %v4878 = vunpack.c.h.b16 %v4424
        %v4879 = vunpack.c.l.b16 %v4425
        %v4880 = vunpack.c.l.b16 %v4426
        %v4881 = vunpack.c.h.b16 %v4425
        %v4882 = vunpack.c.h.b16 %v4426
        %v4883 = vunpack.c.l.b16 %v4427
        %v4884 = vunpack.c.l.b16 %v4428
        %v4885 = vunpack.c.h.b16 %v4427
        %v4886 = vunpack.c.h.b16 %v4428
        %v4887 = vunpack.c.l.b16 %v4429
        %v4888 = vunpack.c.l.b16 %v4430
        %v4889 = vunpack.c.h.b16 %v4429
        %v4890 = vunpack.c.h.b16 %v4430
        %v4891 = vunpack.c.l.b16 %v4431
        %v4892 = vunpack.c.l.b16 %v4432
        %v4893 = vunpack.c.h.b16 %v4431
        %v4894 = vunpack.c.h.b16 %v4432
        %v4895 = vunpack.c.l.b16 %v4433
        %v4896 = vunpack.c.l.b16 %v4434
        %v4897 = vunpack.c.h.b16 %v4433
        %v4898 = vunpack.c.h.b16 %v4434
        %v4899 = vunpack.c.l.b16 %v4435
        %v4900 = vunpack.c.l.b16 %v4436
        %v4901 = vunpack.c.h.b16 %v4435
        %v4902 = vunpack.c.h.b16 %v4436
        %v4903 = vunpack.c.l.b16 %v4437
        %v4904 = vunpack.c.l.b16 %v4438
        %v4905 = vunpack.c.h.b16 %v4437
        %v4906 = vunpack.c.h.b16 %v4438
        %v4907 = vunpack.c.l.b16 %v4439
        %v4908 = vunpack.c.l.b16 %v4440
        %v4909 = vunpack.c.h.b16 %v4439
        %v4910 = vunpack.c.h.b16 %v4440
        %v4911 = vunpack.c.l.b16 %v4441
        %v4912 = vunpack.c.l.b16 %v4442
        %v4913 = vunpack.c.h.b16 %v4441
        %v4914 = vunpack.c.h.b16 %v4442
        %v4915 = vunpack.c.l.b16 %v4443
        %v4916 = vunpack.c.l.b16 %v4444
        %v4917 = vunpack.c.h.b16 %v4443
        %v4918 = vunpack.c.h.b16 %v4444
        %v4919 = vunpack.c.l.b16 %v4445
        %v4920 = vunpack.c.l.b16 %v4446
        %v4921 = vunpack.c.h.b16 %v4445
        %v4922 = vunpack.c.h.b16 %v4446
        %v4923 = vunpack.c.l.b16 %v4447
        %v4924 = vunpack.c.l.b16 %v4448
        %v4925 = vunpack.c.h.b16 %v4447
        %v4926 = vunpack.c.h.b16 %v4448
        %v4927 = vunpack.c.l.b16 %v4449
        %v4928 = vunpack.c.l.b16 %v4450
        %v4929 = vunpack.c.h.b16 %v4449
        %v4930 = vunpack.c.h.b16 %v4450
        %v4931 = vunpack.c.l.b16 %v4451
        %v4932 = vunpack.c.l.b16 %v4452
        %v4933 = vunpack.c.h.b16 %v4451
        %v4934 = vunpack.c.h.b16 %v4452
        %v4935 = vunpack.c.l.b16 %v4453
        %v4936 = vunpack.c.l.b16 %v4454
        %v4937 = vunpack.c.h.b16 %v4453
        %v4938 = vunpack.c.h.b16 %v4454
        %v4939 = vunpack.c.l.b16 %v4455
        %v4940 = vunpack.c.l.b16 %v4456
        %v4941 = vunpack.c.h.b16 %v4455
        %v4942 = vunpack.c.h.b16 %v4456
        %v4943 = vunpack.c.l.b16 %v4457
        %v4944 = vunpack.c.l.b16 %v4458
        %v4945 = vunpack.c.h.b16 %v4457
        %v4946 = vunpack.c.h.b16 %v4458
        %v4947 = vunpack.c.l.b16 %v4459
        %v4948 = vunpack.c.l.b16 %v4460
        %v4949 = vunpack.c.h.b16 %v4459
        %v4950 = vunpack.c.h.b16 %v4460
        %v4951 = vunpack.c.l.b16 %v4461
        %v4952 = vunpack.c.l.b16 %v4462
        %v4953 = vunpack.c.h.b16 %v4461
        %v4954 = vunpack.c.h.b16 %v4462
        %v4955 = vunpack.c.l.b16 %v4463
        %v4956 = vunpack.c.l.b16 %v4464
        %v4957 = vunpack.c.h.b16 %v4463
        %v4958 = vunpack.c.h.b16 %v4464
        %v4959 = vunpack.c.l.b16 %v4465
        %v4960 = vunpack.c.l.b16 %v4466
        %v4961 = vunpack.c.h.b16 %v4465
        %v4962 = vunpack.c.h.b16 %v4466
        %v4963 = vunpack.c.l.b16 %v4467
        %v4964 = vunpack.c.l.b16 %v4468
        %v4965 = vunpack.c.h.b16 %v4467
        %v4966 = vunpack.c.h.b16 %v4468
        %v4967 = vunpack.c.l.b16 %v4469
        %v4968 = vunpack.c.l.b16 %v4470
        %v4969 = vunpack.c.h.b16 %v4469
        %v4970 = vunpack.c.h.b16 %v4470
        %v4971 = vunpack.c.l.b16 %v4471
        %v4972 = vunpack.c.l.b16 %v4472
        %v4973 = vunpack.c.h.b16 %v4471
        %v4974 = vunpack.c.h.b16 %v4472
        %v4975 = vunpack.c.l.b16 %v4473
        %v4976 = vunpack.c.l.b16 %v4474
        %v4977 = vunpack.c.h.b16 %v4473
        %v4978 = vunpack.c.h.b16 %v4474
        %v4979 = vunpack.c.l.b16 %v4475
        %v4980 = vunpack.c.l.b16 %v4476
        %v4981 = vunpack.c.h.b16 %v4475
        %v4982 = vunpack.c.h.b16 %v4476
        %v4983 = vunpack.c.l.b16 %v4477
        %v4984 = vunpack.c.l.b16 %v4478
        %v4985 = vunpack.c.h.b16 %v4477
        %v4986 = vunpack.c.h.b16 %v4478
        %v4987 = vunpack.c.l.b16 %v4479
        %v4988 = vunpack.c.l.b16 %v4480
        %v4989 = vunpack.c.h.b16 %v4479
        %v4990 = vunpack.c.h.b16 %v4480
        %v4991 = vunpack.c.l.b16 %v4481
        %v4992 = vunpack.c.l.b16 %v4482
        %v4993 = vunpack.c.h.b16 %v4481
        %v4994 = vunpack.c.h.b16 %v4482
        %v4995 = vunpack.c.l.b16 %v4483
        %v4996 = vunpack.c.l.b16 %v4484
        %v4997 = vunpack.c.h.b16 %v4483
        %v4998 = vunpack.c.h.b16 %v4484
        %v4999 = vunpack.c.l.b16 %v4485
        %v5000 = vunpack.c.l.b16 %v4486
        %v5001 = vunpack.c.h.b16 %v4485
        %v5002 = vunpack.c.h.b16 %v4486
        %v5003 = vunpack.c.l.b16 %v4487
        %v5004 = vunpack.c.l.b16 %v4488
        %v5005 = vunpack.c.h.b16 %v4487
        %v5006 = vunpack.c.h.b16 %v4488
        %v5007 = vunpack.c.l.b16 %v4489
        %v5008 = vunpack.c.l.b16 %v4490
        %v5009 = vunpack.c.h.b16 %v4489
        %v5010 = vunpack.c.h.b16 %v4490
        %v5011 = vunpack.c.l.b16 %v4491
        %v5012 = vunpack.c.l.b16 %v4492
        %v5013 = vunpack.c.h.b16 %v4491
        %v5014 = vunpack.c.h.b16 %v4492
        %v5015 = vunpack.c.l.b16 %v4493
        %v5016 = vunpack.c.l.b16 %v4494
        %v5017 = vunpack.c.h.b16 %v4493
        %v5018 = vunpack.c.h.b16 %v4494
        %v5019 = vunpack.c.l.b16 %v4495
        %v5020 = vunpack.c.l.b16 %v4496
        %v5021 = vunpack.c.h.b16 %v4495
        %v5022 = vunpack.c.h.b16 %v4496
        %v5023 = vunpack.c.l.b16 %v4497
        %v5024 = vunpack.c.l.b16 %v4498
        %v5025 = vunpack.c.h.b16 %v4497
        %v5026 = vunpack.c.h.b16 %v4498
        %v5027 = vunpack.c.l.b16 %v4499
        %v5028 = vunpack.c.l.b16 %v4500
        %v5029 = vunpack.c.h.b16 %v4499
        %v5030 = vunpack.c.h.b16 %v4500
        %v5031 = vunpack.c.l.b16 %v4501
        %v5032 = vunpack.c.l.b16 %v4502
        %v5033 = vunpack.c.h.b16 %v4501
        %v5034 = vunpack.c.h.b16 %v4502
        %v5035 = vunpack.c.l.b16 %v4503
        %v5036 = vunpack.c.l.b16 %v4504
        %v5037 = vunpack.c.h.b16 %v4503
        %v5038 = vunpack.c.h.b16 %v4504
        %v5039 = vunpack.c.l.b16 %v4505
        %v5040 = vunpack.c.l.b16 %v4506
        %v5041 = vunpack.c.h.b16 %v4505
        %v5042 = vunpack.c.h.b16 %v4506
        %v5043 = vunpack.c.l.b16 %v4507
        %v5044 = vunpack.c.l.b16 %v4508
        %v5045 = vunpack.c.h.b16 %v4507
        %v5046 = vunpack.c.h.b16 %v4508
        %v5047 = vunpack.c.l.b16 %v4509
        %v5048 = vunpack.c.l.b16 %v4510
        %v5049 = vunpack.c.h.b16 %v4509
        %v5050 = vunpack.c.h.b16 %v4510
        %v5051 = vunpack.c.l.b16 %v4511
        %v5052 = vunpack.c.l.b16 %v4512
        %v5053 = vunpack.c.h.b16 %v4511
        %v5054 = vunpack.c.h.b16 %v4512
        %v5055 = vunpack.c.l.b16 %v4513
        %v5056 = vunpack.c.l.b16 %v4514
        %v5057 = vunpack.c.h.b16 %v4513
        %v5058 = vunpack.c.h.b16 %v4514
        %v5059 = vunpack.c.l.b16 %v4515
        %v5060 = vunpack.c.l.b16 %v4516
        %v5061 = vunpack.c.h.b16 %v4515
        %v5062 = vunpack.c.h.b16 %v4516
        %v5063 = vunpack.c.l.b16 %v4517
        %v5064 = vunpack.c.l.b16 %v4518
        %v5065 = vunpack.c.h.b16 %v4517
        %v5066 = vunpack.c.h.b16 %v4518
        %v5067 = vunpack.c.l.b16 %v4519
        %v5068 = vunpack.c.l.b16 %v4520
        %v5069 = vunpack.c.h.b16 %v4519
        %v5070 = vunpack.c.h.b16 %v4520
        %v5071 = vunpack.c.l.b16 %v4521
        %v5072 = vunpack.c.l.b16 %v4522
        %v5073 = vunpack.c.h.b16 %v4521
        %v5074 = vunpack.c.h.b16 %v4522
        %v5075 = vunpack.c.l.b16 %v4523
        %v5076 = vunpack.c.l.b16 %v4524
        %v5077 = vunpack.c.h.b16 %v4523
        %v5078 = vunpack.c.h.b16 %v4524
        %v5079 = vunpack.c.l.b16 %v4525
        %v5080 = vunpack.c.l.b16 %v4526
        %v5081 = vunpack.c.h.b16 %v4525
        %v5082 = vunpack.c.h.b16 %v4526
        %v5083 = vunpack.c.l.b16 %v4527
        %v5084 = vunpack.c.l.b16 %v4528
        %v5085 = vunpack.c.h.b16 %v4527
        %v5086 = vunpack.c.h.b16 %v4528
        %v5087 = vunpack.c.l.b16 %v4529
        %v5088 = vunpack.c.l.b16 %v4530
        %v5089 = vunpack.c.h.b16 %v4529
        %v5090 = vunpack.c.h.b16 %v4530
        %v5091 = vunpack.c.l.b16 %v4531
        %v5092 = vunpack.c.l.b16 %v4532
        %v5093 = vunpack.c.h.b16 %v4531
        %v5094 = vunpack.c.h.b16 %v4532
        %v5095 = vunpack.c.l.b16 %v4533
        %v5096 = vunpack.c.l.b16 %v4534
        %v5097 = vunpack.c.h.b16 %v4533
        %v5098 = vunpack.c.h.b16 %v4534
        %v5099 = vunpack.c.l.b16 %v4535
        %v5100 = vunpack.c.l.b16 %v4536
        %v5101 = vunpack.c.h.b16 %v4535
        %v5102 = vunpack.c.h.b16 %v4536
        %v5103 = vunpack.c.l.b16 %v4537
        %v5104 = vunpack.c.l.b16 %v4538
        %v5105 = vunpack.c.h.b16 %v4537
        %v5106 = vunpack.c.h.b16 %v4538
        %v5107 = vunpack.c.l.b16 %v4539
        %v5108 = vunpack.c.l.b16 %v4540
        %v5109 = vunpack.c.h.b16 %v4539
        %v5110 = vunpack.c.h.b16 %v4540
        %v5111 = vunpack.c.l.b16 %v4541
        %v5112 = vunpack.c.l.b16 %v4542
        %v5113 = vunpack.c.h.b16 %v4541
        %v5114 = vunpack.c.h.b16 %v4542
        %v5115 = vunpack.c.l.b16 %v4543
        %v5116 = vunpack.c.l.b16 %v4544
        %v5117 = vunpack.c.h.b16 %v4543
        %v5118 = vunpack.c.h.b16 %v4544
        %v5119 = vunpack.c.l.b16 %v4545
        %v5120 = vunpack.c.l.b16 %v4546
        %v5121 = vunpack.c.h.b16 %v4545
        %v5122 = vunpack.c.h.b16 %v4546
        %v5123 = vunpack.c.l.b16 %v4547
        %v5124 = vunpack.c.l.b16 %v4548
        %v5125 = vunpack.c.h.b16 %v4547
        %v5126 = vunpack.c.h.b16 %v4548
        %v5127 = vunpack.c.l.b16 %v4549
        %v5128 = vunpack.c.l.b16 %v4550
        %v5129 = vunpack.c.h.b16 %v4549
        %v5130 = vunpack.c.h.b16 %v4550
        %v5131 = vunpack.c.l.b16 %v4551
        %v5132 = vunpack.c.l.b16 %v4552
        %v5133 = vunpack.c.h.b16 %v4551
        %v5134 = vunpack.c.h.b16 %v4552
        %v5135 = vunpack.c.l.b16 %v4553
        %v5136 = vunpack.c.l.b16 %v4554
        %v5137 = vunpack.c.h.b16 %v4553
        %v5138 = vunpack.c.h.b16 %v4554
        %v5139 = vunpack.c.l.b16 %v4555
        %v5140 = vunpack.c.l.b16 %v4556
        %v5141 = vunpack.c.h.b16 %v4555
        %v5142 = vunpack.c.h.b16 %v4556
        %v5143 = vunpack.c.l.b16 %v4557
        %v5144 = vunpack.c.l.b16 %v4558
        %v5145 = vunpack.c.h.b16 %v4557
        %v5146 = vunpack.c.h.b16 %v4558
        %v5147 = vunpack.c.l.b16 %v4559
        %v5148 = vunpack.c.l.b16 %v4560
        %v5149 = vunpack.c.h.b16 %v4559
        %v5150 = vunpack.c.h.b16 %v4560
        %v5151 = vunpack.c.l.b16 %v4561
        %v5152 = vunpack.c.l.b16 %v4562
        %v5153 = vunpack.c.h.b16 %v4561
        %v5154 = vunpack.c.h.b16 %v4562
        %v5155 = vunpack.c.l.b16 %v4563
        %v5156 = vunpack.c.l.b16 %v4564
        %v5157 = vunpack.c.h.b16 %v4563
        %v5158 = vunpack.c.h.b16 %v4564
        %v5159 = vunpack.c.l.b16 %v4565
        %v5160 = vunpack.c.l.b16 %v4566
        %v5161 = vunpack.c.h.b16 %v4565
        %v5162 = vunpack.c.h.b16 %v4566
        %v5163 = vunpack.c.l.b16 %v4567
        %v5164 = vunpack.c.l.b16 %v4568
        %v5165 = vunpack.c.h.b16 %v4567
        %v5166 = vunpack.c.h.b16 %v4568
        %v5167 = vunpack.c.l.b16 %v4569
        %v5168 = vunpack.c.l.b16 %v4570
        %v5169 = vunpack.c.h.b16 %v4569
        %v5170 = vunpack.c.h.b16 %v4570
        %v5171 = vunpack.c.l.b16 %v4571
        %v5172 = vunpack.c.l.b16 %v4572
        %v5173 = vunpack.c.h.b16 %v4571
        %v5174 = vunpack.c.h.b16 %v4572
        %v5175 = vunpack.c.l.b16 %v4573
        %v5176 = vunpack.c.l.b16 %v4574
        %v5177 = vunpack.c.h.b16 %v4573
        %v5178 = vunpack.c.h.b16 %v4574
        %v5179 = vunpack.c.l.b16 %v4575
        %v5180 = vunpack.c.l.b16 %v4576
        %v5181 = vunpack.c.h.b16 %v4575
        %v5182 = vunpack.c.h.b16 %v4576
        %v5183 = vunpack.c.l.b16 %v4577
        %v5184 = vunpack.c.l.b16 %v4578
        %v5185 = vunpack.c.h.b16 %v4577
        %v5186 = vunpack.c.h.b16 %v4578
        %v5187 = vunpack.c.l.b16 %v4579
        %v5188 = vunpack.c.l.b16 %v4580
        %v5189 = vunpack.c.h.b16 %v4579
        %v5190 = vunpack.c.h.b16 %v4580
        %v5191 = vunpack.c.l.b16 %v4581
        %v5192 = vunpack.c.l.b16 %v4582
        %v5193 = vunpack.c.h.b16 %v4581
        %v5194 = vunpack.c.h.b16 %v4582
        %v5195 = vunpack.c.l.b16 %v4583
        %v5196 = vunpack.c.l.b16 %v4584
        %v5197 = vunpack.c.h.b16 %v4583
        %v5198 = vunpack.c.h.b16 %v4584
        %v5199 = vunpack.c.l.b16 %v4585
        %v5200 = vunpack.c.l.b16 %v4586
        %v5201 = vunpack.c.h.b16 %v4585
        %v5202 = vunpack.c.h.b16 %v4586
        %v5203 = vunpack.c.l.b16 %v4587
        %v5204 = vunpack.c.l.b16 %v4588
        %v5205 = vunpack.c.h.b16 %v4587
        %v5206 = vunpack.c.h.b16 %v4588
        %v5207 = vunpack.c.l.b16 %v4589
        %v5208 = vunpack.c.l.b16 %v4590
        %v5209 = vunpack.c.h.b16 %v4589
        %v5210 = vunpack.c.h.b16 %v4590
        %v5211 = vunpack.c.l.b16 %v4591
        %v5212 = vunpack.c.l.b16 %v4592
        %v5213 = vunpack.c.h.b16 %v4591
        %v5214 = vunpack.c.h.b16 %v4592
        %v5215 = vunpack.c.l.b16 %v4593
        %v5216 = vunpack.c.l.b16 %v4594
        %v5217 = vpack.c.b16 %v4804, %v4803
        %v5218 = vpack.c.b16 %v4806, %v4805
        %v5219 = vpack.c.b16 %v4808, %v4807
        %v5220 = vpack.c.b16 %v4810, %v4809
        %v5221 = vpack.c.b16 %v4812, %v4811
        %v5222 = vpack.c.b16 %v4814, %v4813
        %v5223 = vpack.c.b16 %v4816, %v4815
        %v5224 = vpack.c.b16 %v4818, %v4817
        %v5225 = vpack.c.b16 %v4820, %v4819
        %v5226 = vpack.c.b16 %v4822, %v4821
        %v5227 = vpack.c.b16 %v4824, %v4823
        %v5228 = vpack.c.b16 %v4826, %v4825
        %v5229 = vpack.c.b16 %v4828, %v4827
        %v5230 = vpack.c.b16 %v4830, %v4829
        %v5231 = vpack.c.b16 %v4832, %v4831
        %v5232 = vpack.c.b16 %v4834, %v4833
        %v5233 = vpack.c.b16 %v4836, %v4835
        %v5234 = vpack.c.b16 %v4838, %v4837
        %v5235 = vpack.c.b16 %v4840, %v4839
        %v5236 = vpack.c.b16 %v4842, %v4841
        %v5237 = vpack.c.b16 %v4844, %v4843
        %v5238 = vpack.c.b16 %v4846, %v4845
        %v5239 = vpack.c.b16 %v4848, %v4847
        %v5240 = vpack.c.b16 %v4850, %v4849
        %v5241 = vpack.c.b16 %v4852, %v4851
        %v5242 = vpack.c.b16 %v4854, %v4853
        %v5243 = vpack.c.b16 %v4856, %v4855
        %v5244 = vpack.c.b16 %v4858, %v4857
        %v5245 = vpack.c.b16 %v4860, %v4859
        %v5246 = vpack.c.b16 %v4862, %v4861
        %v5247 = vpack.c.b16 %v4864, %v4863
        %v5248 = vpack.c.b16 %v4866, %v4865
        %v5249 = vpack.c.b16 %v4868, %v4867
        %v5250 = vpack.c.b16 %v4870, %v4869
        %v5251 = vpack.c.b16 %v4872, %v4871
        %v5252 = vpack.c.b16 %v4874, %v4873
        %v5253 = vpack.c.b16 %v4876, %v4875
        %v5254 = vpack.c.b16 %v4878, %v4877
        %v5255 = vpack.c.b16 %v4880, %v4879
        %v5256 = vpack.c.b16 %v4882, %v4881
        %v5257 = vpack.c.b16 %v4884, %v4883
        %v5258 = vpack.c.b16 %v4886, %v4885
        %v5259 = vpack.c.b16 %v4888, %v4887
        %v5260 = vpack.c.b16 %v4890, %v4889
        %v5261 = vpack.c.b16 %v4892, %v4891
        %v5262 = vpack.c.b16 %v4894, %v4893
        %v5263 = vpack.c.b16 %v4896, %v4895
        %v5264 = vpack.c.b16 %v4898, %v4897
        %v5265 = vpack.c.b16 %v4900, %v4899
        %v5266 = vpack.c.b16 %v4902, %v4901
        %v5267 = vpack.c.b16 %v4904, %v4903
        %v5268 = vpack.c.b16 %v4906, %v4905
        %v5269 = vpack.c.b16 %v4908, %v4907
        %v5270 = vpack.c.b16 %v4910, %v4909
        %v5271 = vpack.c.b16 %v4912, %v4911
        %v5272 = vpack.c.b16 %v4914, %v4913
        %v5273 = vpack.c.b16 %v4916, %v4915
        %v5274 = vpack.c.b16 %v4918, %v4917
        %v5275 = vpack.c.b16 %v4920, %v4919
        %v5276 = vpack.c.b16 %v4922, %v4921
        %v5277 = vpack.c.b16 %v4924, %v4923
        %v5278 = vpack.c.b16 %v4926, %v4925
        %v5279 = vpack.c.b16 %v4928, %v4927
        %v5280 = vpack.c.b16 %v4930, %v4929
        %v5281 = vpack.c.b16 %v4932, %v4931
        %v5282 = vpack.c.b16 %v4934, %v4933
        %v5283 = vpack.c.b16 %v4936, %v4935
        %v5284 = vpack.c.b16 %v4938, %v4937
        %v5285 = vpack.c.b16 %v4940, %v4939
        %v5286 = vpack.c.b16 %v4942, %v4941
        %v5287 = vpack.c.b16 %v4944, %v4943
        %v5288 = vpack.c.b16 %v4946, %v4945
        %v5289 = vpack.c.b16 %v4948, %v4947
        %v5290 = vpack.c.b16 %v4950, %v4949
        %v5291 = vpack.c.b16 %v4952, %v4951
        %v5292 = vpack.c.b16 %v4954, %v4953
        %v5293 = vpack.c.b16 %v4956, %v4955
        %v5294 = vpack.c.b16 %v4958, %v4957
        %v5295 = vpack.c.b16 %v4960, %v4959
        %v5296 = vpack.c.b16 %v4962, %v4961
        %v5297 = vpack.c.b16 %v4964, %v4963
        %v5298 = vpack.c.b16 %v4966, %v4965
        %v5299 = vpack.c.b16 %v4968, %v4967
        %v5300 = vpack.c.b16 %v4970, %v4969
        %v5301 = vpack.c.b16 %v4972, %v4971
        %v5302 = vpack.c.b16 %v4974, %v4973
        %v5303 = vpack.c.b16 %v4976, %v4975
        %v5304 = vpack.c.b16 %v4978, %v4977
        %v5305 = vpack.c.b16 %v4980, %v4979
        %v5306 = vpack.c.b16 %v4982, %v4981
        %v5307 = vpack.c.b16 %v4984, %v4983
        %v5308 = vpack.c.b16 %v4986, %v4985
        %v5309 = vpack.c.b16 %v4988, %v4987
        %v5310 = vpack.c.b16 %v4990, %v4989
        %v5311 = vpack.c.b16 %v4992, %v4991
        %v5312 = vpack.c.b16 %v4994, %v4993
        %v5313 = vpack.c.b16 %v4996, %v4995
        %v5314 = vpack.c.b16 %v4998, %v4997
        %v5315 = vpack.c.b16 %v5000, %v4999
        %v5316 = vpack.c.b16 %v5002, %v5001
        %v5317 = vpack.c.b16 %v5004, %v5003
        %v5318 = vpack.c.b16 %v5006, %v5005
        %v5319 = vpack.c.b16 %v5008, %v5007
        %v5320 = vpack.c.b16 %v5010, %v5009
        %v5321 = vpack.c.b16 %v5012, %v5011
        %v5322 = vpack.c.b16 %v5014, %v5013
        %v5323 = vpack.c.b16 %v5016, %v5015
        %v5324 = vpack.c.b16 %v5018, %v5017
        %v5325 = vpack.c.b16 %v5020, %v5019
        %v5326 = vpack.c.b16 %v5022, %v5021
        %v5327 = vpack.c.b16 %v5024, %v5023
        %v5328 = vpack.c.b16 %v5026, %v5025
        %v5329 = vpack.c.b16 %v5028, %v5027
        %v5330 = vpack.c.b16 %v5030, %v5029
        %v5331 = vpack.c.b16 %v5032, %v5031
        %v5332 = vpack.c.b16 %v5034, %v5033
        %v5333 = vpack.c.b16 %v5036, %v5035
        %v5334 = vpack.c.b16 %v5038, %v5037
        %v5335 = vpack.c.b16 %v5040, %v5039
        %v5336 = vpack.c.b16 %v5042, %v5041
        %v5337 = vpack.c.b16 %v5044, %v5043
        %v5338 = vpack.c.b16 %v5046, %v5045
        %v5339 = vpack.c.b16 %v5048, %v5047
        %v5340 = vpack.c.b16 %v5050, %v5049
        %v5341 = vpack.c.b16 %v5052, %v5051
        %v5342 = vpack.c.b16 %v5054, %v5053
        %v5343 = vpack.c.b16 %v5056, %v5055
        %v5344 = vpack.c.b16 %v5058, %v5057
        %v5345 = vpack.c.b16 %v5060, %v5059
        %v5346 = vpack.c.b16 %v5062, %v5061
        %v5347 = vpack.c.b16 %v5064, %v5063
        %v5348 = vpack.c.b16 %v5066, %v5065
        %v5349 = vpack.c.b16 %v5068, %v5067
        %v5350 = vpack.c.b16 %v5070, %v5069
        %v5351 = vpack.c.b16 %v5072, %v5071
        %v5352 = vpack.c.b16 %v5074, %v5073
        %v5353 = vpack.c.b16 %v5076, %v5075
        %v5354 = vpack.c.b16 %v5078, %v5077
        %v5355 = vpack.c.b16 %v5080, %v5079
        %v5356 = vpack.c.b16 %v5082, %v5081
        %v5357 = vpack.c.b16 %v5084, %v5083
        %v5358 = vpack.c.b16 %v5086, %v5085
        %v5359 = vpack.c.b16 %v5088, %v5087
        %v5360 = vpack.c.b16 %v5090, %v5089
        %v5361 = vpack.c.b16 %v5092, %v5091
        %v5362 = vpack.c.b16 %v5094, %v5093
        %v5363 = vpack.c.b16 %v5096, %v5095
        %v5364 = vpack.c.b16 %v5098, %v5097
        %v5365 = vpack.c.b16 %v5100, %v5099
        %v5366 = vpack.c.b16 %v5102, %v5101
        %v5367 = vpack.c.b16 %v5104, %v5103
        %v5368 = vpack.c.b16 %v5106, %v5105
        %v5369 = vpack.c.b16 %v5108, %v5107
        %v5370 = vpack.c.b16 %v5110, %v5109
        %v5371 = vpack.c.b16 %v5112, %v5111
        %v5372 = vpack.c.b16 %v5114, %v5113
        %v5373 = vpack.c.b16 %v5116, %v5115
        %v5374 = vpack.c.b16 %v5118, %v5117
        %v5375 = vpack.c.b16 %v5120, %v5119
        %v5376 = vpack.c.b16 %v5122, %v5121
        %v5377 = vpack.c.b16 %v5124, %v5123
        %v5378 = vpack.c.b16 %v5126, %v5125
        %v5379 = vpack.c.b16 %v5128, %v5127
        %v5380 = vpack.c.b16 %v5130, %v5129
        %v5381 = vpack.c.b16 %v5132, %v5131
        %v5382 = vpack.c.b16 %v5134, %v5133
        %v5383 = vpack.c.b16 %v5136, %v5135
        %v5384 = vpack.c.b16 %v5138, %v5137
        %v5385 = vpack.c.b16 %v5140, %v5139
        %v5386 = vpack.c.b16 %v5142, %v5141
        %v5387 = vpack.c.b16 %v5144, %v5143
        %v5388 = vpack.c.b16 %v5146, %v5145
        %v5389 = vpack.c.b16 %v5148, %v5147
        %v5390 = vpack.c.b16 %v5150, %v5149
        %v5391 = vpack.c.b16 %v5152, %v5151
        %v5392 = vpack.c.b16 %v5154, %v5153
        %v5393 = vpack.c.b16 %v5156, %v5155
        %v5394 = vpack.c.b16 %v5158, %v5157
        %v5395 = vpack.c.b16 %v5160, %v5159
        %v5396 = vpack.c.b16 %v5162, %v5161
        %v5397 = vpack.c.b16 %v5164, %v5163
        %v5398 = vpack.c.b16 %v5166, %v5165
        %v5399 = vpack.c.b16 %v5168, %v5167
        %v5400 = vpack.c.b16 %v5170, %v5169
        %v5401 = vpack.c.b16 %v5172, %v5171
        %v5402 = vpack.c.b16 %v5174, %v5173
        %v5403 = vpack.c.b16 %v5176, %v5175
        %v5404 = vpack.c.b16 %v5178, %v5177
        %v5405 = vpack.c.b16 %v5180, %v5179
        %v5406 = vpack.c.b16 %v5182, %v5181
        %v5407 = vpack.c.b16 %v5184, %v5183
        %v5408 = vpack.c.b16 %v5186, %v5185
        %v5409 = vpack.c.b16 %v5188, %v5187
        %v5410 = vpack.c.b16 %v5190, %v5189
        %v5411 = vpack.c.b16 %v5192, %v5191
        %v5412 = vpack.c.b16 %v5194, %v5193
        %v5413 = vpack.c.b16 %v5196, %v5195
        %v5414 = vpack.c.b16 %v5198, %v5197
        %v5415 = vpack.c.b16 %v5200, %v5199
        %v5416 = vpack.c.b16 %v5202, %v5201
        %v5417 = vpack.c.b16 %v5204, %v5203
        %v5418 = vpack.c.b16 %v5206, %v5205
        %v5419 = vpack.c.b16 %v5208, %v5207
        %v5420 = vpack.c.b16 %v5210, %v5209
        %v5421 = vpack.c.b16 %v5212, %v5211
        %v5422 = vpack.c.b16 %v5214, %v5213
        %v5423 = vpack.c.b16 %v5216, %v5215
        %s5631 = scalar_lea.vmem %s165, 1656
        %5632 = vst [vmem:[%s5631] sm:$0xff] %v5217
        %5633 = vst [vmem:[%s5631 + $0x8] sm:$0xff] %v5218
        %5634 = vst [vmem:[%s5631 + $0x10] sm:$0xff] %v5219
        %5635 = vst [vmem:[%s5631 + $0x18] sm:$0xff] %v5220
        %5636 = vst [vmem:[%s5631 + $0x20] sm:$0xff] %v5221
        %5637 = vst [vmem:[%s5631 + $0x28] sm:$0xff] %v5222
        %5638 = vst [vmem:[%s5631 + $0x30] sm:$0xff] %v5223
        %5639 = vst [vmem:[%s5631 + $0x38] sm:$0xff] %v5224
        %5640 = vst [vmem:[%s5631 + $0x40] sm:$0xff] %v5225
        %5641 = vst [vmem:[%s5631 + $0x48] sm:$0xff] %v5226
        %5642 = vst [vmem:[%s5631 + $0x50] sm:$0xff] %v5227
        %5643 = vst [vmem:[%s5631 + $0x58] sm:$0xff] %v5228
        %5644 = vst [vmem:[%s5631 + $0x60] sm:$0xff] %v5229
        %5645 = vst [vmem:[%s5631 + $0x68] sm:$0xff] %v5230
        %5646 = vst [vmem:[%s5631 + $0x70] sm:$0xff] %v5231
        %5647 = vst [vmem:[%s5631 + $0x78] sm:$0xff] %v5232
        %5648 = vst [vmem:[%s5631 + $0x80] sm:$0xff] %v5233
        %5649 = vst [vmem:[%s5631 + $0x88] sm:$0xff] %v5234
        %5650 = vst [vmem:[%s5631 + $0x90] sm:$0xff] %v5235
        %5651 = vst [vmem:[%s5631 + $0x98] sm:$0xff] %v5236
        %5652 = vst [vmem:[%s5631 + $0xa0] sm:$0xff] %v5237
        %5653 = vst [vmem:[%s5631 + $0xa8] sm:$0xff] %v5238
        %5654 = vst [vmem:[%s5631 + $0xb0] sm:$0xff] %v5239
        %5655 = vst [vmem:[%s5631 + $0xb8] sm:$0xff] %v5240
        %5656 = vst [vmem:[%s5631 + $0xc0] sm:$0xff] %v5241
        %5657 = vst [vmem:[%s5631 + $0xc8] sm:$0xff] %v5242
        %5658 = vst [vmem:[%s5631 + $0xd0] sm:$0xff] %v5243
        %5659 = vst [vmem:[%s5631 + $0xd8] sm:$0xff] %v5244
        %5660 = vst [vmem:[%s5631 + $0xe0] sm:$0xff] %v5245
        %5661 = vst [vmem:[%s5631 + $0xe8] sm:$0xff] %v5246
        %5662 = vst [vmem:[%s5631 + $0xf0] sm:$0xff] %v5247
        %5663 = vst [vmem:[%s5631 + $0xf8] sm:$0xff] %v5248
        %5664 = vst [vmem:[%s5631 + $0x100] sm:$0xff] %v5249
        %5665 = vst [vmem:[%s5631 + $0x108] sm:$0xff] %v5250
        %5666 = vst [vmem:[%s5631 + $0x110] sm:$0xff] %v5251
        %5667 = vst [vmem:[%s5631 + $0x118] sm:$0xff] %v5252
        %5668 = vst [vmem:[%s5631 + $0x120] sm:$0xff] %v5253
        %5669 = vst [vmem:[%s5631 + $0x128] sm:$0xff] %v5254
        %5670 = vst [vmem:[%s5631 + $0x130] sm:$0xff] %v5255
        %5671 = vst [vmem:[%s5631 + $0x138] sm:$0xff] %v5256
        %5672 = vst [vmem:[%s5631 + $0x140] sm:$0xff] %v5257
        %5673 = vst [vmem:[%s5631 + $0x148] sm:$0xff] %v5258
        %5674 = vst [vmem:[%s5631 + $0x150] sm:$0xff] %v5259
        %5675 = vst [vmem:[%s5631 + $0x158] sm:$0xff] %v5260
        %5676 = vst [vmem:[%s5631 + $0x160] sm:$0xff] %v5261
        %5677 = vst [vmem:[%s5631 + $0x168] sm:$0xff] %v5262
        %5678 = vst [vmem:[%s5631 + $0x170] sm:$0xff] %v5263
        %5679 = vst [vmem:[%s5631 + $0x178] sm:$0xff] %v5264
        %5680 = vst [vmem:[%s5631 + $0x180] sm:$0xff] %v5265
        %5681 = vst [vmem:[%s5631 + $0x188] sm:$0xff] %v5266
        %5682 = vst [vmem:[%s5631 + $0x190] sm:$0xff] %v5267
        %5683 = vst [vmem:[%s5631 + $0x198] sm:$0xff] %v5268
        %5684 = vst [vmem:[%s5631 + $0x1a0] sm:$0xff] %v5269
        %5685 = vst [vmem:[%s5631 + $0x1a8] sm:$0xff] %v5270
        %5686 = vst [vmem:[%s5631 + $0x1b0] sm:$0xff] %v5271
        %5687 = vst [vmem:[%s5631 + $0x1b8] sm:$0xff] %v5272
        %5688 = vst [vmem:[%s5631 + $0x1c0] sm:$0xff] %v5273
        %5689 = vst [vmem:[%s5631 + $0x1c8] sm:$0xff] %v5274
        %5690 = vst [vmem:[%s5631 + $0x1d0] sm:$0xff] %v5275
        %5691 = vst [vmem:[%s5631 + $0x1d8] sm:$0xff] %v5276
        %5692 = vst [vmem:[%s5631 + $0x1e0] sm:$0xff] %v5277
        %5693 = vst [vmem:[%s5631 + $0x1e8] sm:$0xff] %v5278
        %5694 = vst [vmem:[%s5631 + $0x1f0] sm:$0xff] %v5279
        %5695 = vst [vmem:[%s5631 + $0x1f8] sm:$0xff] %v5280
        %5696 = vst [vmem:[%s5631 + $0x200] sm:$0xff] %v5281
        %5697 = vst [vmem:[%s5631 + $0x208] sm:$0xff] %v5282
        %5698 = vst [vmem:[%s5631 + $0x210] sm:$0xff] %v5283
        %5699 = vst [vmem:[%s5631 + $0x218] sm:$0xff] %v5284
        %5700 = vst [vmem:[%s5631 + $0x220] sm:$0xff] %v5285
        %5701 = vst [vmem:[%s5631 + $0x228] sm:$0xff] %v5286
        %5702 = vst [vmem:[%s5631 + $0x230] sm:$0xff] %v5287
        %5703 = vst [vmem:[%s5631 + $0x238] sm:$0xff] %v5288
        %5704 = vst [vmem:[%s5631 + $0x240] sm:$0xff] %v5289
        %5705 = vst [vmem:[%s5631 + $0x248] sm:$0xff] %v5290
        %5706 = vst [vmem:[%s5631 + $0x250] sm:$0xff] %v5291
        %5707 = vst [vmem:[%s5631 + $0x258] sm:$0xff] %v5292
        %5708 = vst [vmem:[%s5631 + $0x260] sm:$0xff] %v5293
        %5709 = vst [vmem:[%s5631 + $0x268] sm:$0xff] %v5294
        %5710 = vst [vmem:[%s5631 + $0x270] sm:$0xff] %v5295
        %5711 = vst [vmem:[%s5631 + $0x278] sm:$0xff] %v5296
        %5712 = vst [vmem:[%s5631 + $0x280] sm:$0xff] %v5297
        %5713 = vst [vmem:[%s5631 + $0x288] sm:$0xff] %v5298
        %5714 = vst [vmem:[%s5631 + $0x290] sm:$0xff] %v5299
        %5715 = vst [vmem:[%s5631 + $0x298] sm:$0xff] %v5300
        %5716 = vst [vmem:[%s5631 + $0x2a0] sm:$0xff] %v5301
        %5717 = vst [vmem:[%s5631 + $0x2a8] sm:$0xff] %v5302
        %5718 = vst [vmem:[%s5631 + $0x2b0] sm:$0xff] %v5303
        %5719 = vst [vmem:[%s5631 + $0x2b8] sm:$0xff] %v5304
        %5720 = vst [vmem:[%s5631 + $0x2c0] sm:$0xff] %v5305
        %5721 = vst [vmem:[%s5631 + $0x2c8] sm:$0xff] %v5306
        %5722 = vst [vmem:[%s5631 + $0x2d0] sm:$0xff] %v5307
        %5723 = vst [vmem:[%s5631 + $0x2d8] sm:$0xff] %v5308
        %5724 = vst [vmem:[%s5631 + $0x2e0] sm:$0xff] %v5309
        %5725 = vst [vmem:[%s5631 + $0x2e8] sm:$0xff] %v5310
        %5726 = vst [vmem:[%s5631 + $0x2f0] sm:$0xff] %v5311
        %5727 = vst [vmem:[%s5631 + $0x2f8] sm:$0xff] %v5312
        %5728 = vst [vmem:[%s5631 + $0x300] sm:$0xff] %v5313
        %5729 = vst [vmem:[%s5631 + $0x308] sm:$0xff] %v5314
        %5730 = vst [vmem:[%s5631 + $0x310] sm:$0xff] %v5315
        %5731 = vst [vmem:[%s5631 + $0x318] sm:$0xff] %v5316
        %5732 = vst [vmem:[%s5631 + $0x320] sm:$0xff] %v5317
        %5733 = vst [vmem:[%s5631 + $0x328] sm:$0xff] %v5318
        %5734 = vst [vmem:[%s5631 + $0x330] sm:$0xff] %v5319
        %5735 = vst [vmem:[%s5631 + $0x338] sm:$0xff] %v5320
        %5736 = vst [vmem:[%s5631 + $0x340] sm:$0xff] %v5321
        %5737 = vst [vmem:[%s5631 + $0x348] sm:$0xff] %v5322
        %5738 = vst [vmem:[%s5631 + $0x350] sm:$0xff] %v5323
        %5739 = vst [vmem:[%s5631 + $0x358] sm:$0xff] %v5324
        %5740 = vst [vmem:[%s5631 + $0x360] sm:$0xff] %v5325
        %5741 = vst [vmem:[%s5631 + $0x368] sm:$0xff] %v5326
        %5742 = vst [vmem:[%s5631 + $0x370] sm:$0xff] %v5327
        %5743 = vst [vmem:[%s5631 + $0x378] sm:$0xff] %v5328
        %5744 = vst [vmem:[%s5631 + $0x380] sm:$0xff] %v5329
        %5745 = vst [vmem:[%s5631 + $0x388] sm:$0xff] %v5330
        %5746 = vst [vmem:[%s5631 + $0x390] sm:$0xff] %v5331
        %5747 = vst [vmem:[%s5631 + $0x398] sm:$0xff] %v5332
        %5748 = vst [vmem:[%s5631 + $0x3a0] sm:$0xff] %v5333
        %5749 = vst [vmem:[%s5631 + $0x3a8] sm:$0xff] %v5334
        %5750 = vst [vmem:[%s5631 + $0x3b0] sm:$0xff] %v5335
        %5751 = vst [vmem:[%s5631 + $0x3b8] sm:$0xff] %v5336
        %5752 = vst [vmem:[%s5631 + $0x3c0] sm:$0xff] %v5337
        %5753 = vst [vmem:[%s5631 + $0x3c8] sm:$0xff] %v5338
        %5754 = vst [vmem:[%s5631 + $0x3d0] sm:$0xff] %v5339
        %5755 = vst [vmem:[%s5631 + $0x3d8] sm:$0xff] %v5340
        %5756 = vst [vmem:[%s5631 + $0x3e0] sm:$0xff] %v5341
        %5757 = vst [vmem:[%s5631 + $0x3e8] sm:$0xff] %v5342
        %5758 = vst [vmem:[%s5631 + $0x3f0] sm:$0xff] %v5343
        %5759 = vst [vmem:[%s5631 + $0x3f8] sm:$0xff] %v5344
        %5760 = vst [vmem:[%s5631 + $0x400] sm:$0xff] %v5345
        %5761 = vst [vmem:[%s5631 + $0x408] sm:$0xff] %v5346
        %5762 = vst [vmem:[%s5631 + $0x410] sm:$0xff] %v5347
        %5763 = vst [vmem:[%s5631 + $0x418] sm:$0xff] %v5348
        %5764 = vst [vmem:[%s5631 + $0x420] sm:$0xff] %v5349
        %5765 = vst [vmem:[%s5631 + $0x428] sm:$0xff] %v5350
        %5766 = vst [vmem:[%s5631 + $0x430] sm:$0xff] %v5351
        %5767 = vst [vmem:[%s5631 + $0x438] sm:$0xff] %v5352
        %5768 = vst [vmem:[%s5631 + $0x440] sm:$0xff] %v5353
        %5769 = vst [vmem:[%s5631 + $0x448] sm:$0xff] %v5354
        %5770 = vst [vmem:[%s5631 + $0x450] sm:$0xff] %v5355
        %5771 = vst [vmem:[%s5631 + $0x458] sm:$0xff] %v5356
        %5772 = vst [vmem:[%s5631 + $0x460] sm:$0xff] %v5357
        %5773 = vst [vmem:[%s5631 + $0x468] sm:$0xff] %v5358
        %5774 = vst [vmem:[%s5631 + $0x470] sm:$0xff] %v5359
        %5775 = vst [vmem:[%s5631 + $0x478] sm:$0xff] %v5360
        %5776 = vst [vmem:[%s5631 + $0x480] sm:$0xff] %v5361
        %5777 = vst [vmem:[%s5631 + $0x488] sm:$0xff] %v5362
        %5778 = vst [vmem:[%s5631 + $0x490] sm:$0xff] %v5363
        %5779 = vst [vmem:[%s5631 + $0x498] sm:$0xff] %v5364
        %5780 = vst [vmem:[%s5631 + $0x4a0] sm:$0xff] %v5365
        %5781 = vst [vmem:[%s5631 + $0x4a8] sm:$0xff] %v5366
        %5782 = vst [vmem:[%s5631 + $0x4b0] sm:$0xff] %v5367
        %5783 = vst [vmem:[%s5631 + $0x4b8] sm:$0xff] %v5368
        %5784 = vst [vmem:[%s5631 + $0x4c0] sm:$0xff] %v5369
        %5785 = vst [vmem:[%s5631 + $0x4c8] sm:$0xff] %v5370
        %5786 = vst [vmem:[%s5631 + $0x4d0] sm:$0xff] %v5371
        %5787 = vst [vmem:[%s5631 + $0x4d8] sm:$0xff] %v5372
        %5788 = vst [vmem:[%s5631 + $0x4e0] sm:$0xff] %v5373
        %5789 = vst [vmem:[%s5631 + $0x4e8] sm:$0xff] %v5374
        %5790 = vst [vmem:[%s5631 + $0x4f0] sm:$0xff] %v5375
        %5791 = vst [vmem:[%s5631 + $0x4f8] sm:$0xff] %v5376
        %5792 = vst [vmem:[%s5631 + $0x500] sm:$0xff] %v5377
        %5793 = vst [vmem:[%s5631 + $0x508] sm:$0xff] %v5378
        %5794 = vst [vmem:[%s5631 + $0x510] sm:$0xff] %v5379
        %5795 = vst [vmem:[%s5631 + $0x518] sm:$0xff] %v5380
        %5796 = vst [vmem:[%s5631 + $0x520] sm:$0xff] %v5381
        %5797 = vst [vmem:[%s5631 + $0x528] sm:$0xff] %v5382
        %5798 = vst [vmem:[%s5631 + $0x530] sm:$0xff] %v5383
        %5799 = vst [vmem:[%s5631 + $0x538] sm:$0xff] %v5384
        %5800 = vst [vmem:[%s5631 + $0x540] sm:$0xff] %v5385
        %5801 = vst [vmem:[%s5631 + $0x548] sm:$0xff] %v5386
        %5802 = vst [vmem:[%s5631 + $0x550] sm:$0xff] %v5387
        %5803 = vst [vmem:[%s5631 + $0x558] sm:$0xff] %v5388
        %5804 = vst [vmem:[%s5631 + $0x560] sm:$0xff] %v5389
        %5805 = vst [vmem:[%s5631 + $0x568] sm:$0xff] %v5390
        %5806 = vst [vmem:[%s5631 + $0x570] sm:$0xff] %v5391
        %5807 = vst [vmem:[%s5631 + $0x578] sm:$0xff] %v5392
        %5808 = vst [vmem:[%s5631 + $0x580] sm:$0xff] %v5393
        %5809 = vst [vmem:[%s5631 + $0x588] sm:$0xff] %v5394
        %5810 = vst [vmem:[%s5631 + $0x590] sm:$0xff] %v5395
        %5811 = vst [vmem:[%s5631 + $0x598] sm:$0xff] %v5396
        %5812 = vst [vmem:[%s5631 + $0x5a0] sm:$0xff] %v5397
        %5813 = vst [vmem:[%s5631 + $0x5a8] sm:$0xff] %v5398
        %5814 = vst [vmem:[%s5631 + $0x5b0] sm:$0xff] %v5399
        %5815 = vst [vmem:[%s5631 + $0x5b8] sm:$0xff] %v5400
        %5816 = vst [vmem:[%s5631 + $0x5c0] sm:$0xff] %v5401
        %5817 = vst [vmem:[%s5631 + $0x5c8] sm:$0xff] %v5402
        %5818 = vst [vmem:[%s5631 + $0x5d0] sm:$0xff] %v5403
        %5819 = vst [vmem:[%s5631 + $0x5d8] sm:$0xff] %v5404
        %5820 = vst [vmem:[%s5631 + $0x5e0] sm:$0xff] %v5405
        %5821 = vst [vmem:[%s5631 + $0x5e8] sm:$0xff] %v5406
        %5822 = vst [vmem:[%s5631 + $0x5f0] sm:$0xff] %v5407
        %5823 = vst [vmem:[%s5631 + $0x5f8] sm:$0xff] %v5408
        %5824 = vst [vmem:[%s5631 + $0x600] sm:$0xff] %v5409
        %5825 = vst [vmem:[%s5631 + $0x608] sm:$0xff] %v5410
        %5826 = vst [vmem:[%s5631 + $0x610] sm:$0xff] %v5411
        %5827 = vst [vmem:[%s5631 + $0x618] sm:$0xff] %v5412
        %5828 = vst [vmem:[%s5631 + $0x620] sm:$0xff] %v5413
        %5829 = vst [vmem:[%s5631 + $0x628] sm:$0xff] %v5414
        %5830 = vst [vmem:[%s5631 + $0x630] sm:$0xff] %v5415
        %5831 = vst [vmem:[%s5631 + $0x638] sm:$0xff] %v5416
        %5832 = vst [vmem:[%s5631 + $0x640] sm:$0xff] %v5417
        %5833 = vst [vmem:[%s5631 + $0x648] sm:$0xff] %v5418
        %5834 = vst [vmem:[%s5631 + $0x650] sm:$0xff] %v5419
        %5835 = vst [vmem:[%s5631 + $0x658] sm:$0xff] %v5420
        %5836 = vst [vmem:[%s5631 + $0x660] sm:$0xff] %v5421
        %5837 = vst [vmem:[%s5631 + $0x668] sm:$0xff] %v5422
        %5838 = vst [vmem:[%s5631 + $0x670] sm:$0xff] %v5423
        %s5839 = smul.u32 2, %s14
        %p5840 = scmp.lt.s32.totalorder %s5839, 7
        %s5841 = scalar_select %p5840, %s5839, 7
        %s5842 = smul.addr %s5841, 414
        %s5843 = smul.addr %s5842, 4
        %s5844 = scalar_lea.vmem %s2, %s5843
        // Predicated region
        $region33: #{game_of_life_rules_forward.1} parent=27 // pred_check
          %p5845 = pneg %p79
        $region34: #{game_of_life_rules_forward.1} parent=27 // pred_check_branch
          %5847 = sbr.rel (%p5845) target = $region36
        $region35: #{game_of_life_rules_forward.1} parent=27 // pred_region
          %s5848 = smul.u32 2, %s14
        $region36: #{game_of_life_rules_forward.1} parent=27 // pred_fallthru
          _
      $region28: #{game_of_life_rules_forward.1} parent=5 // pred_fallthru
        _
      %p5849 = scmp.le.s32.totalorder 2, %s9
      // Predicated region
      $region37: #{game_of_life_rules_forward.1} parent=5 // pred_check
        %p5850 = pneg %p5849
      $region38: #{game_of_life_rules_forward.1} parent=5 // pred_check_branch
        %5852 = sbr.rel (%p5850) target = $region40
      $region39: #{game_of_life_rules_forward.1} parent=5 // pred_region
        %s5853 = ssub.s32 %s9, 2
        // Predicated region
        $region41: #{game_of_life_rules_forward.1} parent=39 // pred_check
          %p5854 = pneg %p85
        $region42: #{game_of_life_rules_forward.1} parent=39 // pred_check_branch
          %5856 = sbr.rel (%p5854) target = $region44
        $region43: #{game_of_life_rules_forward.1} parent=39 // pred_region
          %s5857 = smul.u32 2, %s15
          %p5858 = scmp.lt.s32.totalorder %s5857, 7
          %s5859 = scalar_select %p5858, %s5857, 7
          %s5860 = smul.addr %s5859, 414
          %s5861 = smul.addr %s5860, 4
          %s5862 = scalar_lea.vmem %s2, %s5861
        $region44: #{game_of_life_rules_forward.1} parent=39 // pred_fallthru
          _
      $region40: #{game_of_life_rules_forward.1} parent=5 // pred_fallthru
        _
    $region6: #{game_of_life_rules_forward.1} parent=1 // loop_footer
      %s13 = sadd.s32 1, %s9
    $region7: #{game_of_life_rules_forward.1} parent=1 // loop_footer_branch
      %8 = sbr.rel target = $region3
    $region8: #{game_of_life_rules_forward.1} parent=1 // loop_exit
      _
    %5863 = vsyncpa [#allocation3], 1
    %s5864 = scalar_lea.sflag [#allocation3], 1
    %5865 = vsyncpa %s5864, 1

</llo_original>
